<compile_context>
chip_gen: v6e
topology: v6e:2x2x1
jax: 0.10.0
libtpu: 0.0.40
codegen_flags: <defaults>
</compile_context>

<pallas_src>
import functools

import jax
import jax.numpy as jnp
from jax.experimental import pallas as pl
from jax.experimental.pallas import tpu as pltpu


# ---------------------------------------------------------------------------
# Tiling helpers
# ---------------------------------------------------------------------------

_TK_MAX = 2048            # max K tile (bf16 weight tile <= 4 MB)
_TN_MAX = 1024            # max N tile (keeps >=2 parallel N blocks per layer)
_K_QUANTUM = 512          # pad K to a multiple of this; tk chosen from divisors
_N_QUANTUM = 256
_VMEM_LIMIT = 32 * 1024 * 1024   # explicit scoped-VMEM budget, fits all gens


def _round_up(x, m):
    return ((x + m - 1) // m) * m


def _pick_tile(dim_p, max_t, quantum):
    """Largest multiple of `quantum` that is <= max_t and divides dim_p."""
    t = min(max_t, dim_p)
    while dim_p % t != 0:
        t -= quantum
    return t


# ---------------------------------------------------------------------------
# Kernels
# ---------------------------------------------------------------------------

def _linear_relu_kernel(x_ref, w_ref, b_ref, o_ref, acc_ref, *, tk, apply_relu):
    """One (Mp x tn) output tile, reduced over the K grid axis (axis 1).

    x_ref : (Mp, Kp)  bf16, resident (same block for every grid step)
    w_ref : (tk, tn)  bf16, contiguous pre-tiled weight block
    b_ref : (1,  tn)  f32
    o_ref : (Mp, tn)  bf16
    acc_ref: (Mp, tn) f32 scratch (persists across the K axis)
    """
    k = pl.program_id(1)

    @pl.when(k == 0)
    def _():
        acc_ref[...] = jnp.zeros_like(acc_ref)

    # Slice the resident activation block; bf16 x bf16 MXU dot, f32 accumulate.
    xk = x_ref[:, pl.ds(pl.multiple_of(k * tk, _K_QUANTUM), tk)]
    acc_ref[...] += jnp.dot(xk, w_ref[...], preferred_element_type=jnp.float32)

    @pl.when(k == pl.num_programs(1) - 1)
    def _():
        out = acc_ref[...] + b_ref[...]          # (1, tn) broadcasts over rows
        if apply_relu:
            out = jnp.maximum(out, 0.0)
        o_ref[...] = out.astype(o_ref.dtype)     # bf16 activations to next layer


def _mlp_tail_kernel(x_ref, w3_ref, b3_ref, w4_ref, b4_ref, o_ref, acc_ref, *, tk):
    """Layer 3 (2048->512) + ReLU with layer 4 (512->1) fused in the epilogue."""
    k = pl.program_id(0)

    @pl.when(k == 0)
    def _():
        acc_ref[...] = jnp.zeros_like(acc_ref)

    xk = x_ref[:, pl.ds(pl.multiple_of(k * tk, _K_QUANTUM), tk)]
    acc_ref[...] += jnp.dot(xk, w3_ref[...], preferred_element_type=jnp.float32)

    @pl.when(k == pl.num_programs(0) - 1)
    def _():
        h = jnp.maximum(acc_ref[...] + b3_ref[...], 0.0)          # layer 3 + relu
        logits = jnp.dot(h.astype(jnp.bfloat16), w4_ref[...],
                         preferred_element_type=jnp.float32) + b4_ref[...]
        o_ref[...] = logits                                        # layer 4 (f32)


# ---------------------------------------------------------------------------
# pallas_call wrappers
# ---------------------------------------------------------------------------

def _linear_relu(x, wblk, b, tk, tn, *, apply_relu):
    """y = relu?(x @ w + b).

    x    : (Mp, Kp)            bf16
    wblk : (nk, nj, tk, tn)    bf16  (pre-tiled, contiguous blocks)
    b    : (1, Np)             f32
    """
    Mp, Kp = x.shape
    nk, nj, _, _ = wblk.shape
    Np = nj * tn
    grid = (nj, nk)   # reduction (K) axis last

    cost = pl.CostEstimate(
        flops=2 * Mp * Kp * Np,
        transcendentals=0,
        bytes_accessed=nk * nj * tk * tn * 2 + Mp * Kp * 2 + Mp * Np * 2 + Np * 4,
    )

    kernel = functools.partial(_linear_relu_kernel, tk=tk, apply_relu=apply_relu)
    return pl.pallas_call(
        kernel,
        out_shape=jax.ShapeDtypeStruct((Mp, Np), jnp.bfloat16),
        grid_spec=pltpu.PrefetchScalarGridSpec(
            num_scalar_prefetch=0,
            grid=grid,
            in_specs=[
                # Resident activation block: DMA'd once, sliced in-kernel.
                pl.BlockSpec((Mp, Kp), lambda j, k: (0, 0)),
                # Contiguous bf16 weight tile (leading block dims squeezed).
                pl.BlockSpec((None, None, tk, tn), lambda j, k: (k, j, 0, 0)),
                pl.BlockSpec((1, tn), lambda j, k: (0, j)),        # bias
            ],
            out_specs=pl.BlockSpec((Mp, tn), lambda j, k: (0, j)),
            scratch_shapes=[pltpu.VMEM((Mp, tn), jnp.float32)],
        ),
        compiler_params=pltpu.CompilerParams(
            dimension_semantics=("parallel", "arbitrary"),
            vmem_limit_bytes=_VMEM_LIMIT),
        cost_estimate=cost,
    )(x, wblk, b)


def _mlp_tail(x, w3blk, b3, w4, b4, tk):
    """Layers 3 + 4 fused: x:(Mp,Kp) bf16 -> logits:(Mp,1) f32.

    w3blk : (nk, tk, Np) bf16   w4 : (Np, 1) bf16   b3 : (1, Np) f32
    """
    Mp, Kp = x.shape
    nk, _, Np = w3blk.shape
    grid = (nk,)

    cost = pl.CostEstimate(
        flops=2 * Mp * Kp * Np + 2 * Mp * Np,
        transcendentals=0,
        bytes_accessed=nk * tk * Np * 2 + Mp * Kp * 2 + Np * 2 + Np * 4 + Mp * 4,
    )

    kernel = functools.partial(_mlp_tail_kernel, tk=tk)
    return pl.pallas_call(
        kernel,
        out_shape=jax.ShapeDtypeStruct((Mp, 1), jnp.float32),
        grid_spec=pltpu.PrefetchScalarGridSpec(
            num_scalar_prefetch=0,
            grid=grid,
            in_specs=[
                pl.BlockSpec((Mp, Kp), lambda k: (0, 0)),          # activations
                pl.BlockSpec((None, tk, Np), lambda k: (k, 0, 0)),  # w3 (bf16)
                pl.BlockSpec((1, Np), lambda k: (0, 0)),           # b3
                pl.BlockSpec((Np, 1), lambda k: (0, 0)),           # w4 (tiny)
                pl.BlockSpec((1, 1), lambda k: (0, 0)),            # b4
            ],
            out_specs=pl.BlockSpec((Mp, 1), lambda k: (0, 0)),
            scratch_shapes=[pltpu.VMEM((Mp, Np), jnp.float32)],
        ),
        compiler_params=pltpu.CompilerParams(
            dimension_semantics=("arbitrary",),
            vmem_limit_bytes=_VMEM_LIMIT),
        cost_estimate=cost,
    )(x, w3blk, b3, w4, b4)


# ---------------------------------------------------------------------------
# Parameter init / prep / forward
# ---------------------------------------------------------------------------

def init_params(key, num_features):
    """Mimics nn.Linear's U(-1/sqrt(fan_in), 1/sqrt(fan_in)) init (f32)."""
    dims = [(num_features, 4096), (4096, 2048), (2048, 512), (512, 1)]
    params = []
    for fan_in, fan_out in dims:
        key, kw, kb = jax.random.split(key, 3)
        bound = 1.0 / jnp.sqrt(jnp.float32(fan_in))
        w = jax.random.uniform(kw, (fan_in, fan_out), jnp.float32, -bound, bound)
        b = jax.random.uniform(kb, (fan_out,), jnp.float32, -bound, bound)
        params.append((w, b))
    return params


def prepare_params(params):
    """One-time: pad, cast to bf16, and pre-tile weights into contiguous blocks."""
    (w1, b1), (w2, b2), (w3, b3), (w4, b4) = params

    def _prep(w, b):
        K, N = w.shape
        Kp = _round_up(K, _K_QUANTUM)
        Np = _round_up(N, _N_QUANTUM)
        tk = _pick_tile(Kp, _TK_MAX, _K_QUANTUM)
        tn = _pick_tile(Np, _TN_MAX, _N_QUANTUM)
        wp = jnp.pad(w, ((0, Kp - K), (0, Np - N))).astype(jnp.bfloat16)
        # (Kp, Np) -> (nk, nj, tk, tn): each weight tile is one contiguous DMA.
        wblk = wp.reshape(Kp // tk, tk, Np // tn, tn).transpose(0, 2, 1, 3)
        bp = jnp.pad(b, (0, Np - N)).astype(jnp.float32).reshape(1, Np)
        return wblk, bp, tk, tn

    l1 = _prep(w1, b1)
    l2 = _prep(w2, b2)

    # Layer 3 (2048 -> 512): single N block, blocked along K only (fused tail).
    K3, N3 = w3.shape
    Kp3 = _round_up(K3, _K_QUANTUM)
    Np3 = _round_up(N3, _N_QUANTUM)
    tk3 = _pick_tile(Kp3, _TK_MAX, _K_QUANTUM)
    w3p = jnp.pad(w3, ((0, Kp3 - K3), (0, Np3 - N3))).astype(jnp.bfloat16)
    w3blk = w3p.reshape(Kp3 // tk3, tk3, Np3)
    b3p = jnp.pad(b3, (0, Np3 - N3)).astype(jnp.float32).reshape(1, Np3)

    # Layer 4 (512 -> 1): tiny, fused into layer 3's epilogue.
    w4p = jnp.pad(w4, ((0, Np3 - N3), (0, 0))).astype(jnp.bfloat16)
    b4p = b4.astype(jnp.float32).reshape(1, 1)

    return (l1, l2), (w3blk, b3p, w4p, b4p, tk3)


def binary_classification_forward(x, prepared):
    """Pallas implementation of BinaryClassification.forward (eval mode)."""
    (l1, l2), (w3blk, b3, w4, b4, tk3) = prepared
    M, K = x.shape
    Mp = _round_up(M, 16)                       # bf16 sublane packing

    h = x.astype(jnp.bfloat16)
    h = jnp.pad(h, ((0, Mp - M), (0, 0)))

    # Layers 1 & 2: tiled Linear + bias + ReLU (dropout = identity in eval).
    for wblk, bp, tk, tn in (l1, l2):
        Kp = wblk.shape[0] * tk
        if h.shape[1] < Kp:                     # zero K padding (layer 1 only)
            h = jnp.pad(h, ((0, 0), (0, Kp - h.shape[1])))
        h = _linear_relu(h, wblk, bp, tk, tn, apply_relu=True)

    # Layer 3 (+ReLU) with layer 4 fused in the epilogue.
    Kp3 = w3blk.shape[0] * tk3
    if h.shape[1] < Kp3:
        h = jnp.pad(h, ((0, 0), (0, Kp3 - h.shape[1])))
    logits = _mlp_tail(h, w3blk, b3, w4, b4, tk3)
    return logits[:M]


def reference_forward(x, params):
    """Pure-JAX reference with the same bf16-input / f32-accumulate semantics."""
    (w1, b1), (w2, b2), (w3, b3), (w4, b4) = params

    def bdot(a, b):
        return jnp.dot(a.astype(jnp.bfloat16), b.astype(jnp.bfloat16),
                       preferred_element_type=jnp.float32)

    h = jnp.maximum(bdot(x, w1) + b1, 0.0)
    h = jnp.maximum(bdot(h, w2) + b2, 0.0)
    h = jnp.maximum(bdot(h, w3) + b3, 0.0)
    return bdot(h, w4) + b4


# ---------------------------------------------------------------------------
# Test
# ---------------------------------------------------------------------------

if __name__ == "__main__":
    # Small but module-consistent shapes: true hidden dims (4096/2048/512/1),
    # reduced num_features (non-multiple of the tile -> exercises K padding),
    # batch not a multiple of 16 (exercises M padding).
    batch = 6
    num_features = 3000

    key = jax.random.PRNGKey(0)
    key, kx = jax.random.split(key)
    x = jax.random.normal(kx, (batch, num_features), jnp.float32)

    params = init_params(key, num_features)
    prepared = prepare_params(params)

    out = binary_classification_forward(x, prepared)
    out = jax.block_until_ready(out)
    assert out.shape == (batch, 1), out.shape

    ref = reference_forward(x, params)
    max_err = float(jnp.max(jnp.abs(out - ref)))
    assert jnp.allclose(out, ref, atol=5e-3, rtol=5e-3), max_err

    print("KERNEL_OK")
</pallas_src>

<mosaic_0001>
module attributes {stable_mosaic.version = 11 : i64} {
  func.func @_linear_relu_kernel(%arg0: i32, %arg1: i32, %arg2: memref<16x3072xbf16, #tpu.memory_space<vmem>>, %arg3: memref<1x1x1536x1024xbf16, #tpu.memory_space<vmem>>, %arg4: memref<1x1024xf32, #tpu.memory_space<vmem>>, %arg5: memref<16x1024xbf16, #tpu.memory_space<vmem>>, %arg6: memref<16x1024xf32, #tpu.memory_space<vmem>>) attributes {dimension_semantics = [#tpu.dimension_semantics<parallel>, #tpu.dimension_semantics<arbitrary>], iteration_bounds = array<i64: 4, 2>, scalar_prefetch = 0 : i64, scratch_operands = 1 : i64, tpu.core_type = #tpu.core_type<tc>, window_params = [{pipeline_mode = #tpu.pipeline_mode<synchronous>, transform_indices = @transform_0, window_bounds = array<i64: 16, 3072>}, {transform_indices = @transform_1, window_bounds = array<i64: 1, 1, 1536, 1024>}, {transform_indices = @transform_2, window_bounds = array<i64: 1, 1024>}, {transform_indices = @transform_3, window_bounds = array<i64: 16, 1024>}]} {
    %c0_i32 = arith.constant 0 : i32
    %0 = arith.cmpi eq, %arg1, %c0_i32 : i32
    %1 = arith.extui %0 : i1 to i32
    %c0_i32_0 = arith.constant 0 : i32
    %2 = arith.cmpi ne, %1, %c0_i32_0 : i32
    scf.if %2 {
      %cst_10 = arith.constant 0.000000e+00 : f32
      %16 = vector.broadcast %cst_10 : f32 to vector<16x1024xf32>
      %c0_11 = arith.constant 0 : index
      %c0_12 = arith.constant 0 : index
      %17 = vector.load %arg6[%c0_11, %c0_12] : memref<16x1024xf32, #tpu.memory_space<vmem>>, vector<16x1024xf32>
      tpu.vector_store %arg6[%c0_11, %c0_12], %16 {strides = array<i32>} : memref<16x1024xf32, #tpu.memory_space<vmem>>, vector<16x1024xf32>,
    } else {
    }
    %c1536_i32 = arith.constant 1536 : i32
    %3 = arith.muli %arg1, %c1536_i32 : i32
    %4 = tpu.assume_multiple %3, 512 : i32
    %c0 = arith.constant 0 : index
    %5 = arith.index_cast %4 : i32 to index
    %6 = vector.load %arg2[%c0, %5] : memref<16x3072xbf16, #tpu.memory_space<vmem>>, vector<16x1536xbf16>
    %c0_1 = arith.constant 0 : index
    %c0_2 = arith.constant 0 : index
    %7 = vector.load %arg6[%c0_1, %c0_2] : memref<16x1024xf32, #tpu.memory_space<vmem>>, vector<16x1024xf32>
    %c0_3 = arith.constant 0 : index
    %c0_4 = arith.constant 0 : index
    %c0_5 = arith.constant 0 : index
    %c0_6 = arith.constant 0 : index
    %8 = vector.load %arg3[%c0_3, %c0_4, %c0_5, %c0_6] : memref<1x1x1536x1024xbf16, #tpu.memory_space<vmem>>, vector<1x1x1536x1024xbf16>
    %9 = vector.shape_cast %8 : vector<1x1x1536x1024xbf16> to vector<1536x1024xbf16>
    %cst = arith.constant dense<0.000000e+00> : vector<16x1024xf32>
    %10 = tpu.matmul %6, %9, %cst {dimension_numbers = #tpu.dot_dimension_numbers<[1], [0], [0], [1], [0, 0, 1, 1], [], []>} : vector<16x1536xbf16>, vector<1536x1024xbf16>, vector<16x1024xf32> -> vector<16x1024xf32>
    %11 = arith.addf %7, %10 : vector<16x1024xf32>
    %c0_7 = arith.constant 0 : index
    %c0_8 = arith.constant 0 : index
    %12 = vector.load %arg6[%c0_7, %c0_8] : memref<16x1024xf32, #tpu.memory_space<vmem>>, vector<16x1024xf32>
    tpu.vector_store %arg6[%c0_7, %c0_8], %11 {strides = array<i32>} : memref<16x1024xf32, #tpu.memory_space<vmem>>, vector<16x1024xf32>,
    %c1_i32 = arith.constant 1 : i32
    %13 = arith.cmpi eq, %arg1, %c1_i32 : i32
    %14 = arith.extui %13 : i1 to i32
    %c0_i32_9 = arith.constant 0 : i32
    %15 = arith.cmpi ne, %14, %c0_i32_9 : i32
    scf.if %15 {
      %c0_10 = arith.constant 0 : index
      %c0_11 = arith.constant 0 : index
      %16 = vector.load %arg6[%c0_10, %c0_11] : memref<16x1024xf32, #tpu.memory_space<vmem>>, vector<16x1024xf32>
      %c0_12 = arith.constant 0 : index
      %c0_13 = arith.constant 0 : index
      %17 = vector.load %arg4[%c0_12, %c0_13] : memref<1x1024xf32, #tpu.memory_space<vmem>>, vector<1x1024xf32>
      %18 = vector.broadcast %17 : vector<1x1024xf32> to vector<16x1024xf32>
      %19 = arith.addf %16, %18 : vector<16x1024xf32>
      %cst_14 = arith.constant 0.000000e+00 : f32
      %20 = vector.broadcast %cst_14 : f32 to vector<16x1024xf32>
      %21 = arith.maximumf %19, %20 : vector<16x1024xf32>
      %22 = arith.truncf %21 : vector<16x1024xf32> to vector<16x1024xbf16>
      %c0_15 = arith.constant 0 : index
      %c0_16 = arith.constant 0 : index
      %23 = vector.load %arg5[%c0_15, %c0_16] : memref<16x1024xbf16, #tpu.memory_space<vmem>>, vector<16x1024xbf16>
      tpu.vector_store %arg5[%c0_15, %c0_16], %22 {strides = array<i32>} : memref<16x1024xbf16, #tpu.memory_space<vmem>>, vector<16x1024xbf16>,
    } else {
    }
    return
  }
  func.func @transform_0(%arg0: i32, %arg1: i32) -> (i32, i32) {
    %c0_i32 = arith.constant 0 : i32
    %c0_i32_0 = arith.constant 0 : i32
    %c0_i32_1 = arith.constant 0 : i32
    return %c0_i32, %c0_i32_0 : i32, i32
  }
  func.func @transform_1(%arg0: i32, %arg1: i32) -> (i32, i32, i32, i32) {
    %c0_i32 = arith.constant 0 : i32
    %c0_i32_0 = arith.constant 0 : i32
    %c0_i32_1 = arith.constant 0 : i32
    return %arg1, %arg0, %c0_i32, %c0_i32_0 : i32, i32, i32, i32
  }
  func.func @transform_2(%arg0: i32, %arg1: i32) -> (i32, i32) {
    %c0_i32 = arith.constant 0 : i32
    %c0_i32_0 = arith.constant 0 : i32
    return %c0_i32, %arg0 : i32, i32
  }
  func.func @transform_3(%arg0: i32, %arg1: i32) -> (i32, i32) {
    %c0_i32 = arith.constant 0 : i32
    %c0_i32_0 = arith.constant 0 : i32
    return %c0_i32, %arg0 : i32, i32
  }
}

</mosaic_0001>

<llo_original>
// kernel: tpu_custom_call.1
$region0: #{tpu_custom_call.1}
  #allocation0 [shape = 'u32[]', space=smem, size = 0x4, offset = 0x4, fixed_abs, tag = 'smem constant byte address 0x4 - core index']
  #allocation1 [shape = 'u32[144,128]{1,0:T(1,128)}', space=vmem, size = 0x12000, scoped, tag = 'internal scratch']
  #allocation2 [shape = 'f32[16,1024]{1,0:T(8,128)}', space=vmem, size = 0x10000, scoped, tag = 'scratch operand']
  %s0 = inlined_call_operand.hbm [shape: bf16[16,3072], index: 0, kind: input, shape index: {}]
  %s1 = inlined_call_operand.hbm [shape: bf16[2,4,1536,1024], index: 1, kind: input, shape index: {}]
  %s2 = inlined_call_operand.hbm [shape: f32[1,4096], index: 2, kind: input, shape index: {}]
  %s3 = inlined_call_operand.hbm [shape: bf16[16,4096], index: 3, kind: output, shape index: {}]
  %s4 = sld [smem:[#allocation0]]
  $region65: #{tpu_custom_call.1} parent=0
    _
  %s6 = ssub.s32 1, %s4
  %s7 = scalar_select 0, %s6, %s4
  $region1: #{tpu_custom_call.1} parent=0
    #allocation3 [shape = 'u8[98304]{0}', space=vmem, size = 0x18000, scoped, tag = 'input window, operand 0, single buffered']
    #allocation4 [shape = 's32[2]{0}', space=sflag, size = 0x8, scoped, tag = 'scoped memory for tpu_custom_call.1']
    #allocation5 [shape = 's32[2]{0}', space=sflag, size = 0x8, scoped, tag = 'scoped memory for tpu_custom_call.1']
    #allocation6 [shape = 'u8[6291456]{0}', space=vmem, size = 0x600000, scoped, tag = 'input window, operand 1']
    #allocation7 [shape = 's32[2]{0}', space=sflag, size = 0x8, scoped, tag = 'scoped memory for tpu_custom_call.1']
    #allocation8 [shape = 'u8[8192]{0}', space=vmem, size = 0x2000, scoped, tag = 'input window, operand 2']
    #allocation9 [shape = 'u8[65536]{0}', space=vmem, size = 0x10000, scoped, tag = 'output window, operand 0']
    %8 = vsyncpa [#allocation4], 0
    %9 = vsyncpa [#allocation7], 0
    %s10 = scalar_lea.sflag [#allocation7], 1
    %11 = vsyncpa %s10, 0
    %12 = vsyncpa [#allocation5], 0
    %s13 = scalar_lea.sflag [#allocation5], 1
    %14 = vsyncpa %s13, 0
    loop: start=0, step=1, limit=10
    $region2: #{tpu_custom_call.1} parent=1 // loop_pre_header
      _
    $region3: #{tpu_custom_call.1} parent=1 // loop_header
      %s16 = sphi 0, %s20
      %p17 = scmp.ge.s32.totalorder %s16, 10
      %s23 = sphi 0, %s35
      %s24 = sphi 0, %s31
      %s25 = sphi 0, %s23
      %s26 = sphi 0, %s24
      %s27 = sphi 0, %s25
      %s28 = sphi 0, %s26
      %s36 = sphi 0, %s36
      %s38 = sphi 0, %s36
      %s39 = sphi 0, %s38
      %s53 = sphi 0, %s39
      %s61 = sphi 0, %s63
      %s64 = sphi 0, %s61
      %s65 = sphi 0, %s64
      %s81 = sphi 0, %s65
      %s87 = sphi 0, %s89
      %s90 = sphi 0, %s87
      %s91 = sphi 0, %s90
      %s107 = sphi 0, %s91
      %s113 = sphi 0, %s115
      %s116 = sphi 0, %s113
      %s117 = sphi 0, %s116
      %s133 = sphi 0, %s117
    $region4: #{tpu_custom_call.1} parent=1 // loop_header_branch
      %19 = sbr.rel (%p17) target = $region8
    $region5: #{tpu_custom_call.1} parent=1 // loop_body
      %s21 = ssub.s32 %s16, 1
      %s22 = ssub.s32 %s16, 2
      %s29 = sadd.s32 1, %s24
      %p30 = scmp.ge.s32.totalorder %s29, 2
      %s31 = scalar_select %p30, 0, %s29
      %s32 = sadd.s32 1, %s23
      %s33 = scalar_select %p30, %s32, %s23
      %p34 = scmp.ge.s32.totalorder %s33, 4
      %s35 = scalar_select %p34, 0, %s33
      %s37 = sadd.s32 %s36, 1
      %p40 = scmp.eq.s32.totalorder %s16, 7
      %p41 = scmp.ne.s32.totalorder %s36, %s38
      %p42 = scmp.eq.s32.totalorder %s16, 0
      %p43 = por %p41, %p42
      %p44 = scmp.ne.s32.totalorder %s36, %s38
      %p45 = scmp.eq.s32.totalorder %s21, 7
      %p46 = por %p44, %p45
      %p47 = scmp.ne.s32.totalorder %s38, %s39
      %p48 = scmp.eq.s32.totalorder %s21, 0
      %p49 = por %p47, %p48
      %p50 = scmp.ne.s32.totalorder %s38, %s39
      %p51 = scmp.eq.s32.totalorder %s22, 7
      %p52 = por %p50, %p51
      %p54 = scmp.ne.s32.totalorder %s39, %s53
      %p55 = scmp.eq.s32.totalorder %s22, 0
      %p56 = por %p54, %p55
      %s57 = ssub.s32 %s24, %s31
      %s58 = ssub.s32 %s23, %s35
      %s59 = sor.u32 %s57, %s58
      %p60 = scmp.eq.s32.totalorder %s59, 0
      %s62 = sadd.s32 %s61, 1
      %s63 = scalar_select %p60, %s61, %s62
      %p66 = pneg %p60
      %p67 = scmp.eq.s32.totalorder %s16, 7
      %p68 = por %p66, %p67
      %p69 = scmp.ne.s32.totalorder %s61, %s64
      %p70 = scmp.eq.s32.totalorder %s16, 0
      %p71 = por %p69, %p70
      %p72 = scmp.ne.s32.totalorder %s61, %s64
      %p73 = scmp.eq.s32.totalorder %s21, 7
      %p74 = por %p72, %p73
      %p75 = scmp.ne.s32.totalorder %s64, %s65
      %p76 = scmp.eq.s32.totalorder %s21, 0
      %p77 = por %p75, %p76
      %p78 = scmp.ne.s32.totalorder %s64, %s65
      %p79 = scmp.eq.s32.totalorder %s22, 7
      %p80 = por %p78, %p79
      %p82 = scmp.ne.s32.totalorder %s65, %s81
      %p83 = scmp.eq.s32.totalorder %s22, 0
      %p84 = por %p82, %p83
      %s85 = ssub.s32 %s23, %s35
      %p86 = scmp.eq.s32.totalorder %s85, 0
      %s88 = sadd.s32 %s87, 1
      %s89 = scalar_select %p86, %s87, %s88
      %p92 = pneg %p86
      %p93 = scmp.eq.s32.totalorder %s16, 7
      %p94 = por %p92, %p93
      %p95 = scmp.ne.s32.totalorder %s87, %s90
      %p96 = scmp.eq.s32.totalorder %s16, 0
      %p97 = por %p95, %p96
      %p98 = scmp.ne.s32.totalorder %s87, %s90
      %p99 = scmp.eq.s32.totalorder %s21, 7
      %p100 = por %p98, %p99
      %p101 = scmp.ne.s32.totalorder %s90, %s91
      %p102 = scmp.eq.s32.totalorder %s21, 0
      %p103 = por %p101, %p102
      %p104 = scmp.ne.s32.totalorder %s90, %s91
      %p105 = scmp.eq.s32.totalorder %s22, 7
      %p106 = por %p104, %p105
      %p108 = scmp.ne.s32.totalorder %s91, %s107
      %p109 = scmp.eq.s32.totalorder %s22, 0
      %p110 = por %p108, %p109
      %s111 = ssub.s32 %s23, %s35
      %p112 = scmp.eq.s32.totalorder %s111, 0
      %s114 = sadd.s32 %s113, 1
      %s115 = scalar_select %p112, %s113, %s114
      %p118 = pneg %p112
      %p119 = scmp.eq.s32.totalorder %s16, 7
      %p120 = por %p118, %p119
      %p121 = scmp.ne.s32.totalorder %s113, %s116
      %p122 = scmp.eq.s32.totalorder %s16, 0
      %p123 = por %p121, %p122
      %p124 = scmp.ne.s32.totalorder %s113, %s116
      %p125 = scmp.eq.s32.totalorder %s21, 7
      %p126 = por %p124, %p125
      %p127 = scmp.ne.s32.totalorder %s116, %s117
      %p128 = scmp.eq.s32.totalorder %s21, 0
      %p129 = por %p127, %p128
      %p130 = scmp.ne.s32.totalorder %s116, %s117
      %p131 = scmp.eq.s32.totalorder %s22, 7
      %p132 = por %p130, %p131
      %p134 = scmp.ne.s32.totalorder %s117, %s133
      %p135 = scmp.eq.s32.totalorder %s22, 0
      %p136 = por %p134, %p135
      %p137 = scmp.le.s32.totalorder 1, %s16
      %p138 = scmp.lt.s32.totalorder %s16, 9
      %p139 = pnand %p137, %p138
      %p140 = pneg %p139
      // Predicated region
      $region9: #{tpu_custom_call.1} parent=5 // pred_check
        _
      $region10: #{tpu_custom_call.1} parent=5 // pred_check_branch
        %142 = sbr.rel (%p139) target = $region12
      $region11: #{tpu_custom_call.1} parent=5 // pred_region
        %s143 = ssub.s32 %s16, 1
        // Predicated region
        $region13: #{tpu_custom_call.1} parent=11 // pred_check
          %p144 = pneg %p49
        $region14: #{tpu_custom_call.1} parent=11 // pred_check_branch
          %146 = sbr.rel (%p144) target = $region16
        $region15: #{tpu_custom_call.1} parent=11 // pred_region
          %s148 = ssub.s32 3072, 3072
          %149 = vsyncadd [#allocation4], %s148
          %s150 = sshll.u32 [#allocation3], 4
          %s151 = int_to_ptr.vmem [resolvable:$true] %s150
          %156 = dma.hbm_to_vmem [thread:$0]  %s0, 3072, %s151, [#allocation4], 1536, 1536, 96
        $region16: #{tpu_custom_call.1} parent=11 // pred_fallthru
          _
      $region12: #{tpu_custom_call.1} parent=5 // pred_fallthru
        _
      %p157 = scmp.lt.s32.totalorder %s16, 8
      // Predicated region
      $region17: #{tpu_custom_call.1} parent=5 // pred_check
        %p158 = pneg %p157
      $region18: #{tpu_custom_call.1} parent=5 // pred_check_branch
        %160 = sbr.rel (%p158) target = $region20
      $region19: #{tpu_custom_call.1} parent=5 // pred_region
        // Predicated region
        $region21: #{tpu_custom_call.1} parent=19 // pred_check
          %p161 = pneg %p71
        $region22: #{tpu_custom_call.1} parent=19 // pred_check_branch
          %163 = sbr.rel (%p161) target = $region24
        $region23: #{tpu_custom_call.1} parent=19 // pred_region
          %s164 = sand.u32 %s16, 1
          %s165 = scalar_lea.sflag [#allocation7], %s164
          %s166 = sand.u32 %s61, 1
          %s167 = smul.addr %s166, 6144
          %s168 = scalar_lea.vmem [#allocation6], %s167
          %s170 = ssub.s32 98304, 98304
          %171 = vsyncadd %s165, %s170
          %s172 = smul.addr %s23, 1536
          %s173 = smul.addr %s24, 6144
          %s174 = sadd.s32 %s172, %s173
          %s175 = smul.addr %s174, 64
          %s176 = scalar_lea.hbm %s1, %s175
          %s177 = sshll.u32 %s168, 4
          %s178 = int_to_ptr.vmem [resolvable:$true] %s177
          %183 = dma.hbm_to_vmem [thread:$0]  %s176, 98304, %s178, %s165, 512, 512, 32
        $region24: #{tpu_custom_call.1} parent=19 // pred_fallthru
          _
        // Predicated region
        $region25: #{tpu_custom_call.1} parent=19 // pred_check
          %p184 = pneg %p97
        $region26: #{tpu_custom_call.1} parent=19 // pred_check_branch
          %186 = sbr.rel (%p184) target = $region28
        $region27: #{tpu_custom_call.1} parent=19 // pred_region
          %s187 = sand.u32 %s16, 1
          %s188 = scalar_lea.sflag [#allocation7], %s187
          %s189 = sand.u32 %s87, 1
          %s190 = smul.addr %s189, 8
          %s191 = scalar_lea.vmem [#allocation8], %s190
          %s192 = smul.u32 8, %s23
          %s194 = ssub.s32 128, 128
          %195 = vsyncadd %s188, %s194
          %s196 = smul.addr %s192, 16
          %s197 = scalar_lea.hbm %s2, %s196
          %s199 = sshll.u32 %s191, 4
          %s200 = int_to_ptr.vmem [resolvable:$true] %s199
          %202 = dma.hbm_to_vmem [thread:$0]  %s197, 128, %s200, %s188
        $region28: #{tpu_custom_call.1} parent=19 // pred_fallthru
          _
      $region20: #{tpu_custom_call.1} parent=5 // pred_fallthru
        _
      %p203 = scmp.le.s32.totalorder 1, %s16
      %p204 = scmp.lt.s32.totalorder %s16, 9
      %p205 = pnand %p203, %p204
      %p206 = pneg %p205
      // Predicated region
      $region29: #{tpu_custom_call.1} parent=5 // pred_check
        _
      $region30: #{tpu_custom_call.1} parent=5 // pred_check_branch
        %208 = sbr.rel (%p205) target = $region32
      $region31: #{tpu_custom_call.1} parent=5 // pred_region
        %s209 = ssub.s32 %s16, 1
        // Predicated region
        $region33: #{tpu_custom_call.1} parent=31 // pred_check
          %p210 = pneg %p49
        $region34: #{tpu_custom_call.1} parent=31 // pred_check_branch
          %212 = sbr.rel (%p210) target = $region36
        $region35: #{tpu_custom_call.1} parent=31 // pred_region
          %213 = dma.done [#allocation4], 3072
        $region36: #{tpu_custom_call.1} parent=31 // pred_fallthru
          _
        %s214 = sand.u32 %s21, 1
        %s215 = scalar_lea.sflag [#allocation7], %s214
        %s216 = sand.u32 %s64, 1
        %s217 = smul.addr %s216, 6144
        %s218 = scalar_lea.vmem [#allocation6], %s217
        // Predicated region
        $region37: #{tpu_custom_call.1} parent=31 // pred_check
          %p219 = pneg %p77
        $region38: #{tpu_custom_call.1} parent=31 // pred_check_branch
          %221 = sbr.rel (%p219) target = $region40
        $region39: #{tpu_custom_call.1} parent=31 // pred_region
          %222 = dma.done %s215, 98304
        $region40: #{tpu_custom_call.1} parent=31 // pred_fallthru
          _
        %s223 = sand.u32 %s21, 1
        %s224 = scalar_lea.sflag [#allocation7], %s223
        %s225 = sand.u32 %s90, 1
        %s226 = smul.addr %s225, 8
        %s227 = scalar_lea.vmem [#allocation8], %s226
        // Predicated region
        $region41: #{tpu_custom_call.1} parent=31 // pred_check
          %p228 = pneg %p103
        $region42: #{tpu_custom_call.1} parent=31 // pred_check_branch
          %230 = sbr.rel (%p228) target = $region44
        $region43: #{tpu_custom_call.1} parent=31 // pred_region
          %231 = dma.done %s224, 128
        $region44: #{tpu_custom_call.1} parent=31 // pred_fallthru
          _
        %p232 = pneg %p49
        %p233 = pneg %p46
        %s234 = sand.u32 %s21, 1
        %s235 = scalar_lea.sflag [#allocation7], %s234
        %s236 = sand.u32 %s64, 1
        %s237 = smul.addr %s236, 6144
        %s238 = scalar_lea.vmem [#allocation6], %s237
        %p239 = pneg %p77
        %p240 = pneg %p74
        %s241 = sand.u32 %s21, 1
        %s242 = scalar_lea.sflag [#allocation7], %s241
        %s243 = sand.u32 %s90, 1
        %s244 = smul.addr %s243, 8
        %s245 = scalar_lea.vmem [#allocation8], %s244
        %p246 = pneg %p103
        %p247 = pneg %p100
        %p248 = pneg %p129
        %p249 = pneg %p126
        %s250 = sand.u32 %s116, 1
        %s251 = scalar_lea.sflag [#allocation5], %s250
        %s252 = sand.u32 %s116, 1
        %s253 = smul.addr %s252, 64
        %s254 = scalar_lea.vmem [#allocation9], %s253
        %s255 = smul.u32 8, %s25
        %s256 = smul.u32 8, %s25
        %p257 = scmp.eq.s32.totalorder %s26, 0
        // Predicated region
        $region45: #{tpu_custom_call.1} parent=31 // pred_check
          %p258 = pneg %p257
        $region46: #{tpu_custom_call.1} parent=31 // pred_check_branch
          %260 = sbr.rel (%p258) target = $region48
        $region47: #{tpu_custom_call.1} parent=31 // pred_region
          %261 = vst [vmem:[#allocation2] sm:$0xff] 0.0
          %262 = vst [vmem:[#allocation2 + $0x8] sm:$0xff] 0.0
          %263 = vst [vmem:[#allocation2 + $0x10] sm:$0xff] 0.0
          %264 = vst [vmem:[#allocation2 + $0x18] sm:$0xff] 0.0
          %265 = vst [vmem:[#allocation2 + $0x20] sm:$0xff] 0.0
          %266 = vst [vmem:[#allocation2 + $0x28] sm:$0xff] 0.0
          %267 = vst [vmem:[#allocation2 + $0x30] sm:$0xff] 0.0
          %268 = vst [vmem:[#allocation2 + $0x38] sm:$0xff] 0.0
          %269 = vst [vmem:[#allocation2 + $0x40] sm:$0xff] 0.0
          %270 = vst [vmem:[#allocation2 + $0x48] sm:$0xff] 0.0
          %271 = vst [vmem:[#allocation2 + $0x50] sm:$0xff] 0.0
          %272 = vst [vmem:[#allocation2 + $0x58] sm:$0xff] 0.0
          %273 = vst [vmem:[#allocation2 + $0x60] sm:$0xff] 0.0
          %274 = vst [vmem:[#allocation2 + $0x68] sm:$0xff] 0.0
          %275 = vst [vmem:[#allocation2 + $0x70] sm:$0xff] 0.0
          %276 = vst [vmem:[#allocation2 + $0x78] sm:$0xff] 0.0
        $region48: #{tpu_custom_call.1} parent=31 // pred_fallthru
          _
        %s277 = smul.u32 %s26, 1536
        %s278 = sshra.s32 %s277, 7
        %s279 = sand.u32 %s277, 127
        %s280 = smul.addr %s278, 4
        %s281 = scalar_lea.vmem [#allocation3], %s280
        %v282 = vld [vmem:[%s281] sm:$0xff]
        %v283 = vld [vmem:[%s281 + $0x8] sm:$0xff]
        %v284 = vld [vmem:[%s281 + $0x10] sm:$0xff]
        %v285 = vld [vmem:[%s281 + $0x18] sm:$0xff]
        %v286 = vld [vmem:[%s281 + $0x20] sm:$0xff]
        %v287 = vld [vmem:[%s281 + $0x28] sm:$0xff]
        %v288 = vld [vmem:[%s281 + $0x60] sm:$0xff]
        %v289 = vld [vmem:[%s281 + $0x68] sm:$0xff]
        %v290 = vld [vmem:[%s281 + $0x70] sm:$0xff]
        %v291 = vld [vmem:[%s281 + $0x78] sm:$0xff]
        %v292 = vld [vmem:[%s281 + $0x80] sm:$0xff]
        %v293 = vld [vmem:[%s281 + $0x88] sm:$0xff]
        %v294 = vld [vmem:[#allocation2] sm:$0xff]
        %v295 = vld [vmem:[#allocation2 + $0x8] sm:$0xff]
        %v296 = vld [vmem:[#allocation2 + $0x10] sm:$0xff]
        %v297 = vld [vmem:[#allocation2 + $0x18] sm:$0xff]
        %v298 = vld [vmem:[#allocation2 + $0x20] sm:$0xff]
        %v299 = vld [vmem:[#allocation2 + $0x28] sm:$0xff]
        %v300 = vld [vmem:[#allocation2 + $0x30] sm:$0xff]
        %v301 = vld [vmem:[#allocation2 + $0x38] sm:$0xff]
        %v302 = vld [vmem:[#allocation2 + $0x40] sm:$0xff]
        %v303 = vld [vmem:[#allocation2 + $0x48] sm:$0xff]
        %v304 = vld [vmem:[#allocation2 + $0x50] sm:$0xff]
        %v305 = vld [vmem:[#allocation2 + $0x58] sm:$0xff]
        %v306 = vld [vmem:[#allocation2 + $0x60] sm:$0xff]
        %v307 = vld [vmem:[#allocation2 + $0x68] sm:$0xff]
        %v308 = vld [vmem:[#allocation2 + $0x70] sm:$0xff]
        %v309 = vld [vmem:[#allocation2 + $0x78] sm:$0xff]
        %v310 = vld [vmem:[%s218] sm:$0xff]
        %v311 = vld [vmem:[%s218 + $0x8] sm:$0xff]
        %v312 = vld [vmem:[%s218 + $0x10] sm:$0xff]
        %v313 = vld [vmem:[%s218 + $0x18] sm:$0xff]
        %v314 = vld [vmem:[%s218 + $0x20] sm:$0xff]
        %v315 = vld [vmem:[%s218 + $0x28] sm:$0xff]
        %v316 = vld [vmem:[%s218 + $0x30] sm:$0xff]
        %v317 = vld [vmem:[%s218 + $0x38] sm:$0xff]
        %v318 = vld [vmem:[%s218 + $0x40] sm:$0xff]
        %v319 = vld [vmem:[%s218 + $0x48] sm:$0xff]
        %v320 = vld [vmem:[%s218 + $0x50] sm:$0xff]
        %v321 = vld [vmem:[%s218 + $0x58] sm:$0xff]
        %v322 = vld [vmem:[%s218 + $0x60] sm:$0xff]
        %v323 = vld [vmem:[%s218 + $0x68] sm:$0xff]
        %v324 = vld [vmem:[%s218 + $0x70] sm:$0xff]
        %v325 = vld [vmem:[%s218 + $0x78] sm:$0xff]
        %v326 = vld [vmem:[%s218 + $0x80] sm:$0xff]
        %v327 = vld [vmem:[%s218 + $0x88] sm:$0xff]
        %v328 = vld [vmem:[%s218 + $0x90] sm:$0xff]
        %v329 = vld [vmem:[%s218 + $0x98] sm:$0xff]
        %v330 = vld [vmem:[%s218 + $0xa0] sm:$0xff]
        %v331 = vld [vmem:[%s218 + $0xa8] sm:$0xff]
        %v332 = vld [vmem:[%s218 + $0xb0] sm:$0xff]
        %v333 = vld [vmem:[%s218 + $0xb8] sm:$0xff]
        %v334 = vld [vmem:[%s218 + $0xc0] sm:$0xff]
        %v335 = vld [vmem:[%s218 + $0xc8] sm:$0xff]
        %v336 = vld [vmem:[%s218 + $0xd0] sm:$0xff]
        %v337 = vld [vmem:[%s218 + $0xd8] sm:$0xff]
        %v338 = vld [vmem:[%s218 + $0xe0] sm:$0xff]
        %v339 = vld [vmem:[%s218 + $0xe8] sm:$0xff]
        %v340 = vld [vmem:[%s218 + $0xf0] sm:$0xff]
        %v341 = vld [vmem:[%s218 + $0xf8] sm:$0xff]
        %v342 = vld [vmem:[%s218 + $0x100] sm:$0xff]
        %v343 = vld [vmem:[%s218 + $0x108] sm:$0xff]
        %v344 = vld [vmem:[%s218 + $0x110] sm:$0xff]
        %v345 = vld [vmem:[%s218 + $0x118] sm:$0xff]
        %v346 = vld [vmem:[%s218 + $0x120] sm:$0xff]
        %v347 = vld [vmem:[%s218 + $0x128] sm:$0xff]
        %v348 = vld [vmem:[%s218 + $0x130] sm:$0xff]
        %v349 = vld [vmem:[%s218 + $0x138] sm:$0xff]
        %v350 = vld [vmem:[%s218 + $0x140] sm:$0xff]
        %v351 = vld [vmem:[%s218 + $0x148] sm:$0xff]
        %v352 = vld [vmem:[%s218 + $0x150] sm:$0xff]
        %v353 = vld [vmem:[%s218 + $0x158] sm:$0xff]
        %v354 = vld [vmem:[%s218 + $0x160] sm:$0xff]
        %v355 = vld [vmem:[%s218 + $0x168] sm:$0xff]
        %v356 = vld [vmem:[%s218 + $0x170] sm:$0xff]
        %v357 = vld [vmem:[%s218 + $0x178] sm:$0xff]
        %v358 = vld [vmem:[%s218 + $0x180] sm:$0xff]
        %v359 = vld [vmem:[%s218 + $0x188] sm:$0xff]
        %v360 = vld [vmem:[%s218 + $0x190] sm:$0xff]
        %v361 = vld [vmem:[%s218 + $0x198] sm:$0xff]
        %v362 = vld [vmem:[%s218 + $0x1a0] sm:$0xff]
        %v363 = vld [vmem:[%s218 + $0x1a8] sm:$0xff]
        %v364 = vld [vmem:[%s218 + $0x1b0] sm:$0xff]
        %v365 = vld [vmem:[%s218 + $0x1b8] sm:$0xff]
        %v366 = vld [vmem:[%s218 + $0x1c0] sm:$0xff]
        %v367 = vld [vmem:[%s218 + $0x1c8] sm:$0xff]
        %v368 = vld [vmem:[%s218 + $0x1d0] sm:$0xff]
        %v369 = vld [vmem:[%s218 + $0x1d8] sm:$0xff]
        %v370 = vld [vmem:[%s218 + $0x1e0] sm:$0xff]
        %v371 = vld [vmem:[%s218 + $0x1e8] sm:$0xff]
        %v372 = vld [vmem:[%s218 + $0x1f0] sm:$0xff]
        %v373 = vld [vmem:[%s218 + $0x1f8] sm:$0xff]
        %v374 = vld [vmem:[%s218 + $0x200] sm:$0xff]
        %v375 = vld [vmem:[%s218 + $0x208] sm:$0xff]
        %v376 = vld [vmem:[%s218 + $0x210] sm:$0xff]
        %v377 = vld [vmem:[%s218 + $0x218] sm:$0xff]
        %v378 = vld [vmem:[%s218 + $0x220] sm:$0xff]
        %v379 = vld [vmem:[%s218 + $0x228] sm:$0xff]
        %v380 = vld [vmem:[%s218 + $0x230] sm:$0xff]
        %v381 = vld [vmem:[%s218 + $0x238] sm:$0xff]
        %v382 = vld [vmem:[%s218 + $0x240] sm:$0xff]
        %v383 = vld [vmem:[%s218 + $0x248] sm:$0xff]
        %v384 = vld [vmem:[%s218 + $0x250] sm:$0xff]
        %v385 = vld [vmem:[%s218 + $0x258] sm:$0xff]
        %v386 = vld [vmem:[%s218 + $0x260] sm:$0xff]
        %v387 = vld [vmem:[%s218 + $0x268] sm:$0xff]
        %v388 = vld [vmem:[%s218 + $0x270] sm:$0xff]
        %v389 = vld [vmem:[%s218 + $0x278] sm:$0xff]
        %v390 = vld [vmem:[%s218 + $0x280] sm:$0xff]
        %v391 = vld [vmem:[%s218 + $0x288] sm:$0xff]
        %v392 = vld [vmem:[%s218 + $0x290] sm:$0xff]
        %v393 = vld [vmem:[%s218 + $0x298] sm:$0xff]
        %v394 = vld [vmem:[%s218 + $0x2a0] sm:$0xff]
        %v395 = vld [vmem:[%s218 + $0x2a8] sm:$0xff]
        %v396 = vld [vmem:[%s218 + $0x2b0] sm:$0xff]
        %v397 = vld [vmem:[%s218 + $0x2b8] sm:$0xff]
        %v398 = vld [vmem:[%s218 + $0x2c0] sm:$0xff]
        %v399 = vld [vmem:[%s218 + $0x2c8] sm:$0xff]
        %v400 = vld [vmem:[%s218 + $0x2d0] sm:$0xff]
        %v401 = vld [vmem:[%s218 + $0x2d8] sm:$0xff]
        %v402 = vld [vmem:[%s218 + $0x2e0] sm:$0xff]
        %v403 = vld [vmem:[%s218 + $0x2e8] sm:$0xff]
        %v404 = vld [vmem:[%s218 + $0x2f0] sm:$0xff]
        %v405 = vld [vmem:[%s218 + $0x2f8] sm:$0xff]
        %v406 = vld [vmem:[%s218 + $0x300] sm:$0xff]
        %v407 = vld [vmem:[%s218 + $0x308] sm:$0xff]
        %v408 = vld [vmem:[%s218 + $0x310] sm:$0xff]
        %v409 = vld [vmem:[%s218 + $0x318] sm:$0xff]
        %v410 = vld [vmem:[%s218 + $0x320] sm:$0xff]
        %v411 = vld [vmem:[%s218 + $0x328] sm:$0xff]
        %v412 = vld [vmem:[%s218 + $0x330] sm:$0xff]
        %v413 = vld [vmem:[%s218 + $0x338] sm:$0xff]
        %v414 = vld [vmem:[%s218 + $0x340] sm:$0xff]
        %v415 = vld [vmem:[%s218 + $0x348] sm:$0xff]
        %v416 = vld [vmem:[%s218 + $0x350] sm:$0xff]
        %v417 = vld [vmem:[%s218 + $0x358] sm:$0xff]
        %v418 = vld [vmem:[%s218 + $0x360] sm:$0xff]
        %v419 = vld [vmem:[%s218 + $0x368] sm:$0xff]
        %v420 = vld [vmem:[%s218 + $0x370] sm:$0xff]
        %v421 = vld [vmem:[%s218 + $0x378] sm:$0xff]
        %v422 = vld [vmem:[%s218 + $0x380] sm:$0xff]
        %v423 = vld [vmem:[%s218 + $0x388] sm:$0xff]
        %v424 = vld [vmem:[%s218 + $0x390] sm:$0xff]
        %v425 = vld [vmem:[%s218 + $0x398] sm:$0xff]
        %v426 = vld [vmem:[%s218 + $0x3a0] sm:$0xff]
        %v427 = vld [vmem:[%s218 + $0x3a8] sm:$0xff]
        %v428 = vld [vmem:[%s218 + $0x3b0] sm:$0xff]
        %v429 = vld [vmem:[%s218 + $0x3b8] sm:$0xff]
        %v430 = vld [vmem:[%s218 + $0x3c0] sm:$0xff]
        %v431 = vld [vmem:[%s218 + $0x3c8] sm:$0xff]
        %v432 = vld [vmem:[%s218 + $0x3d0] sm:$0xff]
        %v433 = vld [vmem:[%s218 + $0x3d8] sm:$0xff]
        %v434 = vld [vmem:[%s218 + $0x3e0] sm:$0xff]
        %v435 = vld [vmem:[%s218 + $0x3e8] sm:$0xff]
        %v436 = vld [vmem:[%s218 + $0x3f0] sm:$0xff]
        %v437 = vld [vmem:[%s218 + $0x3f8] sm:$0xff]
        %v438 = vld [vmem:[%s218 + $0x400] sm:$0xff]
        %v439 = vld [vmem:[%s218 + $0x408] sm:$0xff]
        %v440 = vld [vmem:[%s218 + $0x410] sm:$0xff]
        %v441 = vld [vmem:[%s218 + $0x418] sm:$0xff]
        %v442 = vld [vmem:[%s218 + $0x420] sm:$0xff]
        %v443 = vld [vmem:[%s218 + $0x428] sm:$0xff]
        %v444 = vld [vmem:[%s218 + $0x430] sm:$0xff]
        %v445 = vld [vmem:[%s218 + $0x438] sm:$0xff]
        %v446 = vld [vmem:[%s218 + $0x440] sm:$0xff]
        %v447 = vld [vmem:[%s218 + $0x448] sm:$0xff]
        %v448 = vld [vmem:[%s218 + $0x450] sm:$0xff]
        %v449 = vld [vmem:[%s218 + $0x458] sm:$0xff]
        %v450 = vld [vmem:[%s218 + $0x460] sm:$0xff]
        %v451 = vld [vmem:[%s218 + $0x468] sm:$0xff]
        %v452 = vld [vmem:[%s218 + $0x470] sm:$0xff]
        %v453 = vld [vmem:[%s218 + $0x478] sm:$0xff]
        %v454 = vld [vmem:[%s218 + $0x480] sm:$0xff]
        %v455 = vld [vmem:[%s218 + $0x488] sm:$0xff]
        %v456 = vld [vmem:[%s218 + $0x490] sm:$0xff]
        %v457 = vld [vmem:[%s218 + $0x498] sm:$0xff]
        %v458 = vld [vmem:[%s218 + $0x4a0] sm:$0xff]
        %v459 = vld [vmem:[%s218 + $0x4a8] sm:$0xff]
        %v460 = vld [vmem:[%s218 + $0x4b0] sm:$0xff]
        %v461 = vld [vmem:[%s218 + $0x4b8] sm:$0xff]
        %v462 = vld [vmem:[%s218 + $0x4c0] sm:$0xff]
        %v463 = vld [vmem:[%s218 + $0x4c8] sm:$0xff]
        %v464 = vld [vmem:[%s218 + $0x4d0] sm:$0xff]
        %v465 = vld [vmem:[%s218 + $0x4d8] sm:$0xff]
        %v466 = vld [vmem:[%s218 + $0x4e0] sm:$0xff]
        %v467 = vld [vmem:[%s218 + $0x4e8] sm:$0xff]
        %v468 = vld [vmem:[%s218 + $0x4f0] sm:$0xff]
        %v469 = vld [vmem:[%s218 + $0x4f8] sm:$0xff]
        %v470 = vld [vmem:[%s218 + $0x500] sm:$0xff]
        %v471 = vld [vmem:[%s218 + $0x508] sm:$0xff]
        %v472 = vld [vmem:[%s218 + $0x510] sm:$0xff]
        %v473 = vld [vmem:[%s218 + $0x518] sm:$0xff]
        %v474 = vld [vmem:[%s218 + $0x520] sm:$0xff]
        %v475 = vld [vmem:[%s218 + $0x528] sm:$0xff]
        %v476 = vld [vmem:[%s218 + $0x530] sm:$0xff]
        %v477 = vld [vmem:[%s218 + $0x538] sm:$0xff]
        %v478 = vld [vmem:[%s218 + $0x540] sm:$0xff]
        %v479 = vld [vmem:[%s218 + $0x548] sm:$0xff]
        %v480 = vld [vmem:[%s218 + $0x550] sm:$0xff]
        %v481 = vld [vmem:[%s218 + $0x558] sm:$0xff]
        %v482 = vld [vmem:[%s218 + $0x560] sm:$0xff]
        %v483 = vld [vmem:[%s218 + $0x568] sm:$0xff]
        %v484 = vld [vmem:[%s218 + $0x570] sm:$0xff]
        %v485 = vld [vmem:[%s218 + $0x578] sm:$0xff]
        %v486 = vld [vmem:[%s218 + $0x580] sm:$0xff]
        %v487 = vld [vmem:[%s218 + $0x588] sm:$0xff]
        %v488 = vld [vmem:[%s218 + $0x590] sm:$0xff]
        %v489 = vld [vmem:[%s218 + $0x598] sm:$0xff]
        %v490 = vld [vmem:[%s218 + $0x5a0] sm:$0xff]
        %v491 = vld [vmem:[%s218 + $0x5a8] sm:$0xff]
        %v492 = vld [vmem:[%s218 + $0x5b0] sm:$0xff]
        %v493 = vld [vmem:[%s218 + $0x5b8] sm:$0xff]
        %v494 = vld [vmem:[%s218 + $0x5c0] sm:$0xff]
        %v495 = vld [vmem:[%s218 + $0x5c8] sm:$0xff]
        %v496 = vld [vmem:[%s218 + $0x5d0] sm:$0xff]
        %v497 = vld [vmem:[%s218 + $0x5d8] sm:$0xff]
        %v498 = vld [vmem:[%s218 + $0x5e0] sm:$0xff]
        %v499 = vld [vmem:[%s218 + $0x5e8] sm:$0xff]
        %v500 = vld [vmem:[%s218 + $0x5f0] sm:$0xff]
        %v501 = vld [vmem:[%s218 + $0x5f8] sm:$0xff]
        %v502 = vld [vmem:[%s218 + $0x600] sm:$0xff]
        %v503 = vld [vmem:[%s218 + $0x608] sm:$0xff]
        %v504 = vld [vmem:[%s218 + $0x610] sm:$0xff]
        %v505 = vld [vmem:[%s218 + $0x618] sm:$0xff]
        %v506 = vld [vmem:[%s218 + $0x620] sm:$0xff]
        %v507 = vld [vmem:[%s218 + $0x628] sm:$0xff]
        %v508 = vld [vmem:[%s218 + $0x630] sm:$0xff]
        %v509 = vld [vmem:[%s218 + $0x638] sm:$0xff]
        %v510 = vld [vmem:[%s218 + $0x640] sm:$0xff]
        %v511 = vld [vmem:[%s218 + $0x648] sm:$0xff]
        %v512 = vld [vmem:[%s218 + $0x650] sm:$0xff]
        %v513 = vld [vmem:[%s218 + $0x658] sm:$0xff]
        %v514 = vld [vmem:[%s218 + $0x660] sm:$0xff]
        %v515 = vld [vmem:[%s218 + $0x668] sm:$0xff]
        %v516 = vld [vmem:[%s218 + $0x670] sm:$0xff]
        %v517 = vld [vmem:[%s218 + $0x678] sm:$0xff]
        %v518 = vld [vmem:[%s218 + $0x680] sm:$0xff]
        %v519 = vld [vmem:[%s218 + $0x688] sm:$0xff]
        %v520 = vld [vmem:[%s218 + $0x690] sm:$0xff]
        %v521 = vld [vmem:[%s218 + $0x698] sm:$0xff]
        %v522 = vld [vmem:[%s218 + $0x6a0] sm:$0xff]
        %v523 = vld [vmem:[%s218 + $0x6a8] sm:$0xff]
        %v524 = vld [vmem:[%s218 + $0x6b0] sm:$0xff]
        %v525 = vld [vmem:[%s218 + $0x6b8] sm:$0xff]
        %v526 = vld [vmem:[%s218 + $0x6c0] sm:$0xff]
        %v527 = vld [vmem:[%s218 + $0x6c8] sm:$0xff]
        %v528 = vld [vmem:[%s218 + $0x6d0] sm:$0xff]
        %v529 = vld [vmem:[%s218 + $0x6d8] sm:$0xff]
        %v530 = vld [vmem:[%s218 + $0x6e0] sm:$0xff]
        %v531 = vld [vmem:[%s218 + $0x6e8] sm:$0xff]
        %v532 = vld [vmem:[%s218 + $0x6f0] sm:$0xff]
        %v533 = vld [vmem:[%s218 + $0x6f8] sm:$0xff]
        %v534 = vld [vmem:[%s218 + $0x700] sm:$0xff]
        %v535 = vld [vmem:[%s218 + $0x708] sm:$0xff]
        %v536 = vld [vmem:[%s218 + $0x710] sm:$0xff]
        %v537 = vld [vmem:[%s218 + $0x718] sm:$0xff]
        %v538 = vld [vmem:[%s218 + $0x720] sm:$0xff]
        %v539 = vld [vmem:[%s218 + $0x728] sm:$0xff]
        %v540 = vld [vmem:[%s218 + $0x730] sm:$0xff]
        %v541 = vld [vmem:[%s218 + $0x738] sm:$0xff]
        %v542 = vld [vmem:[%s218 + $0x740] sm:$0xff]
        %v543 = vld [vmem:[%s218 + $0x748] sm:$0xff]
        %v544 = vld [vmem:[%s218 + $0x750] sm:$0xff]
        %v545 = vld [vmem:[%s218 + $0x758] sm:$0xff]
        %v546 = vld [vmem:[%s218 + $0x760] sm:$0xff]
        %v547 = vld [vmem:[%s218 + $0x768] sm:$0xff]
        %v548 = vld [vmem:[%s218 + $0x770] sm:$0xff]
        %v549 = vld [vmem:[%s218 + $0x778] sm:$0xff]
        %v550 = vld [vmem:[%s218 + $0x780] sm:$0xff]
        %v551 = vld [vmem:[%s218 + $0x788] sm:$0xff]
        %v552 = vld [vmem:[%s218 + $0x790] sm:$0xff]
        %v553 = vld [vmem:[%s218 + $0x798] sm:$0xff]
        %v554 = vld [vmem:[%s218 + $0x7a0] sm:$0xff]
        %v555 = vld [vmem:[%s218 + $0x7a8] sm:$0xff]
        %v556 = vld [vmem:[%s218 + $0x7b0] sm:$0xff]
        %v557 = vld [vmem:[%s218 + $0x7b8] sm:$0xff]
        %v558 = vld [vmem:[%s218 + $0x7c0] sm:$0xff]
        %v559 = vld [vmem:[%s218 + $0x7c8] sm:$0xff]
        %v560 = vld [vmem:[%s218 + $0x7d0] sm:$0xff]
        %v561 = vld [vmem:[%s218 + $0x7d8] sm:$0xff]
        %v562 = vld [vmem:[%s218 + $0x7e0] sm:$0xff]
        %v563 = vld [vmem:[%s218 + $0x7e8] sm:$0xff]
        %v564 = vld [vmem:[%s218 + $0x7f0] sm:$0xff]
        %v565 = vld [vmem:[%s218 + $0x7f8] sm:$0xff]
        %v566 = vld [vmem:[%s218 + $0x800] sm:$0xff]
        %v567 = vld [vmem:[%s218 + $0x808] sm:$0xff]
        %v568 = vld [vmem:[%s218 + $0x810] sm:$0xff]
        %v569 = vld [vmem:[%s218 + $0x818] sm:$0xff]
        %v570 = vld [vmem:[%s218 + $0x820] sm:$0xff]
        %v571 = vld [vmem:[%s218 + $0x828] sm:$0xff]
        %v572 = vld [vmem:[%s218 + $0x830] sm:$0xff]
        %v573 = vld [vmem:[%s218 + $0x838] sm:$0xff]
        %v574 = vld [vmem:[%s218 + $0x840] sm:$0xff]
        %v575 = vld [vmem:[%s218 + $0x848] sm:$0xff]
        %v576 = vld [vmem:[%s218 + $0x850] sm:$0xff]
        %v577 = vld [vmem:[%s218 + $0x858] sm:$0xff]
        %v578 = vld [vmem:[%s218 + $0x860] sm:$0xff]
        %v579 = vld [vmem:[%s218 + $0x868] sm:$0xff]
        %v580 = vld [vmem:[%s218 + $0x870] sm:$0xff]
        %v581 = vld [vmem:[%s218 + $0x878] sm:$0xff]
        %v582 = vld [vmem:[%s218 + $0x880] sm:$0xff]
        %v583 = vld [vmem:[%s218 + $0x888] sm:$0xff]
        %v584 = vld [vmem:[%s218 + $0x890] sm:$0xff]
        %v585 = vld [vmem:[%s218 + $0x898] sm:$0xff]
        %v586 = vld [vmem:[%s218 + $0x8a0] sm:$0xff]
        %v587 = vld [vmem:[%s218 + $0x8a8] sm:$0xff]
        %v588 = vld [vmem:[%s218 + $0x8b0] sm:$0xff]
        %v589 = vld [vmem:[%s218 + $0x8b8] sm:$0xff]
        %v590 = vld [vmem:[%s218 + $0x8c0] sm:$0xff]
        %v591 = vld [vmem:[%s218 + $0x8c8] sm:$0xff]
        %v592 = vld [vmem:[%s218 + $0x8d0] sm:$0xff]
        %v593 = vld [vmem:[%s218 + $0x8d8] sm:$0xff]
        %v594 = vld [vmem:[%s218 + $0x8e0] sm:$0xff]
        %v595 = vld [vmem:[%s218 + $0x8e8] sm:$0xff]
        %v596 = vld [vmem:[%s218 + $0x8f0] sm:$0xff]
        %v597 = vld [vmem:[%s218 + $0x8f8] sm:$0xff]
        %v598 = vld [vmem:[%s218 + $0x900] sm:$0xff]
        %v599 = vld [vmem:[%s218 + $0x908] sm:$0xff]
        %v600 = vld [vmem:[%s218 + $0x910] sm:$0xff]
        %v601 = vld [vmem:[%s218 + $0x918] sm:$0xff]
        %v602 = vld [vmem:[%s218 + $0x920] sm:$0xff]
        %v603 = vld [vmem:[%s218 + $0x928] sm:$0xff]
        %v604 = vld [vmem:[%s218 + $0x930] sm:$0xff]
        %v605 = vld [vmem:[%s218 + $0x938] sm:$0xff]
        %v606 = vld [vmem:[%s218 + $0x940] sm:$0xff]
        %v607 = vld [vmem:[%s218 + $0x948] sm:$0xff]
        %v608 = vld [vmem:[%s218 + $0x950] sm:$0xff]
        %v609 = vld [vmem:[%s218 + $0x958] sm:$0xff]
        %v610 = vld [vmem:[%s218 + $0x960] sm:$0xff]
        %v611 = vld [vmem:[%s218 + $0x968] sm:$0xff]
        %v612 = vld [vmem:[%s218 + $0x970] sm:$0xff]
        %v613 = vld [vmem:[%s218 + $0x978] sm:$0xff]
        %v614 = vld [vmem:[%s218 + $0x980] sm:$0xff]
        %v615 = vld [vmem:[%s218 + $0x988] sm:$0xff]
        %v616 = vld [vmem:[%s218 + $0x990] sm:$0xff]
        %v617 = vld [vmem:[%s218 + $0x998] sm:$0xff]
        %v618 = vld [vmem:[%s218 + $0x9a0] sm:$0xff]
        %v619 = vld [vmem:[%s218 + $0x9a8] sm:$0xff]
        %v620 = vld [vmem:[%s218 + $0x9b0] sm:$0xff]
        %v621 = vld [vmem:[%s218 + $0x9b8] sm:$0xff]
        %v622 = vld [vmem:[%s218 + $0x9c0] sm:$0xff]
        %v623 = vld [vmem:[%s218 + $0x9c8] sm:$0xff]
        %v624 = vld [vmem:[%s218 + $0x9d0] sm:$0xff]
        %v625 = vld [vmem:[%s218 + $0x9d8] sm:$0xff]
        %v626 = vld [vmem:[%s218 + $0x9e0] sm:$0xff]
        %v627 = vld [vmem:[%s218 + $0x9e8] sm:$0xff]
        %v628 = vld [vmem:[%s218 + $0x9f0] sm:$0xff]
        %v629 = vld [vmem:[%s218 + $0x9f8] sm:$0xff]
        %v630 = vld [vmem:[%s218 + $0xa00] sm:$0xff]
        %v631 = vld [vmem:[%s218 + $0xa08] sm:$0xff]
        %v632 = vld [vmem:[%s218 + $0xa10] sm:$0xff]
        %v633 = vld [vmem:[%s218 + $0xa18] sm:$0xff]
        %v634 = vld [vmem:[%s218 + $0xa20] sm:$0xff]
        %v635 = vld [vmem:[%s218 + $0xa28] sm:$0xff]
        %v636 = vld [vmem:[%s218 + $0xa30] sm:$0xff]
        %v637 = vld [vmem:[%s218 + $0xa38] sm:$0xff]
        %v638 = vld [vmem:[%s218 + $0xa40] sm:$0xff]
        %v639 = vld [vmem:[%s218 + $0xa48] sm:$0xff]
        %v640 = vld [vmem:[%s218 + $0xa50] sm:$0xff]
        %v641 = vld [vmem:[%s218 + $0xa58] sm:$0xff]
        %v642 = vld [vmem:[%s218 + $0xa60] sm:$0xff]
        %v643 = vld [vmem:[%s218 + $0xa68] sm:$0xff]
        %v644 = vld [vmem:[%s218 + $0xa70] sm:$0xff]
        %v645 = vld [vmem:[%s218 + $0xa78] sm:$0xff]
        %v646 = vld [vmem:[%s218 + $0xa80] sm:$0xff]
        %v647 = vld [vmem:[%s218 + $0xa88] sm:$0xff]
        %v648 = vld [vmem:[%s218 + $0xa90] sm:$0xff]
        %v649 = vld [vmem:[%s218 + $0xa98] sm:$0xff]
        %v650 = vld [vmem:[%s218 + $0xaa0] sm:$0xff]
        %v651 = vld [vmem:[%s218 + $0xaa8] sm:$0xff]
        %v652 = vld [vmem:[%s218 + $0xab0] sm:$0xff]
        %v653 = vld [vmem:[%s218 + $0xab8] sm:$0xff]
        %v654 = vld [vmem:[%s218 + $0xac0] sm:$0xff]
        %v655 = vld [vmem:[%s218 + $0xac8] sm:$0xff]
        %v656 = vld [vmem:[%s218 + $0xad0] sm:$0xff]
        %v657 = vld [vmem:[%s218 + $0xad8] sm:$0xff]
        %v658 = vld [vmem:[%s218 + $0xae0] sm:$0xff]
        %v659 = vld [vmem:[%s218 + $0xae8] sm:$0xff]
        %v660 = vld [vmem:[%s218 + $0xaf0] sm:$0xff]
        %v661 = vld [vmem:[%s218 + $0xaf8] sm:$0xff]
        %v662 = vld [vmem:[%s218 + $0xb00] sm:$0xff]
        %v663 = vld [vmem:[%s218 + $0xb08] sm:$0xff]
        %v664 = vld [vmem:[%s218 + $0xb10] sm:$0xff]
        %v665 = vld [vmem:[%s218 + $0xb18] sm:$0xff]
        %v666 = vld [vmem:[%s218 + $0xb20] sm:$0xff]
        %v667 = vld [vmem:[%s218 + $0xb28] sm:$0xff]
        %v668 = vld [vmem:[%s218 + $0xb30] sm:$0xff]
        %v669 = vld [vmem:[%s218 + $0xb38] sm:$0xff]
        %v670 = vld [vmem:[%s218 + $0xb40] sm:$0xff]
        %v671 = vld [vmem:[%s218 + $0xb48] sm:$0xff]
        %v672 = vld [vmem:[%s218 + $0xb50] sm:$0xff]
        %v673 = vld [vmem:[%s218 + $0xb58] sm:$0xff]
        %v674 = vld [vmem:[%s218 + $0xb60] sm:$0xff]
        %v675 = vld [vmem:[%s218 + $0xb68] sm:$0xff]
        %v676 = vld [vmem:[%s218 + $0xb70] sm:$0xff]
        %v677 = vld [vmem:[%s218 + $0xb78] sm:$0xff]
        %v678 = vld [vmem:[%s218 + $0xb80] sm:$0xff]
        %v679 = vld [vmem:[%s218 + $0xb88] sm:$0xff]
        %v680 = vld [vmem:[%s218 + $0xb90] sm:$0xff]
        %v681 = vld [vmem:[%s218 + $0xb98] sm:$0xff]
        %v682 = vld [vmem:[%s218 + $0xba0] sm:$0xff]
        %v683 = vld [vmem:[%s218 + $0xba8] sm:$0xff]
        %v684 = vld [vmem:[%s218 + $0xbb0] sm:$0xff]
        %v685 = vld [vmem:[%s218 + $0xbb8] sm:$0xff]
        %v686 = vld [vmem:[%s218 + $0xbc0] sm:$0xff]
        %v687 = vld [vmem:[%s218 + $0xbc8] sm:$0xff]
        %v688 = vld [vmem:[%s218 + $0xbd0] sm:$0xff]
        %v689 = vld [vmem:[%s218 + $0xbd8] sm:$0xff]
        %v690 = vld [vmem:[%s218 + $0xbe0] sm:$0xff]
        %v691 = vld [vmem:[%s218 + $0xbe8] sm:$0xff]
        %v692 = vld [vmem:[%s218 + $0xbf0] sm:$0xff]
        %v693 = vld [vmem:[%s218 + $0xbf8] sm:$0xff]
        %v694 = vld [vmem:[%s218 + $0xc00] sm:$0xff]
        %v695 = vld [vmem:[%s218 + $0xc08] sm:$0xff]
        %v696 = vld [vmem:[%s218 + $0xc10] sm:$0xff]
        %v697 = vld [vmem:[%s218 + $0xc18] sm:$0xff]
        %v698 = vld [vmem:[%s218 + $0xc20] sm:$0xff]
        %v699 = vld [vmem:[%s218 + $0xc28] sm:$0xff]
        %v700 = vld [vmem:[%s218 + $0xc30] sm:$0xff]
        %v701 = vld [vmem:[%s218 + $0xc38] sm:$0xff]
        %v702 = vld [vmem:[%s218 + $0xc40] sm:$0xff]
        %v703 = vld [vmem:[%s218 + $0xc48] sm:$0xff]
        %v704 = vld [vmem:[%s218 + $0xc50] sm:$0xff]
        %v705 = vld [vmem:[%s218 + $0xc58] sm:$0xff]
        %v706 = vld [vmem:[%s218 + $0xc60] sm:$0xff]
        %v707 = vld [vmem:[%s218 + $0xc68] sm:$0xff]
        %v708 = vld [vmem:[%s218 + $0xc70] sm:$0xff]
        %v709 = vld [vmem:[%s218 + $0xc78] sm:$0xff]
        %v710 = vld [vmem:[%s218 + $0xc80] sm:$0xff]
        %v711 = vld [vmem:[%s218 + $0xc88] sm:$0xff]
        %v712 = vld [vmem:[%s218 + $0xc90] sm:$0xff]
        %v713 = vld [vmem:[%s218 + $0xc98] sm:$0xff]
        %v714 = vld [vmem:[%s218 + $0xca0] sm:$0xff]
        %v715 = vld [vmem:[%s218 + $0xca8] sm:$0xff]
        %v716 = vld [vmem:[%s218 + $0xcb0] sm:$0xff]
        %v717 = vld [vmem:[%s218 + $0xcb8] sm:$0xff]
        %v718 = vld [vmem:[%s218 + $0xcc0] sm:$0xff]
        %v719 = vld [vmem:[%s218 + $0xcc8] sm:$0xff]
        %v720 = vld [vmem:[%s218 + $0xcd0] sm:$0xff]
        %v721 = vld [vmem:[%s218 + $0xcd8] sm:$0xff]
        %v722 = vld [vmem:[%s218 + $0xce0] sm:$0xff]
        %v723 = vld [vmem:[%s218 + $0xce8] sm:$0xff]
        %v724 = vld [vmem:[%s218 + $0xcf0] sm:$0xff]
        %v725 = vld [vmem:[%s218 + $0xcf8] sm:$0xff]
        %v726 = vld [vmem:[%s218 + $0xd00] sm:$0xff]
        %v727 = vld [vmem:[%s218 + $0xd08] sm:$0xff]
        %v728 = vld [vmem:[%s218 + $0xd10] sm:$0xff]
        %v729 = vld [vmem:[%s218 + $0xd18] sm:$0xff]
        %v730 = vld [vmem:[%s218 + $0xd20] sm:$0xff]
        %v731 = vld [vmem:[%s218 + $0xd28] sm:$0xff]
        %v732 = vld [vmem:[%s218 + $0xd30] sm:$0xff]
        %v733 = vld [vmem:[%s218 + $0xd38] sm:$0xff]
        %v734 = vld [vmem:[%s218 + $0xd40] sm:$0xff]
        %v735 = vld [vmem:[%s218 + $0xd48] sm:$0xff]
        %v736 = vld [vmem:[%s218 + $0xd50] sm:$0xff]
        %v737 = vld [vmem:[%s218 + $0xd58] sm:$0xff]
        %v738 = vld [vmem:[%s218 + $0xd60] sm:$0xff]
        %v739 = vld [vmem:[%s218 + $0xd68] sm:$0xff]
        %v740 = vld [vmem:[%s218 + $0xd70] sm:$0xff]
        %v741 = vld [vmem:[%s218 + $0xd78] sm:$0xff]
        %v742 = vld [vmem:[%s218 + $0xd80] sm:$0xff]
        %v743 = vld [vmem:[%s218 + $0xd88] sm:$0xff]
        %v744 = vld [vmem:[%s218 + $0xd90] sm:$0xff]
        %v745 = vld [vmem:[%s218 + $0xd98] sm:$0xff]
        %v746 = vld [vmem:[%s218 + $0xda0] sm:$0xff]
        %v747 = vld [vmem:[%s218 + $0xda8] sm:$0xff]
        %v748 = vld [vmem:[%s218 + $0xdb0] sm:$0xff]
        %v749 = vld [vmem:[%s218 + $0xdb8] sm:$0xff]
        %v750 = vld [vmem:[%s218 + $0xdc0] sm:$0xff]
        %v751 = vld [vmem:[%s218 + $0xdc8] sm:$0xff]
        %v752 = vld [vmem:[%s218 + $0xdd0] sm:$0xff]
        %v753 = vld [vmem:[%s218 + $0xdd8] sm:$0xff]
        %v754 = vld [vmem:[%s218 + $0xde0] sm:$0xff]
        %v755 = vld [vmem:[%s218 + $0xde8] sm:$0xff]
        %v756 = vld [vmem:[%s218 + $0xdf0] sm:$0xff]
        %v757 = vld [vmem:[%s218 + $0xdf8] sm:$0xff]
        %v758 = vld [vmem:[%s218 + $0xe00] sm:$0xff]
        %v759 = vld [vmem:[%s218 + $0xe08] sm:$0xff]
        %v760 = vld [vmem:[%s218 + $0xe10] sm:$0xff]
        %v761 = vld [vmem:[%s218 + $0xe18] sm:$0xff]
        %v762 = vld [vmem:[%s218 + $0xe20] sm:$0xff]
        %v763 = vld [vmem:[%s218 + $0xe28] sm:$0xff]
        %v764 = vld [vmem:[%s218 + $0xe30] sm:$0xff]
        %v765 = vld [vmem:[%s218 + $0xe38] sm:$0xff]
        %v766 = vld [vmem:[%s218 + $0xe40] sm:$0xff]
        %v767 = vld [vmem:[%s218 + $0xe48] sm:$0xff]
        %v768 = vld [vmem:[%s218 + $0xe50] sm:$0xff]
        %v769 = vld [vmem:[%s218 + $0xe58] sm:$0xff]
        %v770 = vld [vmem:[%s218 + $0xe60] sm:$0xff]
        %v771 = vld [vmem:[%s218 + $0xe68] sm:$0xff]
        %v772 = vld [vmem:[%s218 + $0xe70] sm:$0xff]
        %v773 = vld [vmem:[%s218 + $0xe78] sm:$0xff]
        %v774 = vld [vmem:[%s218 + $0xe80] sm:$0xff]
        %v775 = vld [vmem:[%s218 + $0xe88] sm:$0xff]
        %v776 = vld [vmem:[%s218 + $0xe90] sm:$0xff]
        %v777 = vld [vmem:[%s218 + $0xe98] sm:$0xff]
        %v778 = vld [vmem:[%s218 + $0xea0] sm:$0xff]
        %v779 = vld [vmem:[%s218 + $0xea8] sm:$0xff]
        %v780 = vld [vmem:[%s218 + $0xeb0] sm:$0xff]
        %v781 = vld [vmem:[%s218 + $0xeb8] sm:$0xff]
        %v782 = vld [vmem:[%s218 + $0xec0] sm:$0xff]
        %v783 = vld [vmem:[%s218 + $0xec8] sm:$0xff]
        %v784 = vld [vmem:[%s218 + $0xed0] sm:$0xff]
        %v785 = vld [vmem:[%s218 + $0xed8] sm:$0xff]
        %v786 = vld [vmem:[%s218 + $0xee0] sm:$0xff]
        %v787 = vld [vmem:[%s218 + $0xee8] sm:$0xff]
        %v788 = vld [vmem:[%s218 + $0xef0] sm:$0xff]
        %v789 = vld [vmem:[%s218 + $0xef8] sm:$0xff]
        %v790 = vld [vmem:[%s218 + $0xf00] sm:$0xff]
        %v791 = vld [vmem:[%s218 + $0xf08] sm:$0xff]
        %v792 = vld [vmem:[%s218 + $0xf10] sm:$0xff]
        %v793 = vld [vmem:[%s218 + $0xf18] sm:$0xff]
        %v794 = vld [vmem:[%s218 + $0xf20] sm:$0xff]
        %v795 = vld [vmem:[%s218 + $0xf28] sm:$0xff]
        %v796 = vld [vmem:[%s218 + $0xf30] sm:$0xff]
        %v797 = vld [vmem:[%s218 + $0xf38] sm:$0xff]
        %v798 = vld [vmem:[%s218 + $0xf40] sm:$0xff]
        %v799 = vld [vmem:[%s218 + $0xf48] sm:$0xff]
        %v800 = vld [vmem:[%s218 + $0xf50] sm:$0xff]
        %v801 = vld [vmem:[%s218 + $0xf58] sm:$0xff]
        %v802 = vld [vmem:[%s218 + $0xf60] sm:$0xff]
        %v803 = vld [vmem:[%s218 + $0xf68] sm:$0xff]
        %v804 = vld [vmem:[%s218 + $0xf70] sm:$0xff]
        %v805 = vld [vmem:[%s218 + $0xf78] sm:$0xff]
        %v806 = vld [vmem:[%s218 + $0xf80] sm:$0xff]
        %v807 = vld [vmem:[%s218 + $0xf88] sm:$0xff]
        %v808 = vld [vmem:[%s218 + $0xf90] sm:$0xff]
        %v809 = vld [vmem:[%s218 + $0xf98] sm:$0xff]
        %v810 = vld [vmem:[%s218 + $0xfa0] sm:$0xff]
        %v811 = vld [vmem:[%s218 + $0xfa8] sm:$0xff]
        %v812 = vld [vmem:[%s218 + $0xfb0] sm:$0xff]
        %v813 = vld [vmem:[%s218 + $0xfb8] sm:$0xff]
        %v814 = vld [vmem:[%s218 + $0xfc0] sm:$0xff]
        %v815 = vld [vmem:[%s218 + $0xfc8] sm:$0xff]
        %v816 = vld [vmem:[%s218 + $0xfd0] sm:$0xff]
        %v817 = vld [vmem:[%s218 + $0xfd8] sm:$0xff]
        %v818 = vld [vmem:[%s218 + $0xfe0] sm:$0xff]
        %v819 = vld [vmem:[%s218 + $0xfe8] sm:$0xff]
        %v820 = vld [vmem:[%s218 + $0xff0] sm:$0xff]
        %v821 = vld [vmem:[%s218 + $0xff8] sm:$0xff]
        %v822 = vld [vmem:[%s218 + $0x1000] sm:$0xff]
        %v823 = vld [vmem:[%s218 + $0x1008] sm:$0xff]
        %v824 = vld [vmem:[%s218 + $0x1010] sm:$0xff]
        %v825 = vld [vmem:[%s218 + $0x1018] sm:$0xff]
        %v826 = vld [vmem:[%s218 + $0x1020] sm:$0xff]
        %v827 = vld [vmem:[%s218 + $0x1028] sm:$0xff]
        %v828 = vld [vmem:[%s218 + $0x1030] sm:$0xff]
        %v829 = vld [vmem:[%s218 + $0x1038] sm:$0xff]
        %v830 = vld [vmem:[%s218 + $0x1040] sm:$0xff]
        %v831 = vld [vmem:[%s218 + $0x1048] sm:$0xff]
        %v832 = vld [vmem:[%s218 + $0x1050] sm:$0xff]
        %v833 = vld [vmem:[%s218 + $0x1058] sm:$0xff]
        %v834 = vld [vmem:[%s218 + $0x1060] sm:$0xff]
        %v835 = vld [vmem:[%s218 + $0x1068] sm:$0xff]
        %v836 = vld [vmem:[%s218 + $0x1070] sm:$0xff]
        %v837 = vld [vmem:[%s218 + $0x1078] sm:$0xff]
        %v838 = vld [vmem:[%s218 + $0x1080] sm:$0xff]
        %v839 = vld [vmem:[%s218 + $0x1088] sm:$0xff]
        %v840 = vld [vmem:[%s218 + $0x1090] sm:$0xff]
        %v841 = vld [vmem:[%s218 + $0x1098] sm:$0xff]
        %v842 = vld [vmem:[%s218 + $0x10a0] sm:$0xff]
        %v843 = vld [vmem:[%s218 + $0x10a8] sm:$0xff]
        %v844 = vld [vmem:[%s218 + $0x10b0] sm:$0xff]
        %v845 = vld [vmem:[%s218 + $0x10b8] sm:$0xff]
        %v846 = vld [vmem:[%s218 + $0x10c0] sm:$0xff]
        %v847 = vld [vmem:[%s218 + $0x10c8] sm:$0xff]
        %v848 = vld [vmem:[%s218 + $0x10d0] sm:$0xff]
        %v849 = vld [vmem:[%s218 + $0x10d8] sm:$0xff]
        %v850 = vld [vmem:[%s218 + $0x10e0] sm:$0xff]
        %v851 = vld [vmem:[%s218 + $0x10e8] sm:$0xff]
        %v852 = vld [vmem:[%s218 + $0x10f0] sm:$0xff]
        %v853 = vld [vmem:[%s218 + $0x10f8] sm:$0xff]
        %v854 = vld [vmem:[%s218 + $0x1100] sm:$0xff]
        %v855 = vld [vmem:[%s218 + $0x1108] sm:$0xff]
        %v856 = vld [vmem:[%s218 + $0x1110] sm:$0xff]
        %v857 = vld [vmem:[%s218 + $0x1118] sm:$0xff]
        %v858 = vld [vmem:[%s218 + $0x1120] sm:$0xff]
        %v859 = vld [vmem:[%s218 + $0x1128] sm:$0xff]
        %v860 = vld [vmem:[%s218 + $0x1130] sm:$0xff]
        %v861 = vld [vmem:[%s218 + $0x1138] sm:$0xff]
        %v862 = vld [vmem:[%s218 + $0x1140] sm:$0xff]
        %v863 = vld [vmem:[%s218 + $0x1148] sm:$0xff]
        %v864 = vld [vmem:[%s218 + $0x1150] sm:$0xff]
        %v865 = vld [vmem:[%s218 + $0x1158] sm:$0xff]
        %v866 = vld [vmem:[%s218 + $0x1160] sm:$0xff]
        %v867 = vld [vmem:[%s218 + $0x1168] sm:$0xff]
        %v868 = vld [vmem:[%s218 + $0x1170] sm:$0xff]
        %v869 = vld [vmem:[%s218 + $0x1178] sm:$0xff]
        %v870 = vld [vmem:[%s218 + $0x1180] sm:$0xff]
        %v871 = vld [vmem:[%s218 + $0x1188] sm:$0xff]
        %v872 = vld [vmem:[%s218 + $0x1190] sm:$0xff]
        %v873 = vld [vmem:[%s218 + $0x1198] sm:$0xff]
        %v874 = vld [vmem:[%s218 + $0x11a0] sm:$0xff]
        %v875 = vld [vmem:[%s218 + $0x11a8] sm:$0xff]
        %v876 = vld [vmem:[%s218 + $0x11b0] sm:$0xff]
        %v877 = vld [vmem:[%s218 + $0x11b8] sm:$0xff]
        %v878 = vld [vmem:[%s218 + $0x11c0] sm:$0xff]
        %v879 = vld [vmem:[%s218 + $0x11c8] sm:$0xff]
        %v880 = vld [vmem:[%s218 + $0x11d0] sm:$0xff]
        %v881 = vld [vmem:[%s218 + $0x11d8] sm:$0xff]
        %v882 = vld [vmem:[%s218 + $0x11e0] sm:$0xff]
        %v883 = vld [vmem:[%s218 + $0x11e8] sm:$0xff]
        %v884 = vld [vmem:[%s218 + $0x11f0] sm:$0xff]
        %v885 = vld [vmem:[%s218 + $0x11f8] sm:$0xff]
        %v886 = vld [vmem:[%s218 + $0x1200] sm:$0xff]
        %v887 = vld [vmem:[%s218 + $0x1208] sm:$0xff]
        %v888 = vld [vmem:[%s218 + $0x1210] sm:$0xff]
        %v889 = vld [vmem:[%s218 + $0x1218] sm:$0xff]
        %v890 = vld [vmem:[%s218 + $0x1220] sm:$0xff]
        %v891 = vld [vmem:[%s218 + $0x1228] sm:$0xff]
        %v892 = vld [vmem:[%s218 + $0x1230] sm:$0xff]
        %v893 = vld [vmem:[%s218 + $0x1238] sm:$0xff]
        %v894 = vld [vmem:[%s218 + $0x1240] sm:$0xff]
        %v895 = vld [vmem:[%s218 + $0x1248] sm:$0xff]
        %v896 = vld [vmem:[%s218 + $0x1250] sm:$0xff]
        %v897 = vld [vmem:[%s218 + $0x1258] sm:$0xff]
        %v898 = vld [vmem:[%s218 + $0x1260] sm:$0xff]
        %v899 = vld [vmem:[%s218 + $0x1268] sm:$0xff]
        %v900 = vld [vmem:[%s218 + $0x1270] sm:$0xff]
        %v901 = vld [vmem:[%s218 + $0x1278] sm:$0xff]
        %v902 = vld [vmem:[%s218 + $0x1280] sm:$0xff]
        %v903 = vld [vmem:[%s218 + $0x1288] sm:$0xff]
        %v904 = vld [vmem:[%s218 + $0x1290] sm:$0xff]
        %v905 = vld [vmem:[%s218 + $0x1298] sm:$0xff]
        %v906 = vld [vmem:[%s218 + $0x12a0] sm:$0xff]
        %v907 = vld [vmem:[%s218 + $0x12a8] sm:$0xff]
        %v908 = vld [vmem:[%s218 + $0x12b0] sm:$0xff]
        %v909 = vld [vmem:[%s218 + $0x12b8] sm:$0xff]
        %v910 = vld [vmem:[%s218 + $0x12c0] sm:$0xff]
        %v911 = vld [vmem:[%s218 + $0x12c8] sm:$0xff]
        %v912 = vld [vmem:[%s218 + $0x12d0] sm:$0xff]
        %v913 = vld [vmem:[%s218 + $0x12d8] sm:$0xff]
        %v914 = vld [vmem:[%s218 + $0x12e0] sm:$0xff]
        %v915 = vld [vmem:[%s218 + $0x12e8] sm:$0xff]
        %v916 = vld [vmem:[%s218 + $0x12f0] sm:$0xff]
        %v917 = vld [vmem:[%s218 + $0x12f8] sm:$0xff]
        %v918 = vld [vmem:[%s218 + $0x1300] sm:$0xff]
        %v919 = vld [vmem:[%s218 + $0x1308] sm:$0xff]
        %v920 = vld [vmem:[%s218 + $0x1310] sm:$0xff]
        %v921 = vld [vmem:[%s218 + $0x1318] sm:$0xff]
        %v922 = vld [vmem:[%s218 + $0x1320] sm:$0xff]
        %v923 = vld [vmem:[%s218 + $0x1328] sm:$0xff]
        %v924 = vld [vmem:[%s218 + $0x1330] sm:$0xff]
        %v925 = vld [vmem:[%s218 + $0x1338] sm:$0xff]
        %v926 = vld [vmem:[%s218 + $0x1340] sm:$0xff]
        %v927 = vld [vmem:[%s218 + $0x1348] sm:$0xff]
        %v928 = vld [vmem:[%s218 + $0x1350] sm:$0xff]
        %v929 = vld [vmem:[%s218 + $0x1358] sm:$0xff]
        %v930 = vld [vmem:[%s218 + $0x1360] sm:$0xff]
        %v931 = vld [vmem:[%s218 + $0x1368] sm:$0xff]
        %v932 = vld [vmem:[%s218 + $0x1370] sm:$0xff]
        %v933 = vld [vmem:[%s218 + $0x1378] sm:$0xff]
        %v934 = vld [vmem:[%s218 + $0x1380] sm:$0xff]
        %v935 = vld [vmem:[%s218 + $0x1388] sm:$0xff]
        %v936 = vld [vmem:[%s218 + $0x1390] sm:$0xff]
        %v937 = vld [vmem:[%s218 + $0x1398] sm:$0xff]
        %v938 = vld [vmem:[%s218 + $0x13a0] sm:$0xff]
        %v939 = vld [vmem:[%s218 + $0x13a8] sm:$0xff]
        %v940 = vld [vmem:[%s218 + $0x13b0] sm:$0xff]
        %v941 = vld [vmem:[%s218 + $0x13b8] sm:$0xff]
        %v942 = vld [vmem:[%s218 + $0x13c0] sm:$0xff]
        %v943 = vld [vmem:[%s218 + $0x13c8] sm:$0xff]
        %v944 = vld [vmem:[%s218 + $0x13d0] sm:$0xff]
        %v945 = vld [vmem:[%s218 + $0x13d8] sm:$0xff]
        %v946 = vld [vmem:[%s218 + $0x13e0] sm:$0xff]
        %v947 = vld [vmem:[%s218 + $0x13e8] sm:$0xff]
        %v948 = vld [vmem:[%s218 + $0x13f0] sm:$0xff]
        %v949 = vld [vmem:[%s218 + $0x13f8] sm:$0xff]
        %v950 = vld [vmem:[%s218 + $0x1400] sm:$0xff]
        %v951 = vld [vmem:[%s218 + $0x1408] sm:$0xff]
        %v952 = vld [vmem:[%s218 + $0x1410] sm:$0xff]
        %v953 = vld [vmem:[%s218 + $0x1418] sm:$0xff]
        %v954 = vld [vmem:[%s218 + $0x1420] sm:$0xff]
        %v955 = vld [vmem:[%s218 + $0x1428] sm:$0xff]
        %v956 = vld [vmem:[%s218 + $0x1430] sm:$0xff]
        %v957 = vld [vmem:[%s218 + $0x1438] sm:$0xff]
        %v958 = vld [vmem:[%s218 + $0x1440] sm:$0xff]
        %v959 = vld [vmem:[%s218 + $0x1448] sm:$0xff]
        %v960 = vld [vmem:[%s218 + $0x1450] sm:$0xff]
        %v961 = vld [vmem:[%s218 + $0x1458] sm:$0xff]
        %v962 = vld [vmem:[%s218 + $0x1460] sm:$0xff]
        %v963 = vld [vmem:[%s218 + $0x1468] sm:$0xff]
        %v964 = vld [vmem:[%s218 + $0x1470] sm:$0xff]
        %v965 = vld [vmem:[%s218 + $0x1478] sm:$0xff]
        %v966 = vld [vmem:[%s218 + $0x1480] sm:$0xff]
        %v967 = vld [vmem:[%s218 + $0x1488] sm:$0xff]
        %v968 = vld [vmem:[%s218 + $0x1490] sm:$0xff]
        %v969 = vld [vmem:[%s218 + $0x1498] sm:$0xff]
        %v970 = vld [vmem:[%s218 + $0x14a0] sm:$0xff]
        %v971 = vld [vmem:[%s218 + $0x14a8] sm:$0xff]
        %v972 = vld [vmem:[%s218 + $0x14b0] sm:$0xff]
        %v973 = vld [vmem:[%s218 + $0x14b8] sm:$0xff]
        %v974 = vld [vmem:[%s218 + $0x14c0] sm:$0xff]
        %v975 = vld [vmem:[%s218 + $0x14c8] sm:$0xff]
        %v976 = vld [vmem:[%s218 + $0x14d0] sm:$0xff]
        %v977 = vld [vmem:[%s218 + $0x14d8] sm:$0xff]
        %v978 = vld [vmem:[%s218 + $0x14e0] sm:$0xff]
        %v979 = vld [vmem:[%s218 + $0x14e8] sm:$0xff]
        %v980 = vld [vmem:[%s218 + $0x14f0] sm:$0xff]
        %v981 = vld [vmem:[%s218 + $0x14f8] sm:$0xff]
        %v982 = vld [vmem:[%s218 + $0x1500] sm:$0xff]
        %v983 = vld [vmem:[%s218 + $0x1508] sm:$0xff]
        %v984 = vld [vmem:[%s218 + $0x1510] sm:$0xff]
        %v985 = vld [vmem:[%s218 + $0x1518] sm:$0xff]
        %v986 = vld [vmem:[%s218 + $0x1520] sm:$0xff]
        %v987 = vld [vmem:[%s218 + $0x1528] sm:$0xff]
        %v988 = vld [vmem:[%s218 + $0x1530] sm:$0xff]
        %v989 = vld [vmem:[%s218 + $0x1538] sm:$0xff]
        %v990 = vld [vmem:[%s218 + $0x1540] sm:$0xff]
        %v991 = vld [vmem:[%s218 + $0x1548] sm:$0xff]
        %v992 = vld [vmem:[%s218 + $0x1550] sm:$0xff]
        %v993 = vld [vmem:[%s218 + $0x1558] sm:$0xff]
        %v994 = vld [vmem:[%s218 + $0x1560] sm:$0xff]
        %v995 = vld [vmem:[%s218 + $0x1568] sm:$0xff]
        %v996 = vld [vmem:[%s218 + $0x1570] sm:$0xff]
        %v997 = vld [vmem:[%s218 + $0x1578] sm:$0xff]
        %v998 = vld [vmem:[%s218 + $0x1580] sm:$0xff]
        %v999 = vld [vmem:[%s218 + $0x1588] sm:$0xff]
        %v1000 = vld [vmem:[%s218 + $0x1590] sm:$0xff]
        %v1001 = vld [vmem:[%s218 + $0x1598] sm:$0xff]
        %v1002 = vld [vmem:[%s218 + $0x15a0] sm:$0xff]
        %v1003 = vld [vmem:[%s218 + $0x15a8] sm:$0xff]
        %v1004 = vld [vmem:[%s218 + $0x15b0] sm:$0xff]
        %v1005 = vld [vmem:[%s218 + $0x15b8] sm:$0xff]
        %v1006 = vld [vmem:[%s218 + $0x15c0] sm:$0xff]
        %v1007 = vld [vmem:[%s218 + $0x15c8] sm:$0xff]
        %v1008 = vld [vmem:[%s218 + $0x15d0] sm:$0xff]
        %v1009 = vld [vmem:[%s218 + $0x15d8] sm:$0xff]
        %v1010 = vld [vmem:[%s218 + $0x15e0] sm:$0xff]
        %v1011 = vld [vmem:[%s218 + $0x15e8] sm:$0xff]
        %v1012 = vld [vmem:[%s218 + $0x15f0] sm:$0xff]
        %v1013 = vld [vmem:[%s218 + $0x15f8] sm:$0xff]
        %v1014 = vld [vmem:[%s218 + $0x1600] sm:$0xff]
        %v1015 = vld [vmem:[%s218 + $0x1608] sm:$0xff]
        %v1016 = vld [vmem:[%s218 + $0x1610] sm:$0xff]
        %v1017 = vld [vmem:[%s218 + $0x1618] sm:$0xff]
        %v1018 = vld [vmem:[%s218 + $0x1620] sm:$0xff]
        %v1019 = vld [vmem:[%s218 + $0x1628] sm:$0xff]
        %v1020 = vld [vmem:[%s218 + $0x1630] sm:$0xff]
        %v1021 = vld [vmem:[%s218 + $0x1638] sm:$0xff]
        %v1022 = vld [vmem:[%s218 + $0x1640] sm:$0xff]
        %v1023 = vld [vmem:[%s218 + $0x1648] sm:$0xff]
        %v1024 = vld [vmem:[%s218 + $0x1650] sm:$0xff]
        %v1025 = vld [vmem:[%s218 + $0x1658] sm:$0xff]
        %v1026 = vld [vmem:[%s218 + $0x1660] sm:$0xff]
        %v1027 = vld [vmem:[%s218 + $0x1668] sm:$0xff]
        %v1028 = vld [vmem:[%s218 + $0x1670] sm:$0xff]
        %v1029 = vld [vmem:[%s218 + $0x1678] sm:$0xff]
        %v1030 = vld [vmem:[%s218 + $0x1680] sm:$0xff]
        %v1031 = vld [vmem:[%s218 + $0x1688] sm:$0xff]
        %v1032 = vld [vmem:[%s218 + $0x1690] sm:$0xff]
        %v1033 = vld [vmem:[%s218 + $0x1698] sm:$0xff]
        %v1034 = vld [vmem:[%s218 + $0x16a0] sm:$0xff]
        %v1035 = vld [vmem:[%s218 + $0x16a8] sm:$0xff]
        %v1036 = vld [vmem:[%s218 + $0x16b0] sm:$0xff]
        %v1037 = vld [vmem:[%s218 + $0x16b8] sm:$0xff]
        %v1038 = vld [vmem:[%s218 + $0x16c0] sm:$0xff]
        %v1039 = vld [vmem:[%s218 + $0x16c8] sm:$0xff]
        %v1040 = vld [vmem:[%s218 + $0x16d0] sm:$0xff]
        %v1041 = vld [vmem:[%s218 + $0x16d8] sm:$0xff]
        %v1042 = vld [vmem:[%s218 + $0x16e0] sm:$0xff]
        %v1043 = vld [vmem:[%s218 + $0x16e8] sm:$0xff]
        %v1044 = vld [vmem:[%s218 + $0x16f0] sm:$0xff]
        %v1045 = vld [vmem:[%s218 + $0x16f8] sm:$0xff]
        %v1046 = vld [vmem:[%s218 + $0x1700] sm:$0xff]
        %v1047 = vld [vmem:[%s218 + $0x1708] sm:$0xff]
        %v1048 = vld [vmem:[%s218 + $0x1710] sm:$0xff]
        %v1049 = vld [vmem:[%s218 + $0x1718] sm:$0xff]
        %v1050 = vld [vmem:[%s218 + $0x1720] sm:$0xff]
        %v1051 = vld [vmem:[%s218 + $0x1728] sm:$0xff]
        %v1052 = vld [vmem:[%s218 + $0x1730] sm:$0xff]
        %v1053 = vld [vmem:[%s218 + $0x1738] sm:$0xff]
        %v1054 = vld [vmem:[%s218 + $0x1740] sm:$0xff]
        %v1055 = vld [vmem:[%s218 + $0x1748] sm:$0xff]
        %v1056 = vld [vmem:[%s218 + $0x1750] sm:$0xff]
        %v1057 = vld [vmem:[%s218 + $0x1758] sm:$0xff]
        %v1058 = vld [vmem:[%s218 + $0x1760] sm:$0xff]
        %v1059 = vld [vmem:[%s218 + $0x1768] sm:$0xff]
        %v1060 = vld [vmem:[%s218 + $0x1770] sm:$0xff]
        %v1061 = vld [vmem:[%s218 + $0x1778] sm:$0xff]
        %v1062 = vld [vmem:[%s218 + $0x1780] sm:$0xff]
        %v1063 = vld [vmem:[%s218 + $0x1788] sm:$0xff]
        %v1064 = vld [vmem:[%s218 + $0x1790] sm:$0xff]
        %v1065 = vld [vmem:[%s218 + $0x1798] sm:$0xff]
        %v1066 = vld [vmem:[%s218 + $0x17a0] sm:$0xff]
        %v1067 = vld [vmem:[%s218 + $0x17a8] sm:$0xff]
        %v1068 = vld [vmem:[%s218 + $0x17b0] sm:$0xff]
        %v1069 = vld [vmem:[%s218 + $0x17b8] sm:$0xff]
        %v1070 = vld [vmem:[%s218 + $0x17c0] sm:$0xff]
        %v1071 = vld [vmem:[%s218 + $0x17c8] sm:$0xff]
        %v1072 = vld [vmem:[%s218 + $0x17d0] sm:$0xff]
        %v1073 = vld [vmem:[%s218 + $0x17d8] sm:$0xff]
        %v1074 = vld [vmem:[%s218 + $0x17e0] sm:$0xff]
        %v1075 = vld [vmem:[%s218 + $0x17e8] sm:$0xff]
        %v1076 = vld [vmem:[%s218 + $0x17f0] sm:$0xff]
        %v1077 = vld [vmem:[%s218 + $0x17f8] sm:$0xff]
        %v1090 = vunpack.c.l.b16 %v282
        %v1091 = vunpack.c.h.b16 %v282
        %v1092 = vunpack.c.l.b16 %v283
        %v1093 = vunpack.c.h.b16 %v283
        %v1094 = vunpack.c.l.b16 %v284
        %v1095 = vunpack.c.h.b16 %v284
        %v1096 = vunpack.c.l.b16 %v285
        %v1097 = vunpack.c.h.b16 %v285
        %v1098 = vunpack.c.l.b16 %v286
        %v1099 = vunpack.c.h.b16 %v286
        %v1100 = vunpack.c.l.b16 %v287
        %v1101 = vunpack.c.h.b16 %v287
        %v1102 = vunpack.c.l.b16 %v288
        %v1103 = vunpack.c.h.b16 %v288
        %v1104 = vunpack.c.l.b16 %v289
        %v1105 = vunpack.c.h.b16 %v289
        %v1106 = vunpack.c.l.b16 %v290
        %v1107 = vunpack.c.h.b16 %v290
        %v1108 = vunpack.c.l.b16 %v291
        %v1109 = vunpack.c.h.b16 %v291
        %v1110 = vunpack.c.l.b16 %v292
        %v1111 = vunpack.c.h.b16 %v292
        %v1112 = vunpack.c.l.b16 %v293
        %v1113 = vunpack.c.h.b16 %v293
        %v1114 = vpack.c.b16 %v1102, %v1090
        %v1115 = vpack.c.b16 %v1103, %v1091
        %v1116 = vpack.c.b16 %v1104, %v1092
        %v1117 = vpack.c.b16 %v1105, %v1093
        %v1118 = vpack.c.b16 %v1106, %v1094
        %v1119 = vpack.c.b16 %v1107, %v1095
        %v1120 = vpack.c.b16 %v1108, %v1096
        %v1121 = vpack.c.b16 %v1109, %v1097
        %v1122 = vpack.c.b16 %v1110, %v1098
        %v1123 = vpack.c.b16 %v1111, %v1099
        %v1124 = vpack.c.b16 %v1112, %v1100
        %v1125 = vpack.c.b16 %v1113, %v1101
        %v1906 = vunpack.c.l.b16 %v310
        %v1907 = vunpack.c.h.b16 %v310
        %v1908 = vunpack.c.l.b16 %v311
        %v1909 = vunpack.c.h.b16 %v311
        %v1910 = vunpack.c.l.b16 %v312
        %v1911 = vunpack.c.h.b16 %v312
        %v1912 = vunpack.c.l.b16 %v313
        %v1913 = vunpack.c.h.b16 %v313
        %v1914 = vunpack.c.l.b16 %v314
        %v1915 = vunpack.c.h.b16 %v314
        %v1916 = vunpack.c.l.b16 %v315
        %v1917 = vunpack.c.h.b16 %v315
        %v1918 = vunpack.c.l.b16 %v316
        %v1919 = vunpack.c.h.b16 %v316
        %v1920 = vunpack.c.l.b16 %v317
        %v1921 = vunpack.c.h.b16 %v317
        %v1922 = vunpack.c.l.b16 %v318
        %v1923 = vunpack.c.h.b16 %v318
        %v1924 = vunpack.c.l.b16 %v319
        %v1925 = vunpack.c.h.b16 %v319
        %v1926 = vunpack.c.l.b16 %v320
        %v1927 = vunpack.c.h.b16 %v320
        %v1928 = vunpack.c.l.b16 %v321
        %v1929 = vunpack.c.h.b16 %v321
        %v1930 = vunpack.c.l.b16 %v322
        %v1931 = vunpack.c.h.b16 %v322
        %v1932 = vunpack.c.l.b16 %v323
        %v1933 = vunpack.c.h.b16 %v323
        %v1934 = vunpack.c.l.b16 %v324
        %v1935 = vunpack.c.h.b16 %v324
        %v1936 = vunpack.c.l.b16 %v325
        %v1937 = vunpack.c.h.b16 %v325
        %v1938 = vunpack.c.l.b16 %v326
        %v1939 = vunpack.c.h.b16 %v326
        %v1940 = vunpack.c.l.b16 %v327
        %v1941 = vunpack.c.h.b16 %v327
        %v1942 = vunpack.c.l.b16 %v328
        %v1943 = vunpack.c.h.b16 %v328
        %v1944 = vunpack.c.l.b16 %v329
        %v1945 = vunpack.c.h.b16 %v329
        %v1946 = vunpack.c.l.b16 %v330
        %v1947 = vunpack.c.h.b16 %v330
        %v1948 = vunpack.c.l.b16 %v331
        %v1949 = vunpack.c.h.b16 %v331
        %v1950 = vunpack.c.l.b16 %v332
        %v1951 = vunpack.c.h.b16 %v332
        %v1952 = vunpack.c.l.b16 %v333
        %v1953 = vunpack.c.h.b16 %v333
        %v1954 = vunpack.c.l.b16 %v334
        %v1955 = vunpack.c.h.b16 %v334
        %v1956 = vunpack.c.l.b16 %v335
        %v1957 = vunpack.c.h.b16 %v335
        %v1958 = vunpack.c.l.b16 %v336
        %v1959 = vunpack.c.h.b16 %v336
        %v1960 = vunpack.c.l.b16 %v337
        %v1961 = vunpack.c.h.b16 %v337
        %v1962 = vunpack.c.l.b16 %v338
        %v1963 = vunpack.c.h.b16 %v338
        %v1964 = vunpack.c.l.b16 %v339
        %v1965 = vunpack.c.h.b16 %v339
        %v1966 = vunpack.c.l.b16 %v340
        %v1967 = vunpack.c.h.b16 %v340
        %v1968 = vunpack.c.l.b16 %v341
        %v1969 = vunpack.c.h.b16 %v341
        %v1970 = vunpack.c.l.b16 %v342
        %v1971 = vunpack.c.h.b16 %v342
        %v1972 = vunpack.c.l.b16 %v343
        %v1973 = vunpack.c.h.b16 %v343
        %v1974 = vunpack.c.l.b16 %v344
        %v1975 = vunpack.c.h.b16 %v344
        %v1976 = vunpack.c.l.b16 %v345
        %v1977 = vunpack.c.h.b16 %v345
        %v1978 = vunpack.c.l.b16 %v346
        %v1979 = vunpack.c.h.b16 %v346
        %v1980 = vunpack.c.l.b16 %v347
        %v1981 = vunpack.c.h.b16 %v347
        %v1982 = vunpack.c.l.b16 %v348
        %v1983 = vunpack.c.h.b16 %v348
        %v1984 = vunpack.c.l.b16 %v349
        %v1985 = vunpack.c.h.b16 %v349
        %v1986 = vunpack.c.l.b16 %v350
        %v1987 = vunpack.c.h.b16 %v350
        %v1988 = vunpack.c.l.b16 %v351
        %v1989 = vunpack.c.h.b16 %v351
        %v1990 = vunpack.c.l.b16 %v352
        %v1991 = vunpack.c.h.b16 %v352
        %v1992 = vunpack.c.l.b16 %v353
        %v1993 = vunpack.c.h.b16 %v353
        %v1994 = vunpack.c.l.b16 %v354
        %v1995 = vunpack.c.h.b16 %v354
        %v1996 = vunpack.c.l.b16 %v355
        %v1997 = vunpack.c.h.b16 %v355
        %v1998 = vunpack.c.l.b16 %v356
        %v1999 = vunpack.c.h.b16 %v356
        %v2000 = vunpack.c.l.b16 %v357
        %v2001 = vunpack.c.h.b16 %v357
        %v2002 = vunpack.c.l.b16 %v358
        %v2003 = vunpack.c.h.b16 %v358
        %v2004 = vunpack.c.l.b16 %v359
        %v2005 = vunpack.c.h.b16 %v359
        %v2006 = vunpack.c.l.b16 %v360
        %v2007 = vunpack.c.h.b16 %v360
        %v2008 = vunpack.c.l.b16 %v361
        %v2009 = vunpack.c.h.b16 %v361
        %v2010 = vunpack.c.l.b16 %v362
        %v2011 = vunpack.c.h.b16 %v362
        %v2012 = vunpack.c.l.b16 %v363
        %v2013 = vunpack.c.h.b16 %v363
        %v2014 = vunpack.c.l.b16 %v364
        %v2015 = vunpack.c.h.b16 %v364
        %v2016 = vunpack.c.l.b16 %v365
        %v2017 = vunpack.c.h.b16 %v365
        %v2018 = vunpack.c.l.b16 %v366
        %v2019 = vunpack.c.h.b16 %v366
        %v2020 = vunpack.c.l.b16 %v367
        %v2021 = vunpack.c.h.b16 %v367
        %v2022 = vunpack.c.l.b16 %v368
        %v2023 = vunpack.c.h.b16 %v368
        %v2024 = vunpack.c.l.b16 %v369
        %v2025 = vunpack.c.h.b16 %v369
        %v2026 = vunpack.c.l.b16 %v370
        %v2027 = vunpack.c.h.b16 %v370
        %v2028 = vunpack.c.l.b16 %v371
        %v2029 = vunpack.c.h.b16 %v371
        %v2030 = vunpack.c.l.b16 %v372
        %v2031 = vunpack.c.h.b16 %v372
        %v2032 = vunpack.c.l.b16 %v373
        %v2033 = vunpack.c.h.b16 %v373
        %v2034 = vunpack.c.l.b16 %v374
        %v2035 = vunpack.c.h.b16 %v374
        %v2036 = vunpack.c.l.b16 %v375
        %v2037 = vunpack.c.h.b16 %v375
        %v2038 = vunpack.c.l.b16 %v376
        %v2039 = vunpack.c.h.b16 %v376
        %v2040 = vunpack.c.l.b16 %v377
        %v2041 = vunpack.c.h.b16 %v377
        %v2042 = vunpack.c.l.b16 %v378
        %v2043 = vunpack.c.h.b16 %v378
        %v2044 = vunpack.c.l.b16 %v379
        %v2045 = vunpack.c.h.b16 %v379
        %v2046 = vunpack.c.l.b16 %v380
        %v2047 = vunpack.c.h.b16 %v380
        %v2048 = vunpack.c.l.b16 %v381
        %v2049 = vunpack.c.h.b16 %v381
        %v2050 = vunpack.c.l.b16 %v382
        %v2051 = vunpack.c.h.b16 %v382
        %v2052 = vunpack.c.l.b16 %v383
        %v2053 = vunpack.c.h.b16 %v383
        %v2054 = vunpack.c.l.b16 %v384
        %v2055 = vunpack.c.h.b16 %v384
        %v2056 = vunpack.c.l.b16 %v385
        %v2057 = vunpack.c.h.b16 %v385
        %v2058 = vunpack.c.l.b16 %v386
        %v2059 = vunpack.c.h.b16 %v386
        %v2060 = vunpack.c.l.b16 %v387
        %v2061 = vunpack.c.h.b16 %v387
        %v2062 = vunpack.c.l.b16 %v388
        %v2063 = vunpack.c.h.b16 %v388
        %v2064 = vunpack.c.l.b16 %v389
        %v2065 = vunpack.c.h.b16 %v389
        %v2066 = vunpack.c.l.b16 %v390
        %v2067 = vunpack.c.h.b16 %v390
        %v2068 = vunpack.c.l.b16 %v391
        %v2069 = vunpack.c.h.b16 %v391
        %v2070 = vunpack.c.l.b16 %v392
        %v2071 = vunpack.c.h.b16 %v392
        %v2072 = vunpack.c.l.b16 %v393
        %v2073 = vunpack.c.h.b16 %v393
        %v2074 = vunpack.c.l.b16 %v394
        %v2075 = vunpack.c.h.b16 %v394
        %v2076 = vunpack.c.l.b16 %v395
        %v2077 = vunpack.c.h.b16 %v395
        %v2078 = vunpack.c.l.b16 %v396
        %v2079 = vunpack.c.h.b16 %v396
        %v2080 = vunpack.c.l.b16 %v397
        %v2081 = vunpack.c.h.b16 %v397
        %v2082 = vunpack.c.l.b16 %v398
        %v2083 = vunpack.c.h.b16 %v398
        %v2084 = vunpack.c.l.b16 %v399
        %v2085 = vunpack.c.h.b16 %v399
        %v2086 = vunpack.c.l.b16 %v400
        %v2087 = vunpack.c.h.b16 %v400
        %v2088 = vunpack.c.l.b16 %v401
        %v2089 = vunpack.c.h.b16 %v401
        %v2090 = vunpack.c.l.b16 %v402
        %v2091 = vunpack.c.h.b16 %v402
        %v2092 = vunpack.c.l.b16 %v403
        %v2093 = vunpack.c.h.b16 %v403
        %v2094 = vunpack.c.l.b16 %v404
        %v2095 = vunpack.c.h.b16 %v404
        %v2096 = vunpack.c.l.b16 %v405
        %v2097 = vunpack.c.h.b16 %v405
        %v2098 = vunpack.c.l.b16 %v406
        %v2099 = vunpack.c.h.b16 %v406
        %v2100 = vunpack.c.l.b16 %v407
        %v2101 = vunpack.c.h.b16 %v407
        %v2102 = vunpack.c.l.b16 %v408
        %v2103 = vunpack.c.h.b16 %v408
        %v2104 = vunpack.c.l.b16 %v409
        %v2105 = vunpack.c.h.b16 %v409
        %v2106 = vunpack.c.l.b16 %v410
        %v2107 = vunpack.c.h.b16 %v410
        %v2108 = vunpack.c.l.b16 %v411
        %v2109 = vunpack.c.h.b16 %v411
        %v2110 = vunpack.c.l.b16 %v412
        %v2111 = vunpack.c.h.b16 %v412
        %v2112 = vunpack.c.l.b16 %v413
        %v2113 = vunpack.c.h.b16 %v413
        %v2114 = vunpack.c.l.b16 %v414
        %v2115 = vunpack.c.h.b16 %v414
        %v2116 = vunpack.c.l.b16 %v415
        %v2117 = vunpack.c.h.b16 %v415
        %v2118 = vunpack.c.l.b16 %v416
        %v2119 = vunpack.c.h.b16 %v416
        %v2120 = vunpack.c.l.b16 %v417
        %v2121 = vunpack.c.h.b16 %v417
        %v2122 = vunpack.c.l.b16 %v418
        %v2123 = vunpack.c.h.b16 %v418
        %v2124 = vunpack.c.l.b16 %v419
        %v2125 = vunpack.c.h.b16 %v419
        %v2126 = vunpack.c.l.b16 %v420
        %v2127 = vunpack.c.h.b16 %v420
        %v2128 = vunpack.c.l.b16 %v421
        %v2129 = vunpack.c.h.b16 %v421
        %v2130 = vunpack.c.l.b16 %v422
        %v2131 = vunpack.c.h.b16 %v422
        %v2132 = vunpack.c.l.b16 %v423
        %v2133 = vunpack.c.h.b16 %v423
        %v2134 = vunpack.c.l.b16 %v424
        %v2135 = vunpack.c.h.b16 %v424
        %v2136 = vunpack.c.l.b16 %v425
        %v2137 = vunpack.c.h.b16 %v425
        %v2138 = vunpack.c.l.b16 %v426
        %v2139 = vunpack.c.h.b16 %v426
        %v2140 = vunpack.c.l.b16 %v427
        %v2141 = vunpack.c.h.b16 %v427
        %v2142 = vunpack.c.l.b16 %v428
        %v2143 = vunpack.c.h.b16 %v428
        %v2144 = vunpack.c.l.b16 %v429
        %v2145 = vunpack.c.h.b16 %v429
        %v2146 = vunpack.c.l.b16 %v430
        %v2147 = vunpack.c.h.b16 %v430
        %v2148 = vunpack.c.l.b16 %v431
        %v2149 = vunpack.c.h.b16 %v431
        %v2150 = vunpack.c.l.b16 %v432
        %v2151 = vunpack.c.h.b16 %v432
        %v2152 = vunpack.c.l.b16 %v433
        %v2153 = vunpack.c.h.b16 %v433
        %v2154 = vunpack.c.l.b16 %v434
        %v2155 = vunpack.c.h.b16 %v434
        %v2156 = vunpack.c.l.b16 %v435
        %v2157 = vunpack.c.h.b16 %v435
        %v2158 = vunpack.c.l.b16 %v436
        %v2159 = vunpack.c.h.b16 %v436
        %v2160 = vunpack.c.l.b16 %v437
        %v2161 = vunpack.c.h.b16 %v437
        %v2162 = vunpack.c.l.b16 %v438
        %v2163 = vunpack.c.h.b16 %v438
        %v2164 = vunpack.c.l.b16 %v439
        %v2165 = vunpack.c.h.b16 %v439
        %v2166 = vunpack.c.l.b16 %v440
        %v2167 = vunpack.c.h.b16 %v440
        %v2168 = vunpack.c.l.b16 %v441
        %v2169 = vunpack.c.h.b16 %v441
        %v2170 = vunpack.c.l.b16 %v442
        %v2171 = vunpack.c.h.b16 %v442
        %v2172 = vunpack.c.l.b16 %v443
        %v2173 = vunpack.c.h.b16 %v443
        %v2174 = vunpack.c.l.b16 %v444
        %v2175 = vunpack.c.h.b16 %v444
        %v2176 = vunpack.c.l.b16 %v445
        %v2177 = vunpack.c.h.b16 %v445
        %v2178 = vunpack.c.l.b16 %v446
        %v2179 = vunpack.c.h.b16 %v446
        %v2180 = vunpack.c.l.b16 %v447
        %v2181 = vunpack.c.h.b16 %v447
        %v2182 = vunpack.c.l.b16 %v448
        %v2183 = vunpack.c.h.b16 %v448
        %v2184 = vunpack.c.l.b16 %v449
        %v2185 = vunpack.c.h.b16 %v449
        %v2186 = vunpack.c.l.b16 %v450
        %v2187 = vunpack.c.h.b16 %v450
        %v2188 = vunpack.c.l.b16 %v451
        %v2189 = vunpack.c.h.b16 %v451
        %v2190 = vunpack.c.l.b16 %v452
        %v2191 = vunpack.c.h.b16 %v452
        %v2192 = vunpack.c.l.b16 %v453
        %v2193 = vunpack.c.h.b16 %v453
        %v2194 = vunpack.c.l.b16 %v454
        %v2195 = vunpack.c.h.b16 %v454
        %v2196 = vunpack.c.l.b16 %v455
        %v2197 = vunpack.c.h.b16 %v455
        %v2198 = vunpack.c.l.b16 %v456
        %v2199 = vunpack.c.h.b16 %v456
        %v2200 = vunpack.c.l.b16 %v457
        %v2201 = vunpack.c.h.b16 %v457
        %v2202 = vunpack.c.l.b16 %v458
        %v2203 = vunpack.c.h.b16 %v458
        %v2204 = vunpack.c.l.b16 %v459
        %v2205 = vunpack.c.h.b16 %v459
        %v2206 = vunpack.c.l.b16 %v460
        %v2207 = vunpack.c.h.b16 %v460
        %v2208 = vunpack.c.l.b16 %v461
        %v2209 = vunpack.c.h.b16 %v461
        %v2210 = vunpack.c.l.b16 %v462
        %v2211 = vunpack.c.h.b16 %v462
        %v2212 = vunpack.c.l.b16 %v463
        %v2213 = vunpack.c.h.b16 %v463
        %v2214 = vunpack.c.l.b16 %v464
        %v2215 = vunpack.c.h.b16 %v464
        %v2216 = vunpack.c.l.b16 %v465
        %v2217 = vunpack.c.h.b16 %v465
        %v2218 = vunpack.c.l.b16 %v466
        %v2219 = vunpack.c.h.b16 %v466
        %v2220 = vunpack.c.l.b16 %v467
        %v2221 = vunpack.c.h.b16 %v467
        %v2222 = vunpack.c.l.b16 %v468
        %v2223 = vunpack.c.h.b16 %v468
        %v2224 = vunpack.c.l.b16 %v469
        %v2225 = vunpack.c.h.b16 %v469
        %v2226 = vunpack.c.l.b16 %v470
        %v2227 = vunpack.c.h.b16 %v470
        %v2228 = vunpack.c.l.b16 %v471
        %v2229 = vunpack.c.h.b16 %v471
        %v2230 = vunpack.c.l.b16 %v472
        %v2231 = vunpack.c.h.b16 %v472
        %v2232 = vunpack.c.l.b16 %v473
        %v2233 = vunpack.c.h.b16 %v473
        %v2234 = vunpack.c.l.b16 %v474
        %v2235 = vunpack.c.h.b16 %v474
        %v2236 = vunpack.c.l.b16 %v475
        %v2237 = vunpack.c.h.b16 %v475
        %v2238 = vunpack.c.l.b16 %v476
        %v2239 = vunpack.c.h.b16 %v476
        %v2240 = vunpack.c.l.b16 %v477
        %v2241 = vunpack.c.h.b16 %v477
        %v2242 = vunpack.c.l.b16 %v478
        %v2243 = vunpack.c.h.b16 %v478
        %v2244 = vunpack.c.l.b16 %v479
        %v2245 = vunpack.c.h.b16 %v479
        %v2246 = vunpack.c.l.b16 %v480
        %v2247 = vunpack.c.h.b16 %v480
        %v2248 = vunpack.c.l.b16 %v481
        %v2249 = vunpack.c.h.b16 %v481
        %v2250 = vunpack.c.l.b16 %v482
        %v2251 = vunpack.c.h.b16 %v482
        %v2252 = vunpack.c.l.b16 %v483
        %v2253 = vunpack.c.h.b16 %v483
        %v2254 = vunpack.c.l.b16 %v484
        %v2255 = vunpack.c.h.b16 %v484
        %v2256 = vunpack.c.l.b16 %v485
        %v2257 = vunpack.c.h.b16 %v485
        %v2258 = vunpack.c.l.b16 %v486
        %v2259 = vunpack.c.h.b16 %v486
        %v2260 = vunpack.c.l.b16 %v487
        %v2261 = vunpack.c.h.b16 %v487
        %v2262 = vunpack.c.l.b16 %v488
        %v2263 = vunpack.c.h.b16 %v488
        %v2264 = vunpack.c.l.b16 %v489
        %v2265 = vunpack.c.h.b16 %v489
        %v2266 = vunpack.c.l.b16 %v490
        %v2267 = vunpack.c.h.b16 %v490
        %v2268 = vunpack.c.l.b16 %v491
        %v2269 = vunpack.c.h.b16 %v491
        %v2270 = vunpack.c.l.b16 %v492
        %v2271 = vunpack.c.h.b16 %v492
        %v2272 = vunpack.c.l.b16 %v493
        %v2273 = vunpack.c.h.b16 %v493
        %v2274 = vunpack.c.l.b16 %v494
        %v2275 = vunpack.c.h.b16 %v494
        %v2276 = vunpack.c.l.b16 %v495
        %v2277 = vunpack.c.h.b16 %v495
        %v2278 = vunpack.c.l.b16 %v496
        %v2279 = vunpack.c.h.b16 %v496
        %v2280 = vunpack.c.l.b16 %v497
        %v2281 = vunpack.c.h.b16 %v497
        %v2282 = vunpack.c.l.b16 %v498
        %v2283 = vunpack.c.h.b16 %v498
        %v2284 = vunpack.c.l.b16 %v499
        %v2285 = vunpack.c.h.b16 %v499
        %v2286 = vunpack.c.l.b16 %v500
        %v2287 = vunpack.c.h.b16 %v500
        %v2288 = vunpack.c.l.b16 %v501
        %v2289 = vunpack.c.h.b16 %v501
        %v2290 = vunpack.c.l.b16 %v502
        %v2291 = vunpack.c.h.b16 %v502
        %v2292 = vunpack.c.l.b16 %v503
        %v2293 = vunpack.c.h.b16 %v503
        %v2294 = vunpack.c.l.b16 %v504
        %v2295 = vunpack.c.h.b16 %v504
        %v2296 = vunpack.c.l.b16 %v505
        %v2297 = vunpack.c.h.b16 %v505
        %v2298 = vunpack.c.l.b16 %v506
        %v2299 = vunpack.c.h.b16 %v506
        %v2300 = vunpack.c.l.b16 %v507
        %v2301 = vunpack.c.h.b16 %v507
        %v2302 = vunpack.c.l.b16 %v508
        %v2303 = vunpack.c.h.b16 %v508
        %v2304 = vunpack.c.l.b16 %v509
        %v2305 = vunpack.c.h.b16 %v509
        %v2306 = vunpack.c.l.b16 %v510
        %v2307 = vunpack.c.h.b16 %v510
        %v2308 = vunpack.c.l.b16 %v511
        %v2309 = vunpack.c.h.b16 %v511
        %v2310 = vunpack.c.l.b16 %v512
        %v2311 = vunpack.c.h.b16 %v512
        %v2312 = vunpack.c.l.b16 %v513
        %v2313 = vunpack.c.h.b16 %v513
        %v2314 = vunpack.c.l.b16 %v514
        %v2315 = vunpack.c.h.b16 %v514
        %v2316 = vunpack.c.l.b16 %v515
        %v2317 = vunpack.c.h.b16 %v515
        %v2318 = vunpack.c.l.b16 %v516
        %v2319 = vunpack.c.h.b16 %v516
        %v2320 = vunpack.c.l.b16 %v517
        %v2321 = vunpack.c.h.b16 %v517
        %v2322 = vunpack.c.l.b16 %v518
        %v2323 = vunpack.c.h.b16 %v518
        %v2324 = vunpack.c.l.b16 %v519
        %v2325 = vunpack.c.h.b16 %v519
        %v2326 = vunpack.c.l.b16 %v520
        %v2327 = vunpack.c.h.b16 %v520
        %v2328 = vunpack.c.l.b16 %v521
        %v2329 = vunpack.c.h.b16 %v521
        %v2330 = vunpack.c.l.b16 %v522
        %v2331 = vunpack.c.h.b16 %v522
        %v2332 = vunpack.c.l.b16 %v523
        %v2333 = vunpack.c.h.b16 %v523
        %v2334 = vunpack.c.l.b16 %v524
        %v2335 = vunpack.c.h.b16 %v524
        %v2336 = vunpack.c.l.b16 %v525
        %v2337 = vunpack.c.h.b16 %v525
        %v2338 = vunpack.c.l.b16 %v526
        %v2339 = vunpack.c.h.b16 %v526
        %v2340 = vunpack.c.l.b16 %v527
        %v2341 = vunpack.c.h.b16 %v527
        %v2342 = vunpack.c.l.b16 %v528
        %v2343 = vunpack.c.h.b16 %v528
        %v2344 = vunpack.c.l.b16 %v529
        %v2345 = vunpack.c.h.b16 %v529
        %v2346 = vunpack.c.l.b16 %v530
        %v2347 = vunpack.c.h.b16 %v530
        %v2348 = vunpack.c.l.b16 %v531
        %v2349 = vunpack.c.h.b16 %v531
        %v2350 = vunpack.c.l.b16 %v532
        %v2351 = vunpack.c.h.b16 %v532
        %v2352 = vunpack.c.l.b16 %v533
        %v2353 = vunpack.c.h.b16 %v533
        %v2354 = vunpack.c.l.b16 %v534
        %v2355 = vunpack.c.h.b16 %v534
        %v2356 = vunpack.c.l.b16 %v535
        %v2357 = vunpack.c.h.b16 %v535
        %v2358 = vunpack.c.l.b16 %v536
        %v2359 = vunpack.c.h.b16 %v536
        %v2360 = vunpack.c.l.b16 %v537
        %v2361 = vunpack.c.h.b16 %v537
        %v2362 = vunpack.c.l.b16 %v538
        %v2363 = vunpack.c.h.b16 %v538
        %v2364 = vunpack.c.l.b16 %v539
        %v2365 = vunpack.c.h.b16 %v539
        %v2366 = vunpack.c.l.b16 %v540
        %v2367 = vunpack.c.h.b16 %v540
        %v2368 = vunpack.c.l.b16 %v541
        %v2369 = vunpack.c.h.b16 %v541
        %v2370 = vunpack.c.l.b16 %v542
        %v2371 = vunpack.c.h.b16 %v542
        %v2372 = vunpack.c.l.b16 %v543
        %v2373 = vunpack.c.h.b16 %v543
        %v2374 = vunpack.c.l.b16 %v544
        %v2375 = vunpack.c.h.b16 %v544
        %v2376 = vunpack.c.l.b16 %v545
        %v2377 = vunpack.c.h.b16 %v545
        %v2378 = vunpack.c.l.b16 %v546
        %v2379 = vunpack.c.h.b16 %v546
        %v2380 = vunpack.c.l.b16 %v547
        %v2381 = vunpack.c.h.b16 %v547
        %v2382 = vunpack.c.l.b16 %v548
        %v2383 = vunpack.c.h.b16 %v548
        %v2384 = vunpack.c.l.b16 %v549
        %v2385 = vunpack.c.h.b16 %v549
        %v2386 = vunpack.c.l.b16 %v550
        %v2387 = vunpack.c.h.b16 %v550
        %v2388 = vunpack.c.l.b16 %v551
        %v2389 = vunpack.c.h.b16 %v551
        %v2390 = vunpack.c.l.b16 %v552
        %v2391 = vunpack.c.h.b16 %v552
        %v2392 = vunpack.c.l.b16 %v553
        %v2393 = vunpack.c.h.b16 %v553
        %v2394 = vunpack.c.l.b16 %v554
        %v2395 = vunpack.c.h.b16 %v554
        %v2396 = vunpack.c.l.b16 %v555
        %v2397 = vunpack.c.h.b16 %v555
        %v2398 = vunpack.c.l.b16 %v556
        %v2399 = vunpack.c.h.b16 %v556
        %v2400 = vunpack.c.l.b16 %v557
        %v2401 = vunpack.c.h.b16 %v557
        %v2402 = vunpack.c.l.b16 %v558
        %v2403 = vunpack.c.h.b16 %v558
        %v2404 = vunpack.c.l.b16 %v559
        %v2405 = vunpack.c.h.b16 %v559
        %v2406 = vunpack.c.l.b16 %v560
        %v2407 = vunpack.c.h.b16 %v560
        %v2408 = vunpack.c.l.b16 %v561
        %v2409 = vunpack.c.h.b16 %v561
        %v2410 = vunpack.c.l.b16 %v562
        %v2411 = vunpack.c.h.b16 %v562
        %v2412 = vunpack.c.l.b16 %v563
        %v2413 = vunpack.c.h.b16 %v563
        %v2414 = vunpack.c.l.b16 %v564
        %v2415 = vunpack.c.h.b16 %v564
        %v2416 = vunpack.c.l.b16 %v565
        %v2417 = vunpack.c.h.b16 %v565
        %v2418 = vunpack.c.l.b16 %v566
        %v2419 = vunpack.c.h.b16 %v566
        %v2420 = vunpack.c.l.b16 %v567
        %v2421 = vunpack.c.h.b16 %v567
        %v2422 = vunpack.c.l.b16 %v568
        %v2423 = vunpack.c.h.b16 %v568
        %v2424 = vunpack.c.l.b16 %v569
        %v2425 = vunpack.c.h.b16 %v569
        %v2426 = vunpack.c.l.b16 %v570
        %v2427 = vunpack.c.h.b16 %v570
        %v2428 = vunpack.c.l.b16 %v571
        %v2429 = vunpack.c.h.b16 %v571
        %v2430 = vunpack.c.l.b16 %v572
        %v2431 = vunpack.c.h.b16 %v572
        %v2432 = vunpack.c.l.b16 %v573
        %v2433 = vunpack.c.h.b16 %v573
        %v2434 = vunpack.c.l.b16 %v574
        %v2435 = vunpack.c.h.b16 %v574
        %v2436 = vunpack.c.l.b16 %v575
        %v2437 = vunpack.c.h.b16 %v575
        %v2438 = vunpack.c.l.b16 %v576
        %v2439 = vunpack.c.h.b16 %v576
        %v2440 = vunpack.c.l.b16 %v577
        %v2441 = vunpack.c.h.b16 %v577
        %v2442 = vunpack.c.l.b16 %v578
        %v2443 = vunpack.c.h.b16 %v578
        %v2444 = vunpack.c.l.b16 %v579
        %v2445 = vunpack.c.h.b16 %v579
        %v2446 = vunpack.c.l.b16 %v580
        %v2447 = vunpack.c.h.b16 %v580
        %v2448 = vunpack.c.l.b16 %v581
        %v2449 = vunpack.c.h.b16 %v581
        %v2450 = vunpack.c.l.b16 %v582
        %v2451 = vunpack.c.h.b16 %v582
        %v2452 = vunpack.c.l.b16 %v583
        %v2453 = vunpack.c.h.b16 %v583
        %v2454 = vunpack.c.l.b16 %v584
        %v2455 = vunpack.c.h.b16 %v584
        %v2456 = vunpack.c.l.b16 %v585
        %v2457 = vunpack.c.h.b16 %v585
        %v2458 = vunpack.c.l.b16 %v586
        %v2459 = vunpack.c.h.b16 %v586
        %v2460 = vunpack.c.l.b16 %v587
        %v2461 = vunpack.c.h.b16 %v587
        %v2462 = vunpack.c.l.b16 %v588
        %v2463 = vunpack.c.h.b16 %v588
        %v2464 = vunpack.c.l.b16 %v589
        %v2465 = vunpack.c.h.b16 %v589
        %v2466 = vunpack.c.l.b16 %v590
        %v2467 = vunpack.c.h.b16 %v590
        %v2468 = vunpack.c.l.b16 %v591
        %v2469 = vunpack.c.h.b16 %v591
        %v2470 = vunpack.c.l.b16 %v592
        %v2471 = vunpack.c.h.b16 %v592
        %v2472 = vunpack.c.l.b16 %v593
        %v2473 = vunpack.c.h.b16 %v593
        %v2474 = vunpack.c.l.b16 %v594
        %v2475 = vunpack.c.h.b16 %v594
        %v2476 = vunpack.c.l.b16 %v595
        %v2477 = vunpack.c.h.b16 %v595
        %v2478 = vunpack.c.l.b16 %v596
        %v2479 = vunpack.c.h.b16 %v596
        %v2480 = vunpack.c.l.b16 %v597
        %v2481 = vunpack.c.h.b16 %v597
        %v2482 = vunpack.c.l.b16 %v598
        %v2483 = vunpack.c.h.b16 %v598
        %v2484 = vunpack.c.l.b16 %v599
        %v2485 = vunpack.c.h.b16 %v599
        %v2486 = vunpack.c.l.b16 %v600
        %v2487 = vunpack.c.h.b16 %v600
        %v2488 = vunpack.c.l.b16 %v601
        %v2489 = vunpack.c.h.b16 %v601
        %v2490 = vunpack.c.l.b16 %v602
        %v2491 = vunpack.c.h.b16 %v602
        %v2492 = vunpack.c.l.b16 %v603
        %v2493 = vunpack.c.h.b16 %v603
        %v2494 = vunpack.c.l.b16 %v604
        %v2495 = vunpack.c.h.b16 %v604
        %v2496 = vunpack.c.l.b16 %v605
        %v2497 = vunpack.c.h.b16 %v605
        %v2498 = vunpack.c.l.b16 %v606
        %v2499 = vunpack.c.h.b16 %v606
        %v2500 = vunpack.c.l.b16 %v607
        %v2501 = vunpack.c.h.b16 %v607
        %v2502 = vunpack.c.l.b16 %v608
        %v2503 = vunpack.c.h.b16 %v608
        %v2504 = vunpack.c.l.b16 %v609
        %v2505 = vunpack.c.h.b16 %v609
        %v2506 = vunpack.c.l.b16 %v610
        %v2507 = vunpack.c.h.b16 %v610
        %v2508 = vunpack.c.l.b16 %v611
        %v2509 = vunpack.c.h.b16 %v611
        %v2510 = vunpack.c.l.b16 %v612
        %v2511 = vunpack.c.h.b16 %v612
        %v2512 = vunpack.c.l.b16 %v613
        %v2513 = vunpack.c.h.b16 %v613
        %v2514 = vunpack.c.l.b16 %v614
        %v2515 = vunpack.c.h.b16 %v614
        %v2516 = vunpack.c.l.b16 %v615
        %v2517 = vunpack.c.h.b16 %v615
        %v2518 = vunpack.c.l.b16 %v616
        %v2519 = vunpack.c.h.b16 %v616
        %v2520 = vunpack.c.l.b16 %v617
        %v2521 = vunpack.c.h.b16 %v617
        %v2522 = vunpack.c.l.b16 %v618
        %v2523 = vunpack.c.h.b16 %v618
        %v2524 = vunpack.c.l.b16 %v619
        %v2525 = vunpack.c.h.b16 %v619
        %v2526 = vunpack.c.l.b16 %v620
        %v2527 = vunpack.c.h.b16 %v620
        %v2528 = vunpack.c.l.b16 %v621
        %v2529 = vunpack.c.h.b16 %v621
        %v2530 = vunpack.c.l.b16 %v622
        %v2531 = vunpack.c.h.b16 %v622
        %v2532 = vunpack.c.l.b16 %v623
        %v2533 = vunpack.c.h.b16 %v623
        %v2534 = vunpack.c.l.b16 %v624
        %v2535 = vunpack.c.h.b16 %v624
        %v2536 = vunpack.c.l.b16 %v625
        %v2537 = vunpack.c.h.b16 %v625
        %v2538 = vunpack.c.l.b16 %v626
        %v2539 = vunpack.c.h.b16 %v626
        %v2540 = vunpack.c.l.b16 %v627
        %v2541 = vunpack.c.h.b16 %v627
        %v2542 = vunpack.c.l.b16 %v628
        %v2543 = vunpack.c.h.b16 %v628
        %v2544 = vunpack.c.l.b16 %v629
        %v2545 = vunpack.c.h.b16 %v629
        %v2546 = vunpack.c.l.b16 %v630
        %v2547 = vunpack.c.h.b16 %v630
        %v2548 = vunpack.c.l.b16 %v631
        %v2549 = vunpack.c.h.b16 %v631
        %v2550 = vunpack.c.l.b16 %v632
        %v2551 = vunpack.c.h.b16 %v632
        %v2552 = vunpack.c.l.b16 %v633
        %v2553 = vunpack.c.h.b16 %v633
        %v2554 = vunpack.c.l.b16 %v634
        %v2555 = vunpack.c.h.b16 %v634
        %v2556 = vunpack.c.l.b16 %v635
        %v2557 = vunpack.c.h.b16 %v635
        %v2558 = vunpack.c.l.b16 %v636
        %v2559 = vunpack.c.h.b16 %v636
        %v2560 = vunpack.c.l.b16 %v637
        %v2561 = vunpack.c.h.b16 %v637
        %v2562 = vunpack.c.l.b16 %v638
        %v2563 = vunpack.c.h.b16 %v638
        %v2564 = vunpack.c.l.b16 %v639
        %v2565 = vunpack.c.h.b16 %v639
        %v2566 = vunpack.c.l.b16 %v640
        %v2567 = vunpack.c.h.b16 %v640
        %v2568 = vunpack.c.l.b16 %v641
        %v2569 = vunpack.c.h.b16 %v641
        %v2570 = vunpack.c.l.b16 %v642
        %v2571 = vunpack.c.h.b16 %v642
        %v2572 = vunpack.c.l.b16 %v643
        %v2573 = vunpack.c.h.b16 %v643
        %v2574 = vunpack.c.l.b16 %v644
        %v2575 = vunpack.c.h.b16 %v644
        %v2576 = vunpack.c.l.b16 %v645
        %v2577 = vunpack.c.h.b16 %v645
        %v2578 = vunpack.c.l.b16 %v646
        %v2579 = vunpack.c.h.b16 %v646
        %v2580 = vunpack.c.l.b16 %v647
        %v2581 = vunpack.c.h.b16 %v647
        %v2582 = vunpack.c.l.b16 %v648
        %v2583 = vunpack.c.h.b16 %v648
        %v2584 = vunpack.c.l.b16 %v649
        %v2585 = vunpack.c.h.b16 %v649
        %v2586 = vunpack.c.l.b16 %v650
        %v2587 = vunpack.c.h.b16 %v650
        %v2588 = vunpack.c.l.b16 %v651
        %v2589 = vunpack.c.h.b16 %v651
        %v2590 = vunpack.c.l.b16 %v652
        %v2591 = vunpack.c.h.b16 %v652
        %v2592 = vunpack.c.l.b16 %v653
        %v2593 = vunpack.c.h.b16 %v653
        %v2594 = vunpack.c.l.b16 %v654
        %v2595 = vunpack.c.h.b16 %v654
        %v2596 = vunpack.c.l.b16 %v655
        %v2597 = vunpack.c.h.b16 %v655
        %v2598 = vunpack.c.l.b16 %v656
        %v2599 = vunpack.c.h.b16 %v656
        %v2600 = vunpack.c.l.b16 %v657
        %v2601 = vunpack.c.h.b16 %v657
        %v2602 = vunpack.c.l.b16 %v658
        %v2603 = vunpack.c.h.b16 %v658
        %v2604 = vunpack.c.l.b16 %v659
        %v2605 = vunpack.c.h.b16 %v659
        %v2606 = vunpack.c.l.b16 %v660
        %v2607 = vunpack.c.h.b16 %v660
        %v2608 = vunpack.c.l.b16 %v661
        %v2609 = vunpack.c.h.b16 %v661
        %v2610 = vunpack.c.l.b16 %v662
        %v2611 = vunpack.c.h.b16 %v662
        %v2612 = vunpack.c.l.b16 %v663
        %v2613 = vunpack.c.h.b16 %v663
        %v2614 = vunpack.c.l.b16 %v664
        %v2615 = vunpack.c.h.b16 %v664
        %v2616 = vunpack.c.l.b16 %v665
        %v2617 = vunpack.c.h.b16 %v665
        %v2618 = vunpack.c.l.b16 %v666
        %v2619 = vunpack.c.h.b16 %v666
        %v2620 = vunpack.c.l.b16 %v667
        %v2621 = vunpack.c.h.b16 %v667
        %v2622 = vunpack.c.l.b16 %v668
        %v2623 = vunpack.c.h.b16 %v668
        %v2624 = vunpack.c.l.b16 %v669
        %v2625 = vunpack.c.h.b16 %v669
        %v2626 = vunpack.c.l.b16 %v670
        %v2627 = vunpack.c.h.b16 %v670
        %v2628 = vunpack.c.l.b16 %v671
        %v2629 = vunpack.c.h.b16 %v671
        %v2630 = vunpack.c.l.b16 %v672
        %v2631 = vunpack.c.h.b16 %v672
        %v2632 = vunpack.c.l.b16 %v673
        %v2633 = vunpack.c.h.b16 %v673
        %v2634 = vunpack.c.l.b16 %v674
        %v2635 = vunpack.c.h.b16 %v674
        %v2636 = vunpack.c.l.b16 %v675
        %v2637 = vunpack.c.h.b16 %v675
        %v2638 = vunpack.c.l.b16 %v676
        %v2639 = vunpack.c.h.b16 %v676
        %v2640 = vunpack.c.l.b16 %v677
        %v2641 = vunpack.c.h.b16 %v677
        %v2642 = vunpack.c.l.b16 %v678
        %v2643 = vunpack.c.h.b16 %v678
        %v2644 = vunpack.c.l.b16 %v679
        %v2645 = vunpack.c.h.b16 %v679
        %v2646 = vunpack.c.l.b16 %v680
        %v2647 = vunpack.c.h.b16 %v680
        %v2648 = vunpack.c.l.b16 %v681
        %v2649 = vunpack.c.h.b16 %v681
        %v2650 = vunpack.c.l.b16 %v682
        %v2651 = vunpack.c.h.b16 %v682
        %v2652 = vunpack.c.l.b16 %v683
        %v2653 = vunpack.c.h.b16 %v683
        %v2654 = vunpack.c.l.b16 %v684
        %v2655 = vunpack.c.h.b16 %v684
        %v2656 = vunpack.c.l.b16 %v685
        %v2657 = vunpack.c.h.b16 %v685
        %v2658 = vunpack.c.l.b16 %v686
        %v2659 = vunpack.c.h.b16 %v686
        %v2660 = vunpack.c.l.b16 %v687
        %v2661 = vunpack.c.h.b16 %v687
        %v2662 = vunpack.c.l.b16 %v688
        %v2663 = vunpack.c.h.b16 %v688
        %v2664 = vunpack.c.l.b16 %v689
        %v2665 = vunpack.c.h.b16 %v689
        %v2666 = vunpack.c.l.b16 %v690
        %v2667 = vunpack.c.h.b16 %v690
        %v2668 = vunpack.c.l.b16 %v691
        %v2669 = vunpack.c.h.b16 %v691
        %v2670 = vunpack.c.l.b16 %v692
        %v2671 = vunpack.c.h.b16 %v692
        %v2672 = vunpack.c.l.b16 %v693
        %v2673 = vunpack.c.h.b16 %v693
        %v2674 = vunpack.c.l.b16 %v694
        %v2675 = vunpack.c.h.b16 %v694
        %v2676 = vunpack.c.l.b16 %v695
        %v2677 = vunpack.c.h.b16 %v695
        %v2678 = vunpack.c.l.b16 %v696
        %v2679 = vunpack.c.h.b16 %v696
        %v2680 = vunpack.c.l.b16 %v697
        %v2681 = vunpack.c.h.b16 %v697
        %v2682 = vunpack.c.l.b16 %v698
        %v2683 = vunpack.c.h.b16 %v698
        %v2684 = vunpack.c.l.b16 %v699
        %v2685 = vunpack.c.h.b16 %v699
        %v2686 = vunpack.c.l.b16 %v700
        %v2687 = vunpack.c.h.b16 %v700
        %v2688 = vunpack.c.l.b16 %v701
        %v2689 = vunpack.c.h.b16 %v701
        %v2690 = vunpack.c.l.b16 %v702
        %v2691 = vunpack.c.h.b16 %v702
        %v2692 = vunpack.c.l.b16 %v703
        %v2693 = vunpack.c.h.b16 %v703
        %v2694 = vunpack.c.l.b16 %v704
        %v2695 = vunpack.c.h.b16 %v704
        %v2696 = vunpack.c.l.b16 %v705
        %v2697 = vunpack.c.h.b16 %v705
        %v2698 = vunpack.c.l.b16 %v706
        %v2699 = vunpack.c.h.b16 %v706
        %v2700 = vunpack.c.l.b16 %v707
        %v2701 = vunpack.c.h.b16 %v707
        %v2702 = vunpack.c.l.b16 %v708
        %v2703 = vunpack.c.h.b16 %v708
        %v2704 = vunpack.c.l.b16 %v709
        %v2705 = vunpack.c.h.b16 %v709
        %v2706 = vunpack.c.l.b16 %v710
        %v2707 = vunpack.c.h.b16 %v710
        %v2708 = vunpack.c.l.b16 %v711
        %v2709 = vunpack.c.h.b16 %v711
        %v2710 = vunpack.c.l.b16 %v712
        %v2711 = vunpack.c.h.b16 %v712
        %v2712 = vunpack.c.l.b16 %v713
        %v2713 = vunpack.c.h.b16 %v713
        %v2714 = vunpack.c.l.b16 %v714
        %v2715 = vunpack.c.h.b16 %v714
        %v2716 = vunpack.c.l.b16 %v715
        %v2717 = vunpack.c.h.b16 %v715
        %v2718 = vunpack.c.l.b16 %v716
        %v2719 = vunpack.c.h.b16 %v716
        %v2720 = vunpack.c.l.b16 %v717
        %v2721 = vunpack.c.h.b16 %v717
        %v2722 = vunpack.c.l.b16 %v718
        %v2723 = vunpack.c.h.b16 %v718
        %v2724 = vunpack.c.l.b16 %v719
        %v2725 = vunpack.c.h.b16 %v719
        %v2726 = vunpack.c.l.b16 %v720
        %v2727 = vunpack.c.h.b16 %v720
        %v2728 = vunpack.c.l.b16 %v721
        %v2729 = vunpack.c.h.b16 %v721
        %v2730 = vunpack.c.l.b16 %v722
        %v2731 = vunpack.c.h.b16 %v722
        %v2732 = vunpack.c.l.b16 %v723
        %v2733 = vunpack.c.h.b16 %v723
        %v2734 = vunpack.c.l.b16 %v724
        %v2735 = vunpack.c.h.b16 %v724
        %v2736 = vunpack.c.l.b16 %v725
        %v2737 = vunpack.c.h.b16 %v725
        %v2738 = vunpack.c.l.b16 %v726
        %v2739 = vunpack.c.h.b16 %v726
        %v2740 = vunpack.c.l.b16 %v727
        %v2741 = vunpack.c.h.b16 %v727
        %v2742 = vunpack.c.l.b16 %v728
        %v2743 = vunpack.c.h.b16 %v728
        %v2744 = vunpack.c.l.b16 %v729
        %v2745 = vunpack.c.h.b16 %v729
        %v2746 = vunpack.c.l.b16 %v730
        %v2747 = vunpack.c.h.b16 %v730
        %v2748 = vunpack.c.l.b16 %v731
        %v2749 = vunpack.c.h.b16 %v731
        %v2750 = vunpack.c.l.b16 %v732
        %v2751 = vunpack.c.h.b16 %v732
        %v2752 = vunpack.c.l.b16 %v733
        %v2753 = vunpack.c.h.b16 %v733
        %v2754 = vunpack.c.l.b16 %v734
        %v2755 = vunpack.c.h.b16 %v734
        %v2756 = vunpack.c.l.b16 %v735
        %v2757 = vunpack.c.h.b16 %v735
        %v2758 = vunpack.c.l.b16 %v736
        %v2759 = vunpack.c.h.b16 %v736
        %v2760 = vunpack.c.l.b16 %v737
        %v2761 = vunpack.c.h.b16 %v737
        %v2762 = vunpack.c.l.b16 %v738
        %v2763 = vunpack.c.h.b16 %v738
        %v2764 = vunpack.c.l.b16 %v739
        %v2765 = vunpack.c.h.b16 %v739
        %v2766 = vunpack.c.l.b16 %v740
        %v2767 = vunpack.c.h.b16 %v740
        %v2768 = vunpack.c.l.b16 %v741
        %v2769 = vunpack.c.h.b16 %v741
        %v2770 = vunpack.c.l.b16 %v742
        %v2771 = vunpack.c.h.b16 %v742
        %v2772 = vunpack.c.l.b16 %v743
        %v2773 = vunpack.c.h.b16 %v743
        %v2774 = vunpack.c.l.b16 %v744
        %v2775 = vunpack.c.h.b16 %v744
        %v2776 = vunpack.c.l.b16 %v745
        %v2777 = vunpack.c.h.b16 %v745
        %v2778 = vunpack.c.l.b16 %v746
        %v2779 = vunpack.c.h.b16 %v746
        %v2780 = vunpack.c.l.b16 %v747
        %v2781 = vunpack.c.h.b16 %v747
        %v2782 = vunpack.c.l.b16 %v748
        %v2783 = vunpack.c.h.b16 %v748
        %v2784 = vunpack.c.l.b16 %v749
        %v2785 = vunpack.c.h.b16 %v749
        %v2786 = vunpack.c.l.b16 %v750
        %v2787 = vunpack.c.h.b16 %v750
        %v2788 = vunpack.c.l.b16 %v751
        %v2789 = vunpack.c.h.b16 %v751
        %v2790 = vunpack.c.l.b16 %v752
        %v2791 = vunpack.c.h.b16 %v752
        %v2792 = vunpack.c.l.b16 %v753
        %v2793 = vunpack.c.h.b16 %v753
        %v2794 = vunpack.c.l.b16 %v754
        %v2795 = vunpack.c.h.b16 %v754
        %v2796 = vunpack.c.l.b16 %v755
        %v2797 = vunpack.c.h.b16 %v755
        %v2798 = vunpack.c.l.b16 %v756
        %v2799 = vunpack.c.h.b16 %v756
        %v2800 = vunpack.c.l.b16 %v757
        %v2801 = vunpack.c.h.b16 %v757
        %v2802 = vunpack.c.l.b16 %v758
        %v2803 = vunpack.c.h.b16 %v758
        %v2804 = vunpack.c.l.b16 %v759
        %v2805 = vunpack.c.h.b16 %v759
        %v2806 = vunpack.c.l.b16 %v760
        %v2807 = vunpack.c.h.b16 %v760
        %v2808 = vunpack.c.l.b16 %v761
        %v2809 = vunpack.c.h.b16 %v761
        %v2810 = vunpack.c.l.b16 %v762
        %v2811 = vunpack.c.h.b16 %v762
        %v2812 = vunpack.c.l.b16 %v763
        %v2813 = vunpack.c.h.b16 %v763
        %v2814 = vunpack.c.l.b16 %v764
        %v2815 = vunpack.c.h.b16 %v764
        %v2816 = vunpack.c.l.b16 %v765
        %v2817 = vunpack.c.h.b16 %v765
        %v2818 = vunpack.c.l.b16 %v766
        %v2819 = vunpack.c.h.b16 %v766
        %v2820 = vunpack.c.l.b16 %v767
        %v2821 = vunpack.c.h.b16 %v767
        %v2822 = vunpack.c.l.b16 %v768
        %v2823 = vunpack.c.h.b16 %v768
        %v2824 = vunpack.c.l.b16 %v769
        %v2825 = vunpack.c.h.b16 %v769
        %v2826 = vunpack.c.l.b16 %v770
        %v2827 = vunpack.c.h.b16 %v770
        %v2828 = vunpack.c.l.b16 %v771
        %v2829 = vunpack.c.h.b16 %v771
        %v2830 = vunpack.c.l.b16 %v772
        %v2831 = vunpack.c.h.b16 %v772
        %v2832 = vunpack.c.l.b16 %v773
        %v2833 = vunpack.c.h.b16 %v773
        %v2834 = vunpack.c.l.b16 %v774
        %v2835 = vunpack.c.h.b16 %v774
        %v2836 = vunpack.c.l.b16 %v775
        %v2837 = vunpack.c.h.b16 %v775
        %v2838 = vunpack.c.l.b16 %v776
        %v2839 = vunpack.c.h.b16 %v776
        %v2840 = vunpack.c.l.b16 %v777
        %v2841 = vunpack.c.h.b16 %v777
        %v2842 = vunpack.c.l.b16 %v778
        %v2843 = vunpack.c.h.b16 %v778
        %v2844 = vunpack.c.l.b16 %v779
        %v2845 = vunpack.c.h.b16 %v779
        %v2846 = vunpack.c.l.b16 %v780
        %v2847 = vunpack.c.h.b16 %v780
        %v2848 = vunpack.c.l.b16 %v781
        %v2849 = vunpack.c.h.b16 %v781
        %v2850 = vunpack.c.l.b16 %v782
        %v2851 = vunpack.c.h.b16 %v782
        %v2852 = vunpack.c.l.b16 %v783
        %v2853 = vunpack.c.h.b16 %v783
        %v2854 = vunpack.c.l.b16 %v784
        %v2855 = vunpack.c.h.b16 %v784
        %v2856 = vunpack.c.l.b16 %v785
        %v2857 = vunpack.c.h.b16 %v785
        %v2858 = vunpack.c.l.b16 %v786
        %v2859 = vunpack.c.h.b16 %v786
        %v2860 = vunpack.c.l.b16 %v787
        %v2861 = vunpack.c.h.b16 %v787
        %v2862 = vunpack.c.l.b16 %v788
        %v2863 = vunpack.c.h.b16 %v788
        %v2864 = vunpack.c.l.b16 %v789
        %v2865 = vunpack.c.h.b16 %v789
        %v2866 = vunpack.c.l.b16 %v790
        %v2867 = vunpack.c.h.b16 %v790
        %v2868 = vunpack.c.l.b16 %v791
        %v2869 = vunpack.c.h.b16 %v791
        %v2870 = vunpack.c.l.b16 %v792
        %v2871 = vunpack.c.h.b16 %v792
        %v2872 = vunpack.c.l.b16 %v793
        %v2873 = vunpack.c.h.b16 %v793
        %v2874 = vunpack.c.l.b16 %v794
        %v2875 = vunpack.c.h.b16 %v794
        %v2876 = vunpack.c.l.b16 %v795
        %v2877 = vunpack.c.h.b16 %v795
        %v2878 = vunpack.c.l.b16 %v796
        %v2879 = vunpack.c.h.b16 %v796
        %v2880 = vunpack.c.l.b16 %v797
        %v2881 = vunpack.c.h.b16 %v797
        %v2882 = vunpack.c.l.b16 %v798
        %v2883 = vunpack.c.h.b16 %v798
        %v2884 = vunpack.c.l.b16 %v799
        %v2885 = vunpack.c.h.b16 %v799
        %v2886 = vunpack.c.l.b16 %v800
        %v2887 = vunpack.c.h.b16 %v800
        %v2888 = vunpack.c.l.b16 %v801
        %v2889 = vunpack.c.h.b16 %v801
        %v2890 = vunpack.c.l.b16 %v802
        %v2891 = vunpack.c.h.b16 %v802
        %v2892 = vunpack.c.l.b16 %v803
        %v2893 = vunpack.c.h.b16 %v803
        %v2894 = vunpack.c.l.b16 %v804
        %v2895 = vunpack.c.h.b16 %v804
        %v2896 = vunpack.c.l.b16 %v805
        %v2897 = vunpack.c.h.b16 %v805
        %v2898 = vunpack.c.l.b16 %v806
        %v2899 = vunpack.c.h.b16 %v806
        %v2900 = vunpack.c.l.b16 %v807
        %v2901 = vunpack.c.h.b16 %v807
        %v2902 = vunpack.c.l.b16 %v808
        %v2903 = vunpack.c.h.b16 %v808
        %v2904 = vunpack.c.l.b16 %v809
        %v2905 = vunpack.c.h.b16 %v809
        %v2906 = vunpack.c.l.b16 %v810
        %v2907 = vunpack.c.h.b16 %v810
        %v2908 = vunpack.c.l.b16 %v811
        %v2909 = vunpack.c.h.b16 %v811
        %v2910 = vunpack.c.l.b16 %v812
        %v2911 = vunpack.c.h.b16 %v812
        %v2912 = vunpack.c.l.b16 %v813
        %v2913 = vunpack.c.h.b16 %v813
        %v2914 = vunpack.c.l.b16 %v814
        %v2915 = vunpack.c.h.b16 %v814
        %v2916 = vunpack.c.l.b16 %v815
        %v2917 = vunpack.c.h.b16 %v815
        %v2918 = vunpack.c.l.b16 %v816
        %v2919 = vunpack.c.h.b16 %v816
        %v2920 = vunpack.c.l.b16 %v817
        %v2921 = vunpack.c.h.b16 %v817
        %v2922 = vunpack.c.l.b16 %v818
        %v2923 = vunpack.c.h.b16 %v818
        %v2924 = vunpack.c.l.b16 %v819
        %v2925 = vunpack.c.h.b16 %v819
        %v2926 = vunpack.c.l.b16 %v820
        %v2927 = vunpack.c.h.b16 %v820
        %v2928 = vunpack.c.l.b16 %v821
        %v2929 = vunpack.c.h.b16 %v821
        %v2930 = vunpack.c.l.b16 %v822
        %v2931 = vunpack.c.h.b16 %v822
        %v2932 = vunpack.c.l.b16 %v823
        %v2933 = vunpack.c.h.b16 %v823
        %v2934 = vunpack.c.l.b16 %v824
        %v2935 = vunpack.c.h.b16 %v824
        %v2936 = vunpack.c.l.b16 %v825
        %v2937 = vunpack.c.h.b16 %v825
        %v2938 = vunpack.c.l.b16 %v826
        %v2939 = vunpack.c.h.b16 %v826
        %v2940 = vunpack.c.l.b16 %v827
        %v2941 = vunpack.c.h.b16 %v827
        %v2942 = vunpack.c.l.b16 %v828
        %v2943 = vunpack.c.h.b16 %v828
        %v2944 = vunpack.c.l.b16 %v829
        %v2945 = vunpack.c.h.b16 %v829
        %v2946 = vunpack.c.l.b16 %v830
        %v2947 = vunpack.c.h.b16 %v830
        %v2948 = vunpack.c.l.b16 %v831
        %v2949 = vunpack.c.h.b16 %v831
        %v2950 = vunpack.c.l.b16 %v832
        %v2951 = vunpack.c.h.b16 %v832
        %v2952 = vunpack.c.l.b16 %v833
        %v2953 = vunpack.c.h.b16 %v833
        %v2954 = vunpack.c.l.b16 %v834
        %v2955 = vunpack.c.h.b16 %v834
        %v2956 = vunpack.c.l.b16 %v835
        %v2957 = vunpack.c.h.b16 %v835
        %v2958 = vunpack.c.l.b16 %v836
        %v2959 = vunpack.c.h.b16 %v836
        %v2960 = vunpack.c.l.b16 %v837
        %v2961 = vunpack.c.h.b16 %v837
        %v2962 = vunpack.c.l.b16 %v838
        %v2963 = vunpack.c.h.b16 %v838
        %v2964 = vunpack.c.l.b16 %v839
        %v2965 = vunpack.c.h.b16 %v839
        %v2966 = vunpack.c.l.b16 %v840
        %v2967 = vunpack.c.h.b16 %v840
        %v2968 = vunpack.c.l.b16 %v841
        %v2969 = vunpack.c.h.b16 %v841
        %v2970 = vunpack.c.l.b16 %v842
        %v2971 = vunpack.c.h.b16 %v842
        %v2972 = vunpack.c.l.b16 %v843
        %v2973 = vunpack.c.h.b16 %v843
        %v2974 = vunpack.c.l.b16 %v844
        %v2975 = vunpack.c.h.b16 %v844
        %v2976 = vunpack.c.l.b16 %v845
        %v2977 = vunpack.c.h.b16 %v845
        %v2978 = vunpack.c.l.b16 %v846
        %v2979 = vunpack.c.h.b16 %v846
        %v2980 = vunpack.c.l.b16 %v847
        %v2981 = vunpack.c.h.b16 %v847
        %v2982 = vunpack.c.l.b16 %v848
        %v2983 = vunpack.c.h.b16 %v848
        %v2984 = vunpack.c.l.b16 %v849
        %v2985 = vunpack.c.h.b16 %v849
        %v2986 = vunpack.c.l.b16 %v850
        %v2987 = vunpack.c.h.b16 %v850
        %v2988 = vunpack.c.l.b16 %v851
        %v2989 = vunpack.c.h.b16 %v851
        %v2990 = vunpack.c.l.b16 %v852
        %v2991 = vunpack.c.h.b16 %v852
        %v2992 = vunpack.c.l.b16 %v853
        %v2993 = vunpack.c.h.b16 %v853
        %v2994 = vunpack.c.l.b16 %v854
        %v2995 = vunpack.c.h.b16 %v854
        %v2996 = vunpack.c.l.b16 %v855
        %v2997 = vunpack.c.h.b16 %v855
        %v2998 = vunpack.c.l.b16 %v856
        %v2999 = vunpack.c.h.b16 %v856
        %v3000 = vunpack.c.l.b16 %v857
        %v3001 = vunpack.c.h.b16 %v857
        %v3002 = vunpack.c.l.b16 %v858
        %v3003 = vunpack.c.h.b16 %v858
        %v3004 = vunpack.c.l.b16 %v859
        %v3005 = vunpack.c.h.b16 %v859
        %v3006 = vunpack.c.l.b16 %v860
        %v3007 = vunpack.c.h.b16 %v860
        %v3008 = vunpack.c.l.b16 %v861
        %v3009 = vunpack.c.h.b16 %v861
        %v3010 = vunpack.c.l.b16 %v862
        %v3011 = vunpack.c.h.b16 %v862
        %v3012 = vunpack.c.l.b16 %v863
        %v3013 = vunpack.c.h.b16 %v863
        %v3014 = vunpack.c.l.b16 %v864
        %v3015 = vunpack.c.h.b16 %v864
        %v3016 = vunpack.c.l.b16 %v865
        %v3017 = vunpack.c.h.b16 %v865
        %v3018 = vunpack.c.l.b16 %v866
        %v3019 = vunpack.c.h.b16 %v866
        %v3020 = vunpack.c.l.b16 %v867
        %v3021 = vunpack.c.h.b16 %v867
        %v3022 = vunpack.c.l.b16 %v868
        %v3023 = vunpack.c.h.b16 %v868
        %v3024 = vunpack.c.l.b16 %v869
        %v3025 = vunpack.c.h.b16 %v869
        %v3026 = vunpack.c.l.b16 %v870
        %v3027 = vunpack.c.h.b16 %v870
        %v3028 = vunpack.c.l.b16 %v871
        %v3029 = vunpack.c.h.b16 %v871
        %v3030 = vunpack.c.l.b16 %v872
        %v3031 = vunpack.c.h.b16 %v872
        %v3032 = vunpack.c.l.b16 %v873
        %v3033 = vunpack.c.h.b16 %v873
        %v3034 = vunpack.c.l.b16 %v874
        %v3035 = vunpack.c.h.b16 %v874
        %v3036 = vunpack.c.l.b16 %v875
        %v3037 = vunpack.c.h.b16 %v875
        %v3038 = vunpack.c.l.b16 %v876
        %v3039 = vunpack.c.h.b16 %v876
        %v3040 = vunpack.c.l.b16 %v877
        %v3041 = vunpack.c.h.b16 %v877
        %v3042 = vunpack.c.l.b16 %v878
        %v3043 = vunpack.c.h.b16 %v878
        %v3044 = vunpack.c.l.b16 %v879
        %v3045 = vunpack.c.h.b16 %v879
        %v3046 = vunpack.c.l.b16 %v880
        %v3047 = vunpack.c.h.b16 %v880
        %v3048 = vunpack.c.l.b16 %v881
        %v3049 = vunpack.c.h.b16 %v881
        %v3050 = vunpack.c.l.b16 %v882
        %v3051 = vunpack.c.h.b16 %v882
        %v3052 = vunpack.c.l.b16 %v883
        %v3053 = vunpack.c.h.b16 %v883
        %v3054 = vunpack.c.l.b16 %v884
        %v3055 = vunpack.c.h.b16 %v884
        %v3056 = vunpack.c.l.b16 %v885
        %v3057 = vunpack.c.h.b16 %v885
        %v3058 = vunpack.c.l.b16 %v886
        %v3059 = vunpack.c.h.b16 %v886
        %v3060 = vunpack.c.l.b16 %v887
        %v3061 = vunpack.c.h.b16 %v887
        %v3062 = vunpack.c.l.b16 %v888
        %v3063 = vunpack.c.h.b16 %v888
        %v3064 = vunpack.c.l.b16 %v889
        %v3065 = vunpack.c.h.b16 %v889
        %v3066 = vunpack.c.l.b16 %v890
        %v3067 = vunpack.c.h.b16 %v890
        %v3068 = vunpack.c.l.b16 %v891
        %v3069 = vunpack.c.h.b16 %v891
        %v3070 = vunpack.c.l.b16 %v892
        %v3071 = vunpack.c.h.b16 %v892
        %v3072 = vunpack.c.l.b16 %v893
        %v3073 = vunpack.c.h.b16 %v893
        %v3074 = vunpack.c.l.b16 %v894
        %v3075 = vunpack.c.h.b16 %v894
        %v3076 = vunpack.c.l.b16 %v895
        %v3077 = vunpack.c.h.b16 %v895
        %v3078 = vunpack.c.l.b16 %v896
        %v3079 = vunpack.c.h.b16 %v896
        %v3080 = vunpack.c.l.b16 %v897
        %v3081 = vunpack.c.h.b16 %v897
        %v3082 = vunpack.c.l.b16 %v898
        %v3083 = vunpack.c.h.b16 %v898
        %v3084 = vunpack.c.l.b16 %v899
        %v3085 = vunpack.c.h.b16 %v899
        %v3086 = vunpack.c.l.b16 %v900
        %v3087 = vunpack.c.h.b16 %v900
        %v3088 = vunpack.c.l.b16 %v901
        %v3089 = vunpack.c.h.b16 %v901
        %v3090 = vunpack.c.l.b16 %v902
        %v3091 = vunpack.c.h.b16 %v902
        %v3092 = vunpack.c.l.b16 %v903
        %v3093 = vunpack.c.h.b16 %v903
        %v3094 = vunpack.c.l.b16 %v904
        %v3095 = vunpack.c.h.b16 %v904
        %v3096 = vunpack.c.l.b16 %v905
        %v3097 = vunpack.c.h.b16 %v905
        %v3098 = vunpack.c.l.b16 %v906
        %v3099 = vunpack.c.h.b16 %v906
        %v3100 = vunpack.c.l.b16 %v907
        %v3101 = vunpack.c.h.b16 %v907
        %v3102 = vunpack.c.l.b16 %v908
        %v3103 = vunpack.c.h.b16 %v908
        %v3104 = vunpack.c.l.b16 %v909
        %v3105 = vunpack.c.h.b16 %v909
        %v3106 = vunpack.c.l.b16 %v910
        %v3107 = vunpack.c.h.b16 %v910
        %v3108 = vunpack.c.l.b16 %v911
        %v3109 = vunpack.c.h.b16 %v911
        %v3110 = vunpack.c.l.b16 %v912
        %v3111 = vunpack.c.h.b16 %v912
        %v3112 = vunpack.c.l.b16 %v913
        %v3113 = vunpack.c.h.b16 %v913
        %v3114 = vunpack.c.l.b16 %v914
        %v3115 = vunpack.c.h.b16 %v914
        %v3116 = vunpack.c.l.b16 %v915
        %v3117 = vunpack.c.h.b16 %v915
        %v3118 = vunpack.c.l.b16 %v916
        %v3119 = vunpack.c.h.b16 %v916
        %v3120 = vunpack.c.l.b16 %v917
        %v3121 = vunpack.c.h.b16 %v917
        %v3122 = vunpack.c.l.b16 %v918
        %v3123 = vunpack.c.h.b16 %v918
        %v3124 = vunpack.c.l.b16 %v919
        %v3125 = vunpack.c.h.b16 %v919
        %v3126 = vunpack.c.l.b16 %v920
        %v3127 = vunpack.c.h.b16 %v920
        %v3128 = vunpack.c.l.b16 %v921
        %v3129 = vunpack.c.h.b16 %v921
        %v3130 = vunpack.c.l.b16 %v922
        %v3131 = vunpack.c.h.b16 %v922
        %v3132 = vunpack.c.l.b16 %v923
        %v3133 = vunpack.c.h.b16 %v923
        %v3134 = vunpack.c.l.b16 %v924
        %v3135 = vunpack.c.h.b16 %v924
        %v3136 = vunpack.c.l.b16 %v925
        %v3137 = vunpack.c.h.b16 %v925
        %v3138 = vunpack.c.l.b16 %v926
        %v3139 = vunpack.c.h.b16 %v926
        %v3140 = vunpack.c.l.b16 %v927
        %v3141 = vunpack.c.h.b16 %v927
        %v3142 = vunpack.c.l.b16 %v928
        %v3143 = vunpack.c.h.b16 %v928
        %v3144 = vunpack.c.l.b16 %v929
        %v3145 = vunpack.c.h.b16 %v929
        %v3146 = vunpack.c.l.b16 %v930
        %v3147 = vunpack.c.h.b16 %v930
        %v3148 = vunpack.c.l.b16 %v931
        %v3149 = vunpack.c.h.b16 %v931
        %v3150 = vunpack.c.l.b16 %v932
        %v3151 = vunpack.c.h.b16 %v932
        %v3152 = vunpack.c.l.b16 %v933
        %v3153 = vunpack.c.h.b16 %v933
        %v3154 = vunpack.c.l.b16 %v934
        %v3155 = vunpack.c.h.b16 %v934
        %v3156 = vunpack.c.l.b16 %v935
        %v3157 = vunpack.c.h.b16 %v935
        %v3158 = vunpack.c.l.b16 %v936
        %v3159 = vunpack.c.h.b16 %v936
        %v3160 = vunpack.c.l.b16 %v937
        %v3161 = vunpack.c.h.b16 %v937
        %v3162 = vunpack.c.l.b16 %v938
        %v3163 = vunpack.c.h.b16 %v938
        %v3164 = vunpack.c.l.b16 %v939
        %v3165 = vunpack.c.h.b16 %v939
        %v3166 = vunpack.c.l.b16 %v940
        %v3167 = vunpack.c.h.b16 %v940
        %v3168 = vunpack.c.l.b16 %v941
        %v3169 = vunpack.c.h.b16 %v941
        %v3170 = vunpack.c.l.b16 %v942
        %v3171 = vunpack.c.h.b16 %v942
        %v3172 = vunpack.c.l.b16 %v943
        %v3173 = vunpack.c.h.b16 %v943
        %v3174 = vunpack.c.l.b16 %v944
        %v3175 = vunpack.c.h.b16 %v944
        %v3176 = vunpack.c.l.b16 %v945
        %v3177 = vunpack.c.h.b16 %v945
        %v3178 = vunpack.c.l.b16 %v946
        %v3179 = vunpack.c.h.b16 %v946
        %v3180 = vunpack.c.l.b16 %v947
        %v3181 = vunpack.c.h.b16 %v947
        %v3182 = vunpack.c.l.b16 %v948
        %v3183 = vunpack.c.h.b16 %v948
        %v3184 = vunpack.c.l.b16 %v949
        %v3185 = vunpack.c.h.b16 %v949
        %v3186 = vunpack.c.l.b16 %v950
        %v3187 = vunpack.c.h.b16 %v950
        %v3188 = vunpack.c.l.b16 %v951
        %v3189 = vunpack.c.h.b16 %v951
        %v3190 = vunpack.c.l.b16 %v952
        %v3191 = vunpack.c.h.b16 %v952
        %v3192 = vunpack.c.l.b16 %v953
        %v3193 = vunpack.c.h.b16 %v953
        %v3194 = vunpack.c.l.b16 %v954
        %v3195 = vunpack.c.h.b16 %v954
        %v3196 = vunpack.c.l.b16 %v955
        %v3197 = vunpack.c.h.b16 %v955
        %v3198 = vunpack.c.l.b16 %v956
        %v3199 = vunpack.c.h.b16 %v956
        %v3200 = vunpack.c.l.b16 %v957
        %v3201 = vunpack.c.h.b16 %v957
        %v3202 = vunpack.c.l.b16 %v958
        %v3203 = vunpack.c.h.b16 %v958
        %v3204 = vunpack.c.l.b16 %v959
        %v3205 = vunpack.c.h.b16 %v959
        %v3206 = vunpack.c.l.b16 %v960
        %v3207 = vunpack.c.h.b16 %v960
        %v3208 = vunpack.c.l.b16 %v961
        %v3209 = vunpack.c.h.b16 %v961
        %v3210 = vunpack.c.l.b16 %v962
        %v3211 = vunpack.c.h.b16 %v962
        %v3212 = vunpack.c.l.b16 %v963
        %v3213 = vunpack.c.h.b16 %v963
        %v3214 = vunpack.c.l.b16 %v964
        %v3215 = vunpack.c.h.b16 %v964
        %v3216 = vunpack.c.l.b16 %v965
        %v3217 = vunpack.c.h.b16 %v965
        %v3218 = vunpack.c.l.b16 %v966
        %v3219 = vunpack.c.h.b16 %v966
        %v3220 = vunpack.c.l.b16 %v967
        %v3221 = vunpack.c.h.b16 %v967
        %v3222 = vunpack.c.l.b16 %v968
        %v3223 = vunpack.c.h.b16 %v968
        %v3224 = vunpack.c.l.b16 %v969
        %v3225 = vunpack.c.h.b16 %v969
        %v3226 = vunpack.c.l.b16 %v970
        %v3227 = vunpack.c.h.b16 %v970
        %v3228 = vunpack.c.l.b16 %v971
        %v3229 = vunpack.c.h.b16 %v971
        %v3230 = vunpack.c.l.b16 %v972
        %v3231 = vunpack.c.h.b16 %v972
        %v3232 = vunpack.c.l.b16 %v973
        %v3233 = vunpack.c.h.b16 %v973
        %v3234 = vunpack.c.l.b16 %v974
        %v3235 = vunpack.c.h.b16 %v974
        %v3236 = vunpack.c.l.b16 %v975
        %v3237 = vunpack.c.h.b16 %v975
        %v3238 = vunpack.c.l.b16 %v976
        %v3239 = vunpack.c.h.b16 %v976
        %v3240 = vunpack.c.l.b16 %v977
        %v3241 = vunpack.c.h.b16 %v977
        %v3242 = vunpack.c.l.b16 %v978
        %v3243 = vunpack.c.h.b16 %v978
        %v3244 = vunpack.c.l.b16 %v979
        %v3245 = vunpack.c.h.b16 %v979
        %v3246 = vunpack.c.l.b16 %v980
        %v3247 = vunpack.c.h.b16 %v980
        %v3248 = vunpack.c.l.b16 %v981
        %v3249 = vunpack.c.h.b16 %v981
        %v3250 = vunpack.c.l.b16 %v982
        %v3251 = vunpack.c.h.b16 %v982
        %v3252 = vunpack.c.l.b16 %v983
        %v3253 = vunpack.c.h.b16 %v983
        %v3254 = vunpack.c.l.b16 %v984
        %v3255 = vunpack.c.h.b16 %v984
        %v3256 = vunpack.c.l.b16 %v985
        %v3257 = vunpack.c.h.b16 %v985
        %v3258 = vunpack.c.l.b16 %v986
        %v3259 = vunpack.c.h.b16 %v986
        %v3260 = vunpack.c.l.b16 %v987
        %v3261 = vunpack.c.h.b16 %v987
        %v3262 = vunpack.c.l.b16 %v988
        %v3263 = vunpack.c.h.b16 %v988
        %v3264 = vunpack.c.l.b16 %v989
        %v3265 = vunpack.c.h.b16 %v989
        %v3266 = vunpack.c.l.b16 %v990
        %v3267 = vunpack.c.h.b16 %v990
        %v3268 = vunpack.c.l.b16 %v991
        %v3269 = vunpack.c.h.b16 %v991
        %v3270 = vunpack.c.l.b16 %v992
        %v3271 = vunpack.c.h.b16 %v992
        %v3272 = vunpack.c.l.b16 %v993
        %v3273 = vunpack.c.h.b16 %v993
        %v3274 = vunpack.c.l.b16 %v994
        %v3275 = vunpack.c.h.b16 %v994
        %v3276 = vunpack.c.l.b16 %v995
        %v3277 = vunpack.c.h.b16 %v995
        %v3278 = vunpack.c.l.b16 %v996
        %v3279 = vunpack.c.h.b16 %v996
        %v3280 = vunpack.c.l.b16 %v997
        %v3281 = vunpack.c.h.b16 %v997
        %v3282 = vunpack.c.l.b16 %v998
        %v3283 = vunpack.c.h.b16 %v998
        %v3284 = vunpack.c.l.b16 %v999
        %v3285 = vunpack.c.h.b16 %v999
        %v3286 = vunpack.c.l.b16 %v1000
        %v3287 = vunpack.c.h.b16 %v1000
        %v3288 = vunpack.c.l.b16 %v1001
        %v3289 = vunpack.c.h.b16 %v1001
        %v3290 = vunpack.c.l.b16 %v1002
        %v3291 = vunpack.c.h.b16 %v1002
        %v3292 = vunpack.c.l.b16 %v1003
        %v3293 = vunpack.c.h.b16 %v1003
        %v3294 = vunpack.c.l.b16 %v1004
        %v3295 = vunpack.c.h.b16 %v1004
        %v3296 = vunpack.c.l.b16 %v1005
        %v3297 = vunpack.c.h.b16 %v1005
        %v3298 = vunpack.c.l.b16 %v1006
        %v3299 = vunpack.c.h.b16 %v1006
        %v3300 = vunpack.c.l.b16 %v1007
        %v3301 = vunpack.c.h.b16 %v1007
        %v3302 = vunpack.c.l.b16 %v1008
        %v3303 = vunpack.c.h.b16 %v1008
        %v3304 = vunpack.c.l.b16 %v1009
        %v3305 = vunpack.c.h.b16 %v1009
        %v3306 = vunpack.c.l.b16 %v1010
        %v3307 = vunpack.c.h.b16 %v1010
        %v3308 = vunpack.c.l.b16 %v1011
        %v3309 = vunpack.c.h.b16 %v1011
        %v3310 = vunpack.c.l.b16 %v1012
        %v3311 = vunpack.c.h.b16 %v1012
        %v3312 = vunpack.c.l.b16 %v1013
        %v3313 = vunpack.c.h.b16 %v1013
        %v3314 = vunpack.c.l.b16 %v1014
        %v3315 = vunpack.c.h.b16 %v1014
        %v3316 = vunpack.c.l.b16 %v1015
        %v3317 = vunpack.c.h.b16 %v1015
        %v3318 = vunpack.c.l.b16 %v1016
        %v3319 = vunpack.c.h.b16 %v1016
        %v3320 = vunpack.c.l.b16 %v1017
        %v3321 = vunpack.c.h.b16 %v1017
        %v3322 = vunpack.c.l.b16 %v1018
        %v3323 = vunpack.c.h.b16 %v1018
        %v3324 = vunpack.c.l.b16 %v1019
        %v3325 = vunpack.c.h.b16 %v1019
        %v3326 = vunpack.c.l.b16 %v1020
        %v3327 = vunpack.c.h.b16 %v1020
        %v3328 = vunpack.c.l.b16 %v1021
        %v3329 = vunpack.c.h.b16 %v1021
        %v3330 = vunpack.c.l.b16 %v1022
        %v3331 = vunpack.c.h.b16 %v1022
        %v3332 = vunpack.c.l.b16 %v1023
        %v3333 = vunpack.c.h.b16 %v1023
        %v3334 = vunpack.c.l.b16 %v1024
        %v3335 = vunpack.c.h.b16 %v1024
        %v3336 = vunpack.c.l.b16 %v1025
        %v3337 = vunpack.c.h.b16 %v1025
        %v3338 = vunpack.c.l.b16 %v1026
        %v3339 = vunpack.c.h.b16 %v1026
        %v3340 = vunpack.c.l.b16 %v1027
        %v3341 = vunpack.c.h.b16 %v1027
        %v3342 = vunpack.c.l.b16 %v1028
        %v3343 = vunpack.c.h.b16 %v1028
        %v3344 = vunpack.c.l.b16 %v1029
        %v3345 = vunpack.c.h.b16 %v1029
        %v3346 = vunpack.c.l.b16 %v1030
        %v3347 = vunpack.c.h.b16 %v1030
        %v3348 = vunpack.c.l.b16 %v1031
        %v3349 = vunpack.c.h.b16 %v1031
        %v3350 = vunpack.c.l.b16 %v1032
        %v3351 = vunpack.c.h.b16 %v1032
        %v3352 = vunpack.c.l.b16 %v1033
        %v3353 = vunpack.c.h.b16 %v1033
        %v3354 = vunpack.c.l.b16 %v1034
        %v3355 = vunpack.c.h.b16 %v1034
        %v3356 = vunpack.c.l.b16 %v1035
        %v3357 = vunpack.c.h.b16 %v1035
        %v3358 = vunpack.c.l.b16 %v1036
        %v3359 = vunpack.c.h.b16 %v1036
        %v3360 = vunpack.c.l.b16 %v1037
        %v3361 = vunpack.c.h.b16 %v1037
        %v3362 = vunpack.c.l.b16 %v1038
        %v3363 = vunpack.c.h.b16 %v1038
        %v3364 = vunpack.c.l.b16 %v1039
        %v3365 = vunpack.c.h.b16 %v1039
        %v3366 = vunpack.c.l.b16 %v1040
        %v3367 = vunpack.c.h.b16 %v1040
        %v3368 = vunpack.c.l.b16 %v1041
        %v3369 = vunpack.c.h.b16 %v1041
        %v3370 = vunpack.c.l.b16 %v1042
        %v3371 = vunpack.c.h.b16 %v1042
        %v3372 = vunpack.c.l.b16 %v1043
        %v3373 = vunpack.c.h.b16 %v1043
        %v3374 = vunpack.c.l.b16 %v1044
        %v3375 = vunpack.c.h.b16 %v1044
        %v3376 = vunpack.c.l.b16 %v1045
        %v3377 = vunpack.c.h.b16 %v1045
        %v3378 = vunpack.c.l.b16 %v1046
        %v3379 = vunpack.c.h.b16 %v1046
        %v3380 = vunpack.c.l.b16 %v1047
        %v3381 = vunpack.c.h.b16 %v1047
        %v3382 = vunpack.c.l.b16 %v1048
        %v3383 = vunpack.c.h.b16 %v1048
        %v3384 = vunpack.c.l.b16 %v1049
        %v3385 = vunpack.c.h.b16 %v1049
        %v3386 = vunpack.c.l.b16 %v1050
        %v3387 = vunpack.c.h.b16 %v1050
        %v3388 = vunpack.c.l.b16 %v1051
        %v3389 = vunpack.c.h.b16 %v1051
        %v3390 = vunpack.c.l.b16 %v1052
        %v3391 = vunpack.c.h.b16 %v1052
        %v3392 = vunpack.c.l.b16 %v1053
        %v3393 = vunpack.c.h.b16 %v1053
        %v3394 = vunpack.c.l.b16 %v1054
        %v3395 = vunpack.c.h.b16 %v1054
        %v3396 = vunpack.c.l.b16 %v1055
        %v3397 = vunpack.c.h.b16 %v1055
        %v3398 = vunpack.c.l.b16 %v1056
        %v3399 = vunpack.c.h.b16 %v1056
        %v3400 = vunpack.c.l.b16 %v1057
        %v3401 = vunpack.c.h.b16 %v1057
        %v3402 = vunpack.c.l.b16 %v1058
        %v3403 = vunpack.c.h.b16 %v1058
        %v3404 = vunpack.c.l.b16 %v1059
        %v3405 = vunpack.c.h.b16 %v1059
        %v3406 = vunpack.c.l.b16 %v1060
        %v3407 = vunpack.c.h.b16 %v1060
        %v3408 = vunpack.c.l.b16 %v1061
        %v3409 = vunpack.c.h.b16 %v1061
        %v3410 = vunpack.c.l.b16 %v1062
        %v3411 = vunpack.c.h.b16 %v1062
        %v3412 = vunpack.c.l.b16 %v1063
        %v3413 = vunpack.c.h.b16 %v1063
        %v3414 = vunpack.c.l.b16 %v1064
        %v3415 = vunpack.c.h.b16 %v1064
        %v3416 = vunpack.c.l.b16 %v1065
        %v3417 = vunpack.c.h.b16 %v1065
        %v3418 = vunpack.c.l.b16 %v1066
        %v3419 = vunpack.c.h.b16 %v1066
        %v3420 = vunpack.c.l.b16 %v1067
        %v3421 = vunpack.c.h.b16 %v1067
        %v3422 = vunpack.c.l.b16 %v1068
        %v3423 = vunpack.c.h.b16 %v1068
        %v3424 = vunpack.c.l.b16 %v1069
        %v3425 = vunpack.c.h.b16 %v1069
        %v3426 = vunpack.c.l.b16 %v1070
        %v3427 = vunpack.c.h.b16 %v1070
        %v3428 = vunpack.c.l.b16 %v1071
        %v3429 = vunpack.c.h.b16 %v1071
        %v3430 = vunpack.c.l.b16 %v1072
        %v3431 = vunpack.c.h.b16 %v1072
        %v3432 = vunpack.c.l.b16 %v1073
        %v3433 = vunpack.c.h.b16 %v1073
        %v3434 = vunpack.c.l.b16 %v1074
        %v3435 = vunpack.c.h.b16 %v1074
        %v3436 = vunpack.c.l.b16 %v1075
        %v3437 = vunpack.c.h.b16 %v1075
        %v3438 = vunpack.c.l.b16 %v1076
        %v3439 = vunpack.c.h.b16 %v1076
        %v3440 = vunpack.c.l.b16 %v1077
        %v3441 = vunpack.c.h.b16 %v1077
        %v3442 = vpack.c.b16 %v1914, %v1906
        %v3443 = vpack.c.b16 %v1915, %v1907
        %v3444 = vpack.c.b16 %v1916, %v1908
        %v3445 = vpack.c.b16 %v1917, %v1909
        %v3446 = vpack.c.b16 %v1918, %v1910
        %v3447 = vpack.c.b16 %v1919, %v1911
        %v3448 = vpack.c.b16 %v1920, %v1912
        %v3449 = vpack.c.b16 %v1921, %v1913
        %v3450 = vpack.c.b16 %v1930, %v1922
        %v3451 = vpack.c.b16 %v1931, %v1923
        %v3452 = vpack.c.b16 %v1932, %v1924
        %v3453 = vpack.c.b16 %v1933, %v1925
        %v3454 = vpack.c.b16 %v1934, %v1926
        %v3455 = vpack.c.b16 %v1935, %v1927
        %v3456 = vpack.c.b16 %v1936, %v1928
        %v3457 = vpack.c.b16 %v1937, %v1929
        %v3458 = vpack.c.b16 %v1946, %v1938
        %v3459 = vpack.c.b16 %v1947, %v1939
        %v3460 = vpack.c.b16 %v1948, %v1940
        %v3461 = vpack.c.b16 %v1949, %v1941
        %v3462 = vpack.c.b16 %v1950, %v1942
        %v3463 = vpack.c.b16 %v1951, %v1943
        %v3464 = vpack.c.b16 %v1952, %v1944
        %v3465 = vpack.c.b16 %v1953, %v1945
        %v3466 = vpack.c.b16 %v1962, %v1954
        %v3467 = vpack.c.b16 %v1963, %v1955
        %v3468 = vpack.c.b16 %v1964, %v1956
        %v3469 = vpack.c.b16 %v1965, %v1957
        %v3470 = vpack.c.b16 %v1966, %v1958
        %v3471 = vpack.c.b16 %v1967, %v1959
        %v3472 = vpack.c.b16 %v1968, %v1960
        %v3473 = vpack.c.b16 %v1969, %v1961
        %v3474 = vpack.c.b16 %v1978, %v1970
        %v3475 = vpack.c.b16 %v1979, %v1971
        %v3476 = vpack.c.b16 %v1980, %v1972
        %v3477 = vpack.c.b16 %v1981, %v1973
        %v3478 = vpack.c.b16 %v1982, %v1974
        %v3479 = vpack.c.b16 %v1983, %v1975
        %v3480 = vpack.c.b16 %v1984, %v1976
        %v3481 = vpack.c.b16 %v1985, %v1977
        %v3482 = vpack.c.b16 %v1994, %v1986
        %v3483 = vpack.c.b16 %v1995, %v1987
        %v3484 = vpack.c.b16 %v1996, %v1988
        %v3485 = vpack.c.b16 %v1997, %v1989
        %v3486 = vpack.c.b16 %v1998, %v1990
        %v3487 = vpack.c.b16 %v1999, %v1991
        %v3488 = vpack.c.b16 %v2000, %v1992
        %v3489 = vpack.c.b16 %v2001, %v1993
        %v3490 = vpack.c.b16 %v2010, %v2002
        %v3491 = vpack.c.b16 %v2011, %v2003
        %v3492 = vpack.c.b16 %v2012, %v2004
        %v3493 = vpack.c.b16 %v2013, %v2005
        %v3494 = vpack.c.b16 %v2014, %v2006
        %v3495 = vpack.c.b16 %v2015, %v2007
        %v3496 = vpack.c.b16 %v2016, %v2008
        %v3497 = vpack.c.b16 %v2017, %v2009
        %v3498 = vpack.c.b16 %v2026, %v2018
        %v3499 = vpack.c.b16 %v2027, %v2019
        %v3500 = vpack.c.b16 %v2028, %v2020
        %v3501 = vpack.c.b16 %v2029, %v2021
        %v3502 = vpack.c.b16 %v2030, %v2022
        %v3503 = vpack.c.b16 %v2031, %v2023
        %v3504 = vpack.c.b16 %v2032, %v2024
        %v3505 = vpack.c.b16 %v2033, %v2025
        %v3506 = vpack.c.b16 %v2042, %v2034
        %v3507 = vpack.c.b16 %v2043, %v2035
        %v3508 = vpack.c.b16 %v2044, %v2036
        %v3509 = vpack.c.b16 %v2045, %v2037
        %v3510 = vpack.c.b16 %v2046, %v2038
        %v3511 = vpack.c.b16 %v2047, %v2039
        %v3512 = vpack.c.b16 %v2048, %v2040
        %v3513 = vpack.c.b16 %v2049, %v2041
        %v3514 = vpack.c.b16 %v2058, %v2050
        %v3515 = vpack.c.b16 %v2059, %v2051
        %v3516 = vpack.c.b16 %v2060, %v2052
        %v3517 = vpack.c.b16 %v2061, %v2053
        %v3518 = vpack.c.b16 %v2062, %v2054
        %v3519 = vpack.c.b16 %v2063, %v2055
        %v3520 = vpack.c.b16 %v2064, %v2056
        %v3521 = vpack.c.b16 %v2065, %v2057
        %v3522 = vpack.c.b16 %v2074, %v2066
        %v3523 = vpack.c.b16 %v2075, %v2067
        %v3524 = vpack.c.b16 %v2076, %v2068
        %v3525 = vpack.c.b16 %v2077, %v2069
        %v3526 = vpack.c.b16 %v2078, %v2070
        %v3527 = vpack.c.b16 %v2079, %v2071
        %v3528 = vpack.c.b16 %v2080, %v2072
        %v3529 = vpack.c.b16 %v2081, %v2073
        %v3530 = vpack.c.b16 %v2090, %v2082
        %v3531 = vpack.c.b16 %v2091, %v2083
        %v3532 = vpack.c.b16 %v2092, %v2084
        %v3533 = vpack.c.b16 %v2093, %v2085
        %v3534 = vpack.c.b16 %v2094, %v2086
        %v3535 = vpack.c.b16 %v2095, %v2087
        %v3536 = vpack.c.b16 %v2096, %v2088
        %v3537 = vpack.c.b16 %v2097, %v2089
        %v3538 = vpack.c.b16 %v2106, %v2098
        %v3539 = vpack.c.b16 %v2107, %v2099
        %v3540 = vpack.c.b16 %v2108, %v2100
        %v3541 = vpack.c.b16 %v2109, %v2101
        %v3542 = vpack.c.b16 %v2110, %v2102
        %v3543 = vpack.c.b16 %v2111, %v2103
        %v3544 = vpack.c.b16 %v2112, %v2104
        %v3545 = vpack.c.b16 %v2113, %v2105
        %v3546 = vpack.c.b16 %v2122, %v2114
        %v3547 = vpack.c.b16 %v2123, %v2115
        %v3548 = vpack.c.b16 %v2124, %v2116
        %v3549 = vpack.c.b16 %v2125, %v2117
        %v3550 = vpack.c.b16 %v2126, %v2118
        %v3551 = vpack.c.b16 %v2127, %v2119
        %v3552 = vpack.c.b16 %v2128, %v2120
        %v3553 = vpack.c.b16 %v2129, %v2121
        %v3554 = vpack.c.b16 %v2138, %v2130
        %v3555 = vpack.c.b16 %v2139, %v2131
        %v3556 = vpack.c.b16 %v2140, %v2132
        %v3557 = vpack.c.b16 %v2141, %v2133
        %v3558 = vpack.c.b16 %v2142, %v2134
        %v3559 = vpack.c.b16 %v2143, %v2135
        %v3560 = vpack.c.b16 %v2144, %v2136
        %v3561 = vpack.c.b16 %v2145, %v2137
        %v3562 = vpack.c.b16 %v2154, %v2146
        %v3563 = vpack.c.b16 %v2155, %v2147
        %v3564 = vpack.c.b16 %v2156, %v2148
        %v3565 = vpack.c.b16 %v2157, %v2149
        %v3566 = vpack.c.b16 %v2158, %v2150
        %v3567 = vpack.c.b16 %v2159, %v2151
        %v3568 = vpack.c.b16 %v2160, %v2152
        %v3569 = vpack.c.b16 %v2161, %v2153
        %v3570 = vpack.c.b16 %v2170, %v2162
        %v3571 = vpack.c.b16 %v2171, %v2163
        %v3572 = vpack.c.b16 %v2172, %v2164
        %v3573 = vpack.c.b16 %v2173, %v2165
        %v3574 = vpack.c.b16 %v2174, %v2166
        %v3575 = vpack.c.b16 %v2175, %v2167
        %v3576 = vpack.c.b16 %v2176, %v2168
        %v3577 = vpack.c.b16 %v2177, %v2169
        %v3578 = vpack.c.b16 %v2186, %v2178
        %v3579 = vpack.c.b16 %v2187, %v2179
        %v3580 = vpack.c.b16 %v2188, %v2180
        %v3581 = vpack.c.b16 %v2189, %v2181
        %v3582 = vpack.c.b16 %v2190, %v2182
        %v3583 = vpack.c.b16 %v2191, %v2183
        %v3584 = vpack.c.b16 %v2192, %v2184
        %v3585 = vpack.c.b16 %v2193, %v2185
        %v3586 = vpack.c.b16 %v2202, %v2194
        %v3587 = vpack.c.b16 %v2203, %v2195
        %v3588 = vpack.c.b16 %v2204, %v2196
        %v3589 = vpack.c.b16 %v2205, %v2197
        %v3590 = vpack.c.b16 %v2206, %v2198
        %v3591 = vpack.c.b16 %v2207, %v2199
        %v3592 = vpack.c.b16 %v2208, %v2200
        %v3593 = vpack.c.b16 %v2209, %v2201
        %v3594 = vpack.c.b16 %v2218, %v2210
        %v3595 = vpack.c.b16 %v2219, %v2211
        %v3596 = vpack.c.b16 %v2220, %v2212
        %v3597 = vpack.c.b16 %v2221, %v2213
        %v3598 = vpack.c.b16 %v2222, %v2214
        %v3599 = vpack.c.b16 %v2223, %v2215
        %v3600 = vpack.c.b16 %v2224, %v2216
        %v3601 = vpack.c.b16 %v2225, %v2217
        %v3602 = vpack.c.b16 %v2234, %v2226
        %v3603 = vpack.c.b16 %v2235, %v2227
        %v3604 = vpack.c.b16 %v2236, %v2228
        %v3605 = vpack.c.b16 %v2237, %v2229
        %v3606 = vpack.c.b16 %v2238, %v2230
        %v3607 = vpack.c.b16 %v2239, %v2231
        %v3608 = vpack.c.b16 %v2240, %v2232
        %v3609 = vpack.c.b16 %v2241, %v2233
        %v3610 = vpack.c.b16 %v2250, %v2242
        %v3611 = vpack.c.b16 %v2251, %v2243
        %v3612 = vpack.c.b16 %v2252, %v2244
        %v3613 = vpack.c.b16 %v2253, %v2245
        %v3614 = vpack.c.b16 %v2254, %v2246
        %v3615 = vpack.c.b16 %v2255, %v2247
        %v3616 = vpack.c.b16 %v2256, %v2248
        %v3617 = vpack.c.b16 %v2257, %v2249
        %v3618 = vpack.c.b16 %v2266, %v2258
        %v3619 = vpack.c.b16 %v2267, %v2259
        %v3620 = vpack.c.b16 %v2268, %v2260
        %v3621 = vpack.c.b16 %v2269, %v2261
        %v3622 = vpack.c.b16 %v2270, %v2262
        %v3623 = vpack.c.b16 %v2271, %v2263
        %v3624 = vpack.c.b16 %v2272, %v2264
        %v3625 = vpack.c.b16 %v2273, %v2265
        %v3626 = vpack.c.b16 %v2282, %v2274
        %v3627 = vpack.c.b16 %v2283, %v2275
        %v3628 = vpack.c.b16 %v2284, %v2276
        %v3629 = vpack.c.b16 %v2285, %v2277
        %v3630 = vpack.c.b16 %v2286, %v2278
        %v3631 = vpack.c.b16 %v2287, %v2279
        %v3632 = vpack.c.b16 %v2288, %v2280
        %v3633 = vpack.c.b16 %v2289, %v2281
        %v3634 = vpack.c.b16 %v2298, %v2290
        %v3635 = vpack.c.b16 %v2299, %v2291
        %v3636 = vpack.c.b16 %v2300, %v2292
        %v3637 = vpack.c.b16 %v2301, %v2293
        %v3638 = vpack.c.b16 %v2302, %v2294
        %v3639 = vpack.c.b16 %v2303, %v2295
        %v3640 = vpack.c.b16 %v2304, %v2296
        %v3641 = vpack.c.b16 %v2305, %v2297
        %v3642 = vpack.c.b16 %v2314, %v2306
        %v3643 = vpack.c.b16 %v2315, %v2307
        %v3644 = vpack.c.b16 %v2316, %v2308
        %v3645 = vpack.c.b16 %v2317, %v2309
        %v3646 = vpack.c.b16 %v2318, %v2310
        %v3647 = vpack.c.b16 %v2319, %v2311
        %v3648 = vpack.c.b16 %v2320, %v2312
        %v3649 = vpack.c.b16 %v2321, %v2313
        %v3650 = vpack.c.b16 %v2330, %v2322
        %v3651 = vpack.c.b16 %v2331, %v2323
        %v3652 = vpack.c.b16 %v2332, %v2324
        %v3653 = vpack.c.b16 %v2333, %v2325
        %v3654 = vpack.c.b16 %v2334, %v2326
        %v3655 = vpack.c.b16 %v2335, %v2327
        %v3656 = vpack.c.b16 %v2336, %v2328
        %v3657 = vpack.c.b16 %v2337, %v2329
        %v3658 = vpack.c.b16 %v2346, %v2338
        %v3659 = vpack.c.b16 %v2347, %v2339
        %v3660 = vpack.c.b16 %v2348, %v2340
        %v3661 = vpack.c.b16 %v2349, %v2341
        %v3662 = vpack.c.b16 %v2350, %v2342
        %v3663 = vpack.c.b16 %v2351, %v2343
        %v3664 = vpack.c.b16 %v2352, %v2344
        %v3665 = vpack.c.b16 %v2353, %v2345
        %v3666 = vpack.c.b16 %v2362, %v2354
        %v3667 = vpack.c.b16 %v2363, %v2355
        %v3668 = vpack.c.b16 %v2364, %v2356
        %v3669 = vpack.c.b16 %v2365, %v2357
        %v3670 = vpack.c.b16 %v2366, %v2358
        %v3671 = vpack.c.b16 %v2367, %v2359
        %v3672 = vpack.c.b16 %v2368, %v2360
        %v3673 = vpack.c.b16 %v2369, %v2361
        %v3674 = vpack.c.b16 %v2378, %v2370
        %v3675 = vpack.c.b16 %v2379, %v2371
        %v3676 = vpack.c.b16 %v2380, %v2372
        %v3677 = vpack.c.b16 %v2381, %v2373
        %v3678 = vpack.c.b16 %v2382, %v2374
        %v3679 = vpack.c.b16 %v2383, %v2375
        %v3680 = vpack.c.b16 %v2384, %v2376
        %v3681 = vpack.c.b16 %v2385, %v2377
        %v3682 = vpack.c.b16 %v2394, %v2386
        %v3683 = vpack.c.b16 %v2395, %v2387
        %v3684 = vpack.c.b16 %v2396, %v2388
        %v3685 = vpack.c.b16 %v2397, %v2389
        %v3686 = vpack.c.b16 %v2398, %v2390
        %v3687 = vpack.c.b16 %v2399, %v2391
        %v3688 = vpack.c.b16 %v2400, %v2392
        %v3689 = vpack.c.b16 %v2401, %v2393
        %v3690 = vpack.c.b16 %v2410, %v2402
        %v3691 = vpack.c.b16 %v2411, %v2403
        %v3692 = vpack.c.b16 %v2412, %v2404
        %v3693 = vpack.c.b16 %v2413, %v2405
        %v3694 = vpack.c.b16 %v2414, %v2406
        %v3695 = vpack.c.b16 %v2415, %v2407
        %v3696 = vpack.c.b16 %v2416, %v2408
        %v3697 = vpack.c.b16 %v2417, %v2409
        %v3698 = vpack.c.b16 %v2426, %v2418
        %v3699 = vpack.c.b16 %v2427, %v2419
        %v3700 = vpack.c.b16 %v2428, %v2420
        %v3701 = vpack.c.b16 %v2429, %v2421
        %v3702 = vpack.c.b16 %v2430, %v2422
        %v3703 = vpack.c.b16 %v2431, %v2423
        %v3704 = vpack.c.b16 %v2432, %v2424
        %v3705 = vpack.c.b16 %v2433, %v2425
        %v3706 = vpack.c.b16 %v2442, %v2434
        %v3707 = vpack.c.b16 %v2443, %v2435
        %v3708 = vpack.c.b16 %v2444, %v2436
        %v3709 = vpack.c.b16 %v2445, %v2437
        %v3710 = vpack.c.b16 %v2446, %v2438
        %v3711 = vpack.c.b16 %v2447, %v2439
        %v3712 = vpack.c.b16 %v2448, %v2440
        %v3713 = vpack.c.b16 %v2449, %v2441
        %v3714 = vpack.c.b16 %v2458, %v2450
        %v3715 = vpack.c.b16 %v2459, %v2451
        %v3716 = vpack.c.b16 %v2460, %v2452
        %v3717 = vpack.c.b16 %v2461, %v2453
        %v3718 = vpack.c.b16 %v2462, %v2454
        %v3719 = vpack.c.b16 %v2463, %v2455
        %v3720 = vpack.c.b16 %v2464, %v2456
        %v3721 = vpack.c.b16 %v2465, %v2457
        %v3722 = vpack.c.b16 %v2474, %v2466
        %v3723 = vpack.c.b16 %v2475, %v2467
        %v3724 = vpack.c.b16 %v2476, %v2468
        %v3725 = vpack.c.b16 %v2477, %v2469
        %v3726 = vpack.c.b16 %v2478, %v2470
        %v3727 = vpack.c.b16 %v2479, %v2471
        %v3728 = vpack.c.b16 %v2480, %v2472
        %v3729 = vpack.c.b16 %v2481, %v2473
        %v3730 = vpack.c.b16 %v2490, %v2482
        %v3731 = vpack.c.b16 %v2491, %v2483
        %v3732 = vpack.c.b16 %v2492, %v2484
        %v3733 = vpack.c.b16 %v2493, %v2485
        %v3734 = vpack.c.b16 %v2494, %v2486
        %v3735 = vpack.c.b16 %v2495, %v2487
        %v3736 = vpack.c.b16 %v2496, %v2488
        %v3737 = vpack.c.b16 %v2497, %v2489
        %v3738 = vpack.c.b16 %v2506, %v2498
        %v3739 = vpack.c.b16 %v2507, %v2499
        %v3740 = vpack.c.b16 %v2508, %v2500
        %v3741 = vpack.c.b16 %v2509, %v2501
        %v3742 = vpack.c.b16 %v2510, %v2502
        %v3743 = vpack.c.b16 %v2511, %v2503
        %v3744 = vpack.c.b16 %v2512, %v2504
        %v3745 = vpack.c.b16 %v2513, %v2505
        %v3746 = vpack.c.b16 %v2522, %v2514
        %v3747 = vpack.c.b16 %v2523, %v2515
        %v3748 = vpack.c.b16 %v2524, %v2516
        %v3749 = vpack.c.b16 %v2525, %v2517
        %v3750 = vpack.c.b16 %v2526, %v2518
        %v3751 = vpack.c.b16 %v2527, %v2519
        %v3752 = vpack.c.b16 %v2528, %v2520
        %v3753 = vpack.c.b16 %v2529, %v2521
        %v3754 = vpack.c.b16 %v2538, %v2530
        %v3755 = vpack.c.b16 %v2539, %v2531
        %v3756 = vpack.c.b16 %v2540, %v2532
        %v3757 = vpack.c.b16 %v2541, %v2533
        %v3758 = vpack.c.b16 %v2542, %v2534
        %v3759 = vpack.c.b16 %v2543, %v2535
        %v3760 = vpack.c.b16 %v2544, %v2536
        %v3761 = vpack.c.b16 %v2545, %v2537
        %v3762 = vpack.c.b16 %v2554, %v2546
        %v3763 = vpack.c.b16 %v2555, %v2547
        %v3764 = vpack.c.b16 %v2556, %v2548
        %v3765 = vpack.c.b16 %v2557, %v2549
        %v3766 = vpack.c.b16 %v2558, %v2550
        %v3767 = vpack.c.b16 %v2559, %v2551
        %v3768 = vpack.c.b16 %v2560, %v2552
        %v3769 = vpack.c.b16 %v2561, %v2553
        %v3770 = vpack.c.b16 %v2570, %v2562
        %v3771 = vpack.c.b16 %v2571, %v2563
        %v3772 = vpack.c.b16 %v2572, %v2564
        %v3773 = vpack.c.b16 %v2573, %v2565
        %v3774 = vpack.c.b16 %v2574, %v2566
        %v3775 = vpack.c.b16 %v2575, %v2567
        %v3776 = vpack.c.b16 %v2576, %v2568
        %v3777 = vpack.c.b16 %v2577, %v2569
        %v3778 = vpack.c.b16 %v2586, %v2578
        %v3779 = vpack.c.b16 %v2587, %v2579
        %v3780 = vpack.c.b16 %v2588, %v2580
        %v3781 = vpack.c.b16 %v2589, %v2581
        %v3782 = vpack.c.b16 %v2590, %v2582
        %v3783 = vpack.c.b16 %v2591, %v2583
        %v3784 = vpack.c.b16 %v2592, %v2584
        %v3785 = vpack.c.b16 %v2593, %v2585
        %v3786 = vpack.c.b16 %v2602, %v2594
        %v3787 = vpack.c.b16 %v2603, %v2595
        %v3788 = vpack.c.b16 %v2604, %v2596
        %v3789 = vpack.c.b16 %v2605, %v2597
        %v3790 = vpack.c.b16 %v2606, %v2598
        %v3791 = vpack.c.b16 %v2607, %v2599
        %v3792 = vpack.c.b16 %v2608, %v2600
        %v3793 = vpack.c.b16 %v2609, %v2601
        %v3794 = vpack.c.b16 %v2618, %v2610
        %v3795 = vpack.c.b16 %v2619, %v2611
        %v3796 = vpack.c.b16 %v2620, %v2612
        %v3797 = vpack.c.b16 %v2621, %v2613
        %v3798 = vpack.c.b16 %v2622, %v2614
        %v3799 = vpack.c.b16 %v2623, %v2615
        %v3800 = vpack.c.b16 %v2624, %v2616
        %v3801 = vpack.c.b16 %v2625, %v2617
        %v3802 = vpack.c.b16 %v2634, %v2626
        %v3803 = vpack.c.b16 %v2635, %v2627
        %v3804 = vpack.c.b16 %v2636, %v2628
        %v3805 = vpack.c.b16 %v2637, %v2629
        %v3806 = vpack.c.b16 %v2638, %v2630
        %v3807 = vpack.c.b16 %v2639, %v2631
        %v3808 = vpack.c.b16 %v2640, %v2632
        %v3809 = vpack.c.b16 %v2641, %v2633
        %v3810 = vpack.c.b16 %v2650, %v2642
        %v3811 = vpack.c.b16 %v2651, %v2643
        %v3812 = vpack.c.b16 %v2652, %v2644
        %v3813 = vpack.c.b16 %v2653, %v2645
        %v3814 = vpack.c.b16 %v2654, %v2646
        %v3815 = vpack.c.b16 %v2655, %v2647
        %v3816 = vpack.c.b16 %v2656, %v2648
        %v3817 = vpack.c.b16 %v2657, %v2649
        %v3818 = vpack.c.b16 %v2666, %v2658
        %v3819 = vpack.c.b16 %v2667, %v2659
        %v3820 = vpack.c.b16 %v2668, %v2660
        %v3821 = vpack.c.b16 %v2669, %v2661
        %v3822 = vpack.c.b16 %v2670, %v2662
        %v3823 = vpack.c.b16 %v2671, %v2663
        %v3824 = vpack.c.b16 %v2672, %v2664
        %v3825 = vpack.c.b16 %v2673, %v2665
        %v3826 = vpack.c.b16 %v2682, %v2674
        %v3827 = vpack.c.b16 %v2683, %v2675
        %v3828 = vpack.c.b16 %v2684, %v2676
        %v3829 = vpack.c.b16 %v2685, %v2677
        %v3830 = vpack.c.b16 %v2686, %v2678
        %v3831 = vpack.c.b16 %v2687, %v2679
        %v3832 = vpack.c.b16 %v2688, %v2680
        %v3833 = vpack.c.b16 %v2689, %v2681
        %v3834 = vpack.c.b16 %v2698, %v2690
        %v3835 = vpack.c.b16 %v2699, %v2691
        %v3836 = vpack.c.b16 %v2700, %v2692
        %v3837 = vpack.c.b16 %v2701, %v2693
        %v3838 = vpack.c.b16 %v2702, %v2694
        %v3839 = vpack.c.b16 %v2703, %v2695
        %v3840 = vpack.c.b16 %v2704, %v2696
        %v3841 = vpack.c.b16 %v2705, %v2697
        %v3842 = vpack.c.b16 %v2714, %v2706
        %v3843 = vpack.c.b16 %v2715, %v2707
        %v3844 = vpack.c.b16 %v2716, %v2708
        %v3845 = vpack.c.b16 %v2717, %v2709
        %v3846 = vpack.c.b16 %v2718, %v2710
        %v3847 = vpack.c.b16 %v2719, %v2711
        %v3848 = vpack.c.b16 %v2720, %v2712
        %v3849 = vpack.c.b16 %v2721, %v2713
        %v3850 = vpack.c.b16 %v2730, %v2722
        %v3851 = vpack.c.b16 %v2731, %v2723
        %v3852 = vpack.c.b16 %v2732, %v2724
        %v3853 = vpack.c.b16 %v2733, %v2725
        %v3854 = vpack.c.b16 %v2734, %v2726
        %v3855 = vpack.c.b16 %v2735, %v2727
        %v3856 = vpack.c.b16 %v2736, %v2728
        %v3857 = vpack.c.b16 %v2737, %v2729
        %v3858 = vpack.c.b16 %v2746, %v2738
        %v3859 = vpack.c.b16 %v2747, %v2739
        %v3860 = vpack.c.b16 %v2748, %v2740
        %v3861 = vpack.c.b16 %v2749, %v2741
        %v3862 = vpack.c.b16 %v2750, %v2742
        %v3863 = vpack.c.b16 %v2751, %v2743
        %v3864 = vpack.c.b16 %v2752, %v2744
        %v3865 = vpack.c.b16 %v2753, %v2745
        %v3866 = vpack.c.b16 %v2762, %v2754
        %v3867 = vpack.c.b16 %v2763, %v2755
        %v3868 = vpack.c.b16 %v2764, %v2756
        %v3869 = vpack.c.b16 %v2765, %v2757
        %v3870 = vpack.c.b16 %v2766, %v2758
        %v3871 = vpack.c.b16 %v2767, %v2759
        %v3872 = vpack.c.b16 %v2768, %v2760
        %v3873 = vpack.c.b16 %v2769, %v2761
        %v3874 = vpack.c.b16 %v2778, %v2770
        %v3875 = vpack.c.b16 %v2779, %v2771
        %v3876 = vpack.c.b16 %v2780, %v2772
        %v3877 = vpack.c.b16 %v2781, %v2773
        %v3878 = vpack.c.b16 %v2782, %v2774
        %v3879 = vpack.c.b16 %v2783, %v2775
        %v3880 = vpack.c.b16 %v2784, %v2776
        %v3881 = vpack.c.b16 %v2785, %v2777
        %v3882 = vpack.c.b16 %v2794, %v2786
        %v3883 = vpack.c.b16 %v2795, %v2787
        %v3884 = vpack.c.b16 %v2796, %v2788
        %v3885 = vpack.c.b16 %v2797, %v2789
        %v3886 = vpack.c.b16 %v2798, %v2790
        %v3887 = vpack.c.b16 %v2799, %v2791
        %v3888 = vpack.c.b16 %v2800, %v2792
        %v3889 = vpack.c.b16 %v2801, %v2793
        %v3890 = vpack.c.b16 %v2810, %v2802
        %v3891 = vpack.c.b16 %v2811, %v2803
        %v3892 = vpack.c.b16 %v2812, %v2804
        %v3893 = vpack.c.b16 %v2813, %v2805
        %v3894 = vpack.c.b16 %v2814, %v2806
        %v3895 = vpack.c.b16 %v2815, %v2807
        %v3896 = vpack.c.b16 %v2816, %v2808
        %v3897 = vpack.c.b16 %v2817, %v2809
        %v3898 = vpack.c.b16 %v2826, %v2818
        %v3899 = vpack.c.b16 %v2827, %v2819
        %v3900 = vpack.c.b16 %v2828, %v2820
        %v3901 = vpack.c.b16 %v2829, %v2821
        %v3902 = vpack.c.b16 %v2830, %v2822
        %v3903 = vpack.c.b16 %v2831, %v2823
        %v3904 = vpack.c.b16 %v2832, %v2824
        %v3905 = vpack.c.b16 %v2833, %v2825
        %v3906 = vpack.c.b16 %v2842, %v2834
        %v3907 = vpack.c.b16 %v2843, %v2835
        %v3908 = vpack.c.b16 %v2844, %v2836
        %v3909 = vpack.c.b16 %v2845, %v2837
        %v3910 = vpack.c.b16 %v2846, %v2838
        %v3911 = vpack.c.b16 %v2847, %v2839
        %v3912 = vpack.c.b16 %v2848, %v2840
        %v3913 = vpack.c.b16 %v2849, %v2841
        %v3914 = vpack.c.b16 %v2858, %v2850
        %v3915 = vpack.c.b16 %v2859, %v2851
        %v3916 = vpack.c.b16 %v2860, %v2852
        %v3917 = vpack.c.b16 %v2861, %v2853
        %v3918 = vpack.c.b16 %v2862, %v2854
        %v3919 = vpack.c.b16 %v2863, %v2855
        %v3920 = vpack.c.b16 %v2864, %v2856
        %v3921 = vpack.c.b16 %v2865, %v2857
        %v3922 = vpack.c.b16 %v2874, %v2866
        %v3923 = vpack.c.b16 %v2875, %v2867
        %v3924 = vpack.c.b16 %v2876, %v2868
        %v3925 = vpack.c.b16 %v2877, %v2869
        %v3926 = vpack.c.b16 %v2878, %v2870
        %v3927 = vpack.c.b16 %v2879, %v2871
        %v3928 = vpack.c.b16 %v2880, %v2872
        %v3929 = vpack.c.b16 %v2881, %v2873
        %v3930 = vpack.c.b16 %v2890, %v2882
        %v3931 = vpack.c.b16 %v2891, %v2883
        %v3932 = vpack.c.b16 %v2892, %v2884
        %v3933 = vpack.c.b16 %v2893, %v2885
        %v3934 = vpack.c.b16 %v2894, %v2886
        %v3935 = vpack.c.b16 %v2895, %v2887
        %v3936 = vpack.c.b16 %v2896, %v2888
        %v3937 = vpack.c.b16 %v2897, %v2889
        %v3938 = vpack.c.b16 %v2906, %v2898
        %v3939 = vpack.c.b16 %v2907, %v2899
        %v3940 = vpack.c.b16 %v2908, %v2900
        %v3941 = vpack.c.b16 %v2909, %v2901
        %v3942 = vpack.c.b16 %v2910, %v2902
        %v3943 = vpack.c.b16 %v2911, %v2903
        %v3944 = vpack.c.b16 %v2912, %v2904
        %v3945 = vpack.c.b16 %v2913, %v2905
        %v3946 = vpack.c.b16 %v2922, %v2914
        %v3947 = vpack.c.b16 %v2923, %v2915
        %v3948 = vpack.c.b16 %v2924, %v2916
        %v3949 = vpack.c.b16 %v2925, %v2917
        %v3950 = vpack.c.b16 %v2926, %v2918
        %v3951 = vpack.c.b16 %v2927, %v2919
        %v3952 = vpack.c.b16 %v2928, %v2920
        %v3953 = vpack.c.b16 %v2929, %v2921
        %v3954 = vpack.c.b16 %v2938, %v2930
        %v3955 = vpack.c.b16 %v2939, %v2931
        %v3956 = vpack.c.b16 %v2940, %v2932
        %v3957 = vpack.c.b16 %v2941, %v2933
        %v3958 = vpack.c.b16 %v2942, %v2934
        %v3959 = vpack.c.b16 %v2943, %v2935
        %v3960 = vpack.c.b16 %v2944, %v2936
        %v3961 = vpack.c.b16 %v2945, %v2937
        %v3962 = vpack.c.b16 %v2954, %v2946
        %v3963 = vpack.c.b16 %v2955, %v2947
        %v3964 = vpack.c.b16 %v2956, %v2948
        %v3965 = vpack.c.b16 %v2957, %v2949
        %v3966 = vpack.c.b16 %v2958, %v2950
        %v3967 = vpack.c.b16 %v2959, %v2951
        %v3968 = vpack.c.b16 %v2960, %v2952
        %v3969 = vpack.c.b16 %v2961, %v2953
        %v3970 = vpack.c.b16 %v2970, %v2962
        %v3971 = vpack.c.b16 %v2971, %v2963
        %v3972 = vpack.c.b16 %v2972, %v2964
        %v3973 = vpack.c.b16 %v2973, %v2965
        %v3974 = vpack.c.b16 %v2974, %v2966
        %v3975 = vpack.c.b16 %v2975, %v2967
        %v3976 = vpack.c.b16 %v2976, %v2968
        %v3977 = vpack.c.b16 %v2977, %v2969
        %v3978 = vpack.c.b16 %v2986, %v2978
        %v3979 = vpack.c.b16 %v2987, %v2979
        %v3980 = vpack.c.b16 %v2988, %v2980
        %v3981 = vpack.c.b16 %v2989, %v2981
        %v3982 = vpack.c.b16 %v2990, %v2982
        %v3983 = vpack.c.b16 %v2991, %v2983
        %v3984 = vpack.c.b16 %v2992, %v2984
        %v3985 = vpack.c.b16 %v2993, %v2985
        %v3986 = vpack.c.b16 %v3002, %v2994
        %v3987 = vpack.c.b16 %v3003, %v2995
        %v3988 = vpack.c.b16 %v3004, %v2996
        %v3989 = vpack.c.b16 %v3005, %v2997
        %v3990 = vpack.c.b16 %v3006, %v2998
        %v3991 = vpack.c.b16 %v3007, %v2999
        %v3992 = vpack.c.b16 %v3008, %v3000
        %v3993 = vpack.c.b16 %v3009, %v3001
        %v3994 = vpack.c.b16 %v3018, %v3010
        %v3995 = vpack.c.b16 %v3019, %v3011
        %v3996 = vpack.c.b16 %v3020, %v3012
        %v3997 = vpack.c.b16 %v3021, %v3013
        %v3998 = vpack.c.b16 %v3022, %v3014
        %v3999 = vpack.c.b16 %v3023, %v3015
        %v4000 = vpack.c.b16 %v3024, %v3016
        %v4001 = vpack.c.b16 %v3025, %v3017
        %v4002 = vpack.c.b16 %v3034, %v3026
        %v4003 = vpack.c.b16 %v3035, %v3027
        %v4004 = vpack.c.b16 %v3036, %v3028
        %v4005 = vpack.c.b16 %v3037, %v3029
        %v4006 = vpack.c.b16 %v3038, %v3030
        %v4007 = vpack.c.b16 %v3039, %v3031
        %v4008 = vpack.c.b16 %v3040, %v3032
        %v4009 = vpack.c.b16 %v3041, %v3033
        %v4010 = vpack.c.b16 %v3050, %v3042
        %v4011 = vpack.c.b16 %v3051, %v3043
        %v4012 = vpack.c.b16 %v3052, %v3044
        %v4013 = vpack.c.b16 %v3053, %v3045
        %v4014 = vpack.c.b16 %v3054, %v3046
        %v4015 = vpack.c.b16 %v3055, %v3047
        %v4016 = vpack.c.b16 %v3056, %v3048
        %v4017 = vpack.c.b16 %v3057, %v3049
        %v4018 = vpack.c.b16 %v3066, %v3058
        %v4019 = vpack.c.b16 %v3067, %v3059
        %v4020 = vpack.c.b16 %v3068, %v3060
        %v4021 = vpack.c.b16 %v3069, %v3061
        %v4022 = vpack.c.b16 %v3070, %v3062
        %v4023 = vpack.c.b16 %v3071, %v3063
        %v4024 = vpack.c.b16 %v3072, %v3064
        %v4025 = vpack.c.b16 %v3073, %v3065
        %v4026 = vpack.c.b16 %v3082, %v3074
        %v4027 = vpack.c.b16 %v3083, %v3075
        %v4028 = vpack.c.b16 %v3084, %v3076
        %v4029 = vpack.c.b16 %v3085, %v3077
        %v4030 = vpack.c.b16 %v3086, %v3078
        %v4031 = vpack.c.b16 %v3087, %v3079
        %v4032 = vpack.c.b16 %v3088, %v3080
        %v4033 = vpack.c.b16 %v3089, %v3081
        %v4034 = vpack.c.b16 %v3098, %v3090
        %v4035 = vpack.c.b16 %v3099, %v3091
        %v4036 = vpack.c.b16 %v3100, %v3092
        %v4037 = vpack.c.b16 %v3101, %v3093
        %v4038 = vpack.c.b16 %v3102, %v3094
        %v4039 = vpack.c.b16 %v3103, %v3095
        %v4040 = vpack.c.b16 %v3104, %v3096
        %v4041 = vpack.c.b16 %v3105, %v3097
        %v4042 = vpack.c.b16 %v3114, %v3106
        %v4043 = vpack.c.b16 %v3115, %v3107
        %v4044 = vpack.c.b16 %v3116, %v3108
        %v4045 = vpack.c.b16 %v3117, %v3109
        %v4046 = vpack.c.b16 %v3118, %v3110
        %v4047 = vpack.c.b16 %v3119, %v3111
        %v4048 = vpack.c.b16 %v3120, %v3112
        %v4049 = vpack.c.b16 %v3121, %v3113
        %v4050 = vpack.c.b16 %v3130, %v3122
        %v4051 = vpack.c.b16 %v3131, %v3123
        %v4052 = vpack.c.b16 %v3132, %v3124
        %v4053 = vpack.c.b16 %v3133, %v3125
        %v4054 = vpack.c.b16 %v3134, %v3126
        %v4055 = vpack.c.b16 %v3135, %v3127
        %v4056 = vpack.c.b16 %v3136, %v3128
        %v4057 = vpack.c.b16 %v3137, %v3129
        %v4058 = vpack.c.b16 %v3146, %v3138
        %v4059 = vpack.c.b16 %v3147, %v3139
        %v4060 = vpack.c.b16 %v3148, %v3140
        %v4061 = vpack.c.b16 %v3149, %v3141
        %v4062 = vpack.c.b16 %v3150, %v3142
        %v4063 = vpack.c.b16 %v3151, %v3143
        %v4064 = vpack.c.b16 %v3152, %v3144
        %v4065 = vpack.c.b16 %v3153, %v3145
        %v4066 = vpack.c.b16 %v3162, %v3154
        %v4067 = vpack.c.b16 %v3163, %v3155
        %v4068 = vpack.c.b16 %v3164, %v3156
        %v4069 = vpack.c.b16 %v3165, %v3157
        %v4070 = vpack.c.b16 %v3166, %v3158
        %v4071 = vpack.c.b16 %v3167, %v3159
        %v4072 = vpack.c.b16 %v3168, %v3160
        %v4073 = vpack.c.b16 %v3169, %v3161
        %v4074 = vpack.c.b16 %v3178, %v3170
        %v4075 = vpack.c.b16 %v3179, %v3171
        %v4076 = vpack.c.b16 %v3180, %v3172
        %v4077 = vpack.c.b16 %v3181, %v3173
        %v4078 = vpack.c.b16 %v3182, %v3174
        %v4079 = vpack.c.b16 %v3183, %v3175
        %v4080 = vpack.c.b16 %v3184, %v3176
        %v4081 = vpack.c.b16 %v3185, %v3177
        %v4082 = vpack.c.b16 %v3194, %v3186
        %v4083 = vpack.c.b16 %v3195, %v3187
        %v4084 = vpack.c.b16 %v3196, %v3188
        %v4085 = vpack.c.b16 %v3197, %v3189
        %v4086 = vpack.c.b16 %v3198, %v3190
        %v4087 = vpack.c.b16 %v3199, %v3191
        %v4088 = vpack.c.b16 %v3200, %v3192
        %v4089 = vpack.c.b16 %v3201, %v3193
        %v4090 = vpack.c.b16 %v3210, %v3202
        %v4091 = vpack.c.b16 %v3211, %v3203
        %v4092 = vpack.c.b16 %v3212, %v3204
        %v4093 = vpack.c.b16 %v3213, %v3205
        %v4094 = vpack.c.b16 %v3214, %v3206
        %v4095 = vpack.c.b16 %v3215, %v3207
        %v4096 = vpack.c.b16 %v3216, %v3208
        %v4097 = vpack.c.b16 %v3217, %v3209
        %v4098 = vpack.c.b16 %v3226, %v3218
        %v4099 = vpack.c.b16 %v3227, %v3219
        %v4100 = vpack.c.b16 %v3228, %v3220
        %v4101 = vpack.c.b16 %v3229, %v3221
        %v4102 = vpack.c.b16 %v3230, %v3222
        %v4103 = vpack.c.b16 %v3231, %v3223
        %v4104 = vpack.c.b16 %v3232, %v3224
        %v4105 = vpack.c.b16 %v3233, %v3225
        %v4106 = vpack.c.b16 %v3242, %v3234
        %v4107 = vpack.c.b16 %v3243, %v3235
        %v4108 = vpack.c.b16 %v3244, %v3236
        %v4109 = vpack.c.b16 %v3245, %v3237
        %v4110 = vpack.c.b16 %v3246, %v3238
        %v4111 = vpack.c.b16 %v3247, %v3239
        %v4112 = vpack.c.b16 %v3248, %v3240
        %v4113 = vpack.c.b16 %v3249, %v3241
        %v4114 = vpack.c.b16 %v3258, %v3250
        %v4115 = vpack.c.b16 %v3259, %v3251
        %v4116 = vpack.c.b16 %v3260, %v3252
        %v4117 = vpack.c.b16 %v3261, %v3253
        %v4118 = vpack.c.b16 %v3262, %v3254
        %v4119 = vpack.c.b16 %v3263, %v3255
        %v4120 = vpack.c.b16 %v3264, %v3256
        %v4121 = vpack.c.b16 %v3265, %v3257
        %v4122 = vpack.c.b16 %v3274, %v3266
        %v4123 = vpack.c.b16 %v3275, %v3267
        %v4124 = vpack.c.b16 %v3276, %v3268
        %v4125 = vpack.c.b16 %v3277, %v3269
        %v4126 = vpack.c.b16 %v3278, %v3270
        %v4127 = vpack.c.b16 %v3279, %v3271
        %v4128 = vpack.c.b16 %v3280, %v3272
        %v4129 = vpack.c.b16 %v3281, %v3273
        %v4130 = vpack.c.b16 %v3290, %v3282
        %v4131 = vpack.c.b16 %v3291, %v3283
        %v4132 = vpack.c.b16 %v3292, %v3284
        %v4133 = vpack.c.b16 %v3293, %v3285
        %v4134 = vpack.c.b16 %v3294, %v3286
        %v4135 = vpack.c.b16 %v3295, %v3287
        %v4136 = vpack.c.b16 %v3296, %v3288
        %v4137 = vpack.c.b16 %v3297, %v3289
        %v4138 = vpack.c.b16 %v3306, %v3298
        %v4139 = vpack.c.b16 %v3307, %v3299
        %v4140 = vpack.c.b16 %v3308, %v3300
        %v4141 = vpack.c.b16 %v3309, %v3301
        %v4142 = vpack.c.b16 %v3310, %v3302
        %v4143 = vpack.c.b16 %v3311, %v3303
        %v4144 = vpack.c.b16 %v3312, %v3304
        %v4145 = vpack.c.b16 %v3313, %v3305
        %v4146 = vpack.c.b16 %v3322, %v3314
        %v4147 = vpack.c.b16 %v3323, %v3315
        %v4148 = vpack.c.b16 %v3324, %v3316
        %v4149 = vpack.c.b16 %v3325, %v3317
        %v4150 = vpack.c.b16 %v3326, %v3318
        %v4151 = vpack.c.b16 %v3327, %v3319
        %v4152 = vpack.c.b16 %v3328, %v3320
        %v4153 = vpack.c.b16 %v3329, %v3321
        %v4154 = vpack.c.b16 %v3338, %v3330
        %v4155 = vpack.c.b16 %v3339, %v3331
        %v4156 = vpack.c.b16 %v3340, %v3332
        %v4157 = vpack.c.b16 %v3341, %v3333
        %v4158 = vpack.c.b16 %v3342, %v3334
        %v4159 = vpack.c.b16 %v3343, %v3335
        %v4160 = vpack.c.b16 %v3344, %v3336
        %v4161 = vpack.c.b16 %v3345, %v3337
        %v4162 = vpack.c.b16 %v3354, %v3346
        %v4163 = vpack.c.b16 %v3355, %v3347
        %v4164 = vpack.c.b16 %v3356, %v3348
        %v4165 = vpack.c.b16 %v3357, %v3349
        %v4166 = vpack.c.b16 %v3358, %v3350
        %v4167 = vpack.c.b16 %v3359, %v3351
        %v4168 = vpack.c.b16 %v3360, %v3352
        %v4169 = vpack.c.b16 %v3361, %v3353
        %v4170 = vpack.c.b16 %v3370, %v3362
        %v4171 = vpack.c.b16 %v3371, %v3363
        %v4172 = vpack.c.b16 %v3372, %v3364
        %v4173 = vpack.c.b16 %v3373, %v3365
        %v4174 = vpack.c.b16 %v3374, %v3366
        %v4175 = vpack.c.b16 %v3375, %v3367
        %v4176 = vpack.c.b16 %v3376, %v3368
        %v4177 = vpack.c.b16 %v3377, %v3369
        %v4178 = vpack.c.b16 %v3386, %v3378
        %v4179 = vpack.c.b16 %v3387, %v3379
        %v4180 = vpack.c.b16 %v3388, %v3380
        %v4181 = vpack.c.b16 %v3389, %v3381
        %v4182 = vpack.c.b16 %v3390, %v3382
        %v4183 = vpack.c.b16 %v3391, %v3383
        %v4184 = vpack.c.b16 %v3392, %v3384
        %v4185 = vpack.c.b16 %v3393, %v3385
        %v4186 = vpack.c.b16 %v3402, %v3394
        %v4187 = vpack.c.b16 %v3403, %v3395
        %v4188 = vpack.c.b16 %v3404, %v3396
        %v4189 = vpack.c.b16 %v3405, %v3397
        %v4190 = vpack.c.b16 %v3406, %v3398
        %v4191 = vpack.c.b16 %v3407, %v3399
        %v4192 = vpack.c.b16 %v3408, %v3400
        %v4193 = vpack.c.b16 %v3409, %v3401
        %v4194 = vpack.c.b16 %v3418, %v3410
        %v4195 = vpack.c.b16 %v3419, %v3411
        %v4196 = vpack.c.b16 %v3420, %v3412
        %v4197 = vpack.c.b16 %v3421, %v3413
        %v4198 = vpack.c.b16 %v3422, %v3414
        %v4199 = vpack.c.b16 %v3423, %v3415
        %v4200 = vpack.c.b16 %v3424, %v3416
        %v4201 = vpack.c.b16 %v3425, %v3417
        %v4202 = vpack.c.b16 %v3434, %v3426
        %v4203 = vpack.c.b16 %v3435, %v3427
        %v4204 = vpack.c.b16 %v3436, %v3428
        %v4205 = vpack.c.b16 %v3437, %v3429
        %v4206 = vpack.c.b16 %v3438, %v3430
        %v4207 = vpack.c.b16 %v3439, %v3431
        %v4208 = vpack.c.b16 %v3440, %v3432
        %v4209 = vpack.c.b16 %v3441, %v3433
        %4978 = vmatprep.subr.bf16.mxu0 %v3499
        %4979 = vmatpush1.bf16.msra.mxu0 %v3498
        %4980 = vmatprep.subr.bf16.mxu0 %v3491
        %4981 = vmatpush1.bf16.msra.mxu0 %v3490
        %4982 = vmatprep.subr.bf16.mxu0 %v3483
        %4983 = vmatpush1.bf16.msra.mxu0 %v3482
        %4984 = vmatprep.subr.bf16.mxu0 %v3475
        %4985 = vmatpush1.bf16.msra.mxu0 %v3474
        %4986 = vmatprep.subr.bf16.mxu0 %v3467
        %4987 = vmatpush1.bf16.msra.mxu0 %v3466
        %4988 = vmatprep.subr.bf16.mxu0 %v3459
        %4989 = vmatpush1.bf16.msra.mxu0 %v3458
        %4990 = vmatprep.subr.bf16.mxu0 %v3451
        %4991 = vmatpush1.bf16.msra.mxu0 %v3450
        %4992 = vmatprep.subr.bf16.mxu0 %v3443
        %4993 = vmatpush1.bf16.msra.mxu0 %v3442
        %4994 = vmatprep.subr.bf16.mxu0 %v3563
        %4995 = vmatpush2.bf16.msra.mxu0 %v3562
        %4996 = vmatprep.subr.bf16.mxu0 %v3555
        %4997 = vmatpush2.bf16.msra.mxu0 %v3554
        %4998 = vmatprep.subr.bf16.mxu0 %v3547
        %4999 = vmatpush2.bf16.msra.mxu0 %v3546
        %5000 = vmatprep.subr.bf16.mxu0 %v3539
        %5001 = vmatpush2.bf16.msra.mxu0 %v3538
        %5002 = vmatprep.subr.bf16.mxu0 %v3531
        %5003 = vmatpush2.bf16.msra.mxu0 %v3530
        %5004 = vmatprep.subr.bf16.mxu0 %v3523
        %5005 = vmatpush2.bf16.msra.mxu0 %v3522
        %5006 = vmatprep.subr.bf16.mxu0 %v3515
        %5007 = vmatpush2.bf16.msra.mxu0 %v3514
        %5008 = vmatprep.subr.bf16.mxu0 %v3507
        %5009 = vmatpush2.bf16.msra.mxu0 %v3506
        %5010 = vmatprep.mubr.bf16.mxu0 %v1115
        %5011 = vmatmul.mubr.bf16.gmra.mxu0 %v1114
        %v5012 = vpop.f32.mrf.mxu0
        %v5013 = vadd.f32 0.0, %v5012
        %v5014 = vpop.f32.mrf.mxu0
        %v5015 = vadd.f32 0.0, %v5014
        %v5016 = vpop.f32.mrf.mxu0
        %v5017 = vadd.f32 0.0, %v5016
        %v5018 = vpop.f32.mrf.mxu0
        %v5019 = vadd.f32 0.0, %v5018
        %5020 = vdwg.mxu0
        %5021 = vmatprep.subr.bf16.mxu0 %v3627
        %5022 = vmatpush1.bf16.msra.mxu0 %v3626
        %5023 = vmatprep.subr.bf16.mxu0 %v3619
        %5024 = vmatpush1.bf16.msra.mxu0 %v3618
        %5025 = vmatprep.subr.bf16.mxu0 %v3611
        %5026 = vmatpush1.bf16.msra.mxu0 %v3610
        %5027 = vmatprep.subr.bf16.mxu0 %v3603
        %5028 = vmatpush1.bf16.msra.mxu0 %v3602
        %5029 = vmatprep.subr.bf16.mxu0 %v3595
        %5030 = vmatpush1.bf16.msra.mxu0 %v3594
        %5031 = vmatprep.subr.bf16.mxu0 %v3587
        %5032 = vmatpush1.bf16.msra.mxu0 %v3586
        %5033 = vmatprep.subr.bf16.mxu0 %v3579
        %5034 = vmatpush1.bf16.msra.mxu0 %v3578
        %5035 = vmatprep.subr.bf16.mxu0 %v3571
        %5036 = vmatpush1.bf16.msra.mxu0 %v3570
        %5037 = vmatprep.subr.bf16.mxu0 %v3691
        %5038 = vmatpush2.bf16.msra.mxu0 %v3690
        %5039 = vmatprep.subr.bf16.mxu0 %v3683
        %5040 = vmatpush2.bf16.msra.mxu0 %v3682
        %5041 = vmatprep.subr.bf16.mxu0 %v3675
        %5042 = vmatpush2.bf16.msra.mxu0 %v3674
        %5043 = vmatprep.subr.bf16.mxu0 %v3667
        %5044 = vmatpush2.bf16.msra.mxu0 %v3666
        %5045 = vmatprep.subr.bf16.mxu0 %v3659
        %5046 = vmatpush2.bf16.msra.mxu0 %v3658
        %5047 = vmatprep.subr.bf16.mxu0 %v3651
        %5048 = vmatpush2.bf16.msra.mxu0 %v3650
        %5049 = vmatprep.subr.bf16.mxu0 %v3643
        %5050 = vmatpush2.bf16.msra.mxu0 %v3642
        %5051 = vmatprep.subr.bf16.mxu0 %v3635
        %5052 = vmatpush2.bf16.msra.mxu0 %v3634
        %5053 = vmatprep.mubr.bf16.mxu0 %v1117
        %5054 = vmatmul.mubr.bf16.gmra.mxu0 %v1116
        %v5055 = vpop.f32.mrf.mxu0
        %v5056 = vadd.f32 %v5013, %v5055
        %v5057 = vpop.f32.mrf.mxu0
        %v5058 = vadd.f32 %v5015, %v5057
        %v5059 = vpop.f32.mrf.mxu0
        %v5060 = vadd.f32 %v5017, %v5059
        %v5061 = vpop.f32.mrf.mxu0
        %v5062 = vadd.f32 %v5019, %v5061
        %5063 = vdwg.mxu0
        %5064 = vmatprep.subr.bf16.mxu0 %v3755
        %5065 = vmatpush1.bf16.msra.mxu0 %v3754
        %5066 = vmatprep.subr.bf16.mxu0 %v3747
        %5067 = vmatpush1.bf16.msra.mxu0 %v3746
        %5068 = vmatprep.subr.bf16.mxu0 %v3739
        %5069 = vmatpush1.bf16.msra.mxu0 %v3738
        %5070 = vmatprep.subr.bf16.mxu0 %v3731
        %5071 = vmatpush1.bf16.msra.mxu0 %v3730
        %5072 = vmatprep.subr.bf16.mxu0 %v3723
        %5073 = vmatpush1.bf16.msra.mxu0 %v3722
        %5074 = vmatprep.subr.bf16.mxu0 %v3715
        %5075 = vmatpush1.bf16.msra.mxu0 %v3714
        %5076 = vmatprep.subr.bf16.mxu0 %v3707
        %5077 = vmatpush1.bf16.msra.mxu0 %v3706
        %5078 = vmatprep.subr.bf16.mxu0 %v3699
        %5079 = vmatpush1.bf16.msra.mxu0 %v3698
        %5080 = vmatprep.subr.bf16.mxu0 %v3819
        %5081 = vmatpush2.bf16.msra.mxu0 %v3818
        %5082 = vmatprep.subr.bf16.mxu0 %v3811
        %5083 = vmatpush2.bf16.msra.mxu0 %v3810
        %5084 = vmatprep.subr.bf16.mxu0 %v3803
        %5085 = vmatpush2.bf16.msra.mxu0 %v3802
        %5086 = vmatprep.subr.bf16.mxu0 %v3795
        %5087 = vmatpush2.bf16.msra.mxu0 %v3794
        %5088 = vmatprep.subr.bf16.mxu0 %v3787
        %5089 = vmatpush2.bf16.msra.mxu0 %v3786
        %5090 = vmatprep.subr.bf16.mxu0 %v3779
        %5091 = vmatpush2.bf16.msra.mxu0 %v3778
        %5092 = vmatprep.subr.bf16.mxu0 %v3771
        %5093 = vmatpush2.bf16.msra.mxu0 %v3770
        %5094 = vmatprep.subr.bf16.mxu0 %v3763
        %5095 = vmatpush2.bf16.msra.mxu0 %v3762
        %5096 = vmatprep.mubr.bf16.mxu0 %v1119
        %5097 = vmatmul.mubr.bf16.gmra.mxu0 %v1118
        %v5098 = vpop.f32.mrf.mxu0
        %v5099 = vadd.f32 %v5056, %v5098
        %v5100 = vpop.f32.mrf.mxu0
        %v5101 = vadd.f32 %v5058, %v5100
        %v5102 = vpop.f32.mrf.mxu0
        %v5103 = vadd.f32 %v5060, %v5102
        %v5104 = vpop.f32.mrf.mxu0
        %v5105 = vadd.f32 %v5062, %v5104
        %5106 = vdwg.mxu0
        %5107 = vmatprep.subr.bf16.mxu0 %v3883
        %5108 = vmatpush1.bf16.msra.mxu0 %v3882
        %5109 = vmatprep.subr.bf16.mxu0 %v3875
        %5110 = vmatpush1.bf16.msra.mxu0 %v3874
        %5111 = vmatprep.subr.bf16.mxu0 %v3867
        %5112 = vmatpush1.bf16.msra.mxu0 %v3866
        %5113 = vmatprep.subr.bf16.mxu0 %v3859
        %5114 = vmatpush1.bf16.msra.mxu0 %v3858
        %5115 = vmatprep.subr.bf16.mxu0 %v3851
        %5116 = vmatpush1.bf16.msra.mxu0 %v3850
        %5117 = vmatprep.subr.bf16.mxu0 %v3843
        %5118 = vmatpush1.bf16.msra.mxu0 %v3842
        %5119 = vmatprep.subr.bf16.mxu0 %v3835
        %5120 = vmatpush1.bf16.msra.mxu0 %v3834
        %5121 = vmatprep.subr.bf16.mxu0 %v3827
        %5122 = vmatpush1.bf16.msra.mxu0 %v3826
        %5123 = vmatprep.subr.bf16.mxu0 %v3947
        %5124 = vmatpush2.bf16.msra.mxu0 %v3946
        %5125 = vmatprep.subr.bf16.mxu0 %v3939
        %5126 = vmatpush2.bf16.msra.mxu0 %v3938
        %5127 = vmatprep.subr.bf16.mxu0 %v3931
        %5128 = vmatpush2.bf16.msra.mxu0 %v3930
        %5129 = vmatprep.subr.bf16.mxu0 %v3923
        %5130 = vmatpush2.bf16.msra.mxu0 %v3922
        %5131 = vmatprep.subr.bf16.mxu0 %v3915
        %5132 = vmatpush2.bf16.msra.mxu0 %v3914
        %5133 = vmatprep.subr.bf16.mxu0 %v3907
        %5134 = vmatpush2.bf16.msra.mxu0 %v3906
        %5135 = vmatprep.subr.bf16.mxu0 %v3899
        %5136 = vmatpush2.bf16.msra.mxu0 %v3898
        %5137 = vmatprep.subr.bf16.mxu0 %v3891
        %5138 = vmatpush2.bf16.msra.mxu0 %v3890
        %5139 = vmatprep.mubr.bf16.mxu0 %v1121
        %5140 = vmatmul.mubr.bf16.gmra.mxu0 %v1120
        %v5141 = vpop.f32.mrf.mxu0
        %v5142 = vadd.f32 %v5099, %v5141
        %v5143 = vpop.f32.mrf.mxu0
        %v5144 = vadd.f32 %v5101, %v5143
        %v5145 = vpop.f32.mrf.mxu0
        %v5146 = vadd.f32 %v5103, %v5145
        %v5147 = vpop.f32.mrf.mxu0
        %v5148 = vadd.f32 %v5105, %v5147
        %5149 = vdwg.mxu0
        %5150 = vmatprep.subr.bf16.mxu0 %v4011
        %5151 = vmatpush1.bf16.msra.mxu0 %v4010
        %5152 = vmatprep.subr.bf16.mxu0 %v4003
        %5153 = vmatpush1.bf16.msra.mxu0 %v4002
        %5154 = vmatprep.subr.bf16.mxu0 %v3995
        %5155 = vmatpush1.bf16.msra.mxu0 %v3994
        %5156 = vmatprep.subr.bf16.mxu0 %v3987
        %5157 = vmatpush1.bf16.msra.mxu0 %v3986
        %5158 = vmatprep.subr.bf16.mxu0 %v3979
        %5159 = vmatpush1.bf16.msra.mxu0 %v3978
        %5160 = vmatprep.subr.bf16.mxu0 %v3971
        %5161 = vmatpush1.bf16.msra.mxu0 %v3970
        %5162 = vmatprep.subr.bf16.mxu0 %v3963
        %5163 = vmatpush1.bf16.msra.mxu0 %v3962
        %5164 = vmatprep.subr.bf16.mxu0 %v3955
        %5165 = vmatpush1.bf16.msra.mxu0 %v3954
        %5166 = vmatprep.subr.bf16.mxu0 %v4075
        %5167 = vmatpush2.bf16.msra.mxu0 %v4074
        %5168 = vmatprep.subr.bf16.mxu0 %v4067
        %5169 = vmatpush2.bf16.msra.mxu0 %v4066
        %5170 = vmatprep.subr.bf16.mxu0 %v4059
        %5171 = vmatpush2.bf16.msra.mxu0 %v4058
        %5172 = vmatprep.subr.bf16.mxu0 %v4051
        %5173 = vmatpush2.bf16.msra.mxu0 %v4050
        %5174 = vmatprep.subr.bf16.mxu0 %v4043
        %5175 = vmatpush2.bf16.msra.mxu0 %v4042
        %5176 = vmatprep.subr.bf16.mxu0 %v4035
        %5177 = vmatpush2.bf16.msra.mxu0 %v4034
        %5178 = vmatprep.subr.bf16.mxu0 %v4027
        %5179 = vmatpush2.bf16.msra.mxu0 %v4026
        %5180 = vmatprep.subr.bf16.mxu0 %v4019
        %5181 = vmatpush2.bf16.msra.mxu0 %v4018
        %5182 = vmatprep.mubr.bf16.mxu0 %v1123
        %5183 = vmatmul.mubr.bf16.gmra.mxu0 %v1122
        %v5184 = vpop.f32.mrf.mxu0
        %v5185 = vadd.f32 %v5142, %v5184
        %v5186 = vpop.f32.mrf.mxu0
        %v5187 = vadd.f32 %v5144, %v5186
        %v5188 = vpop.f32.mrf.mxu0
        %v5189 = vadd.f32 %v5146, %v5188
        %v5190 = vpop.f32.mrf.mxu0
        %v5191 = vadd.f32 %v5148, %v5190
        %5192 = vdwg.mxu0
        %5193 = vmatprep.subr.bf16.mxu0 %v4139
        %5194 = vmatpush1.bf16.msra.mxu0 %v4138
        %5195 = vmatprep.subr.bf16.mxu0 %v4131
        %5196 = vmatpush1.bf16.msra.mxu0 %v4130
        %5197 = vmatprep.subr.bf16.mxu0 %v4123
        %5198 = vmatpush1.bf16.msra.mxu0 %v4122
        %5199 = vmatprep.subr.bf16.mxu0 %v4115
        %5200 = vmatpush1.bf16.msra.mxu0 %v4114
        %5201 = vmatprep.subr.bf16.mxu0 %v4107
        %5202 = vmatpush1.bf16.msra.mxu0 %v4106
        %5203 = vmatprep.subr.bf16.mxu0 %v4099
        %5204 = vmatpush1.bf16.msra.mxu0 %v4098
        %5205 = vmatprep.subr.bf16.mxu0 %v4091
        %5206 = vmatpush1.bf16.msra.mxu0 %v4090
        %5207 = vmatprep.subr.bf16.mxu0 %v4083
        %5208 = vmatpush1.bf16.msra.mxu0 %v4082
        %5209 = vmatprep.subr.bf16.mxu0 %v4203
        %5210 = vmatpush2.bf16.msra.mxu0 %v4202
        %5211 = vmatprep.subr.bf16.mxu0 %v4195
        %5212 = vmatpush2.bf16.msra.mxu0 %v4194
        %5213 = vmatprep.subr.bf16.mxu0 %v4187
        %5214 = vmatpush2.bf16.msra.mxu0 %v4186
        %5215 = vmatprep.subr.bf16.mxu0 %v4179
        %5216 = vmatpush2.bf16.msra.mxu0 %v4178
        %5217 = vmatprep.subr.bf16.mxu0 %v4171
        %5218 = vmatpush2.bf16.msra.mxu0 %v4170
        %5219 = vmatprep.subr.bf16.mxu0 %v4163
        %5220 = vmatpush2.bf16.msra.mxu0 %v4162
        %5221 = vmatprep.subr.bf16.mxu0 %v4155
        %5222 = vmatpush2.bf16.msra.mxu0 %v4154
        %5223 = vmatprep.subr.bf16.mxu0 %v4147
        %5224 = vmatpush2.bf16.msra.mxu0 %v4146
        %5225 = vmatprep.mubr.bf16.mxu0 %v1125
        %5226 = vmatmul.mubr.bf16.gmra.mxu0 %v1124
        %v5227 = vpop.f32.mrf.mxu0
        %v5228 = vadd.f32 %v5185, %v5227
        %v5229 = vpop.f32.mrf.mxu0
        %v5230 = vadd.f32 %v5187, %v5229
        %v5231 = vpop.f32.mrf.mxu0
        %v5232 = vadd.f32 %v5189, %v5231
        %v5233 = vpop.f32.mrf.mxu0
        %v5234 = vadd.f32 %v5191, %v5233
        %5235 = vdwg.mxu0
        %5236 = vmatprep.subr.bf16.mxu0 %v3501
        %5237 = vmatpush1.bf16.msra.mxu0 %v3500
        %5238 = vmatprep.subr.bf16.mxu0 %v3493
        %5239 = vmatpush1.bf16.msra.mxu0 %v3492
        %5240 = vmatprep.subr.bf16.mxu0 %v3485
        %5241 = vmatpush1.bf16.msra.mxu0 %v3484
        %5242 = vmatprep.subr.bf16.mxu0 %v3477
        %5243 = vmatpush1.bf16.msra.mxu0 %v3476
        %5244 = vmatprep.subr.bf16.mxu0 %v3469
        %5245 = vmatpush1.bf16.msra.mxu0 %v3468
        %5246 = vmatprep.subr.bf16.mxu0 %v3461
        %5247 = vmatpush1.bf16.msra.mxu0 %v3460
        %5248 = vmatprep.subr.bf16.mxu0 %v3453
        %5249 = vmatpush1.bf16.msra.mxu0 %v3452
        %5250 = vmatprep.subr.bf16.mxu0 %v3445
        %5251 = vmatpush1.bf16.msra.mxu0 %v3444
        %5252 = vmatprep.subr.bf16.mxu0 %v3565
        %5253 = vmatpush2.bf16.msra.mxu0 %v3564
        %5254 = vmatprep.subr.bf16.mxu0 %v3557
        %5255 = vmatpush2.bf16.msra.mxu0 %v3556
        %5256 = vmatprep.subr.bf16.mxu0 %v3549
        %5257 = vmatpush2.bf16.msra.mxu0 %v3548
        %5258 = vmatprep.subr.bf16.mxu0 %v3541
        %5259 = vmatpush2.bf16.msra.mxu0 %v3540
        %5260 = vmatprep.subr.bf16.mxu0 %v3533
        %5261 = vmatpush2.bf16.msra.mxu0 %v3532
        %5262 = vmatprep.subr.bf16.mxu0 %v3525
        %5263 = vmatpush2.bf16.msra.mxu0 %v3524
        %5264 = vmatprep.subr.bf16.mxu0 %v3517
        %5265 = vmatpush2.bf16.msra.mxu0 %v3516
        %5266 = vmatprep.subr.bf16.mxu0 %v3509
        %5267 = vmatpush2.bf16.msra.mxu0 %v3508
        %5268 = vmatprep.mubr.bf16.mxu0 %v1115
        %5269 = vmatmul.mubr.bf16.gmra.mxu0 %v1114
        %v5270 = vpop.f32.mrf.mxu0
        %v5271 = vadd.f32 0.0, %v5270
        %v5272 = vpop.f32.mrf.mxu0
        %v5273 = vadd.f32 0.0, %v5272
        %v5274 = vpop.f32.mrf.mxu0
        %v5275 = vadd.f32 0.0, %v5274
        %v5276 = vpop.f32.mrf.mxu0
        %v5277 = vadd.f32 0.0, %v5276
        %5278 = vdwg.mxu0
        %5279 = vmatprep.subr.bf16.mxu0 %v3629
        %5280 = vmatpush1.bf16.msra.mxu0 %v3628
        %5281 = vmatprep.subr.bf16.mxu0 %v3621
        %5282 = vmatpush1.bf16.msra.mxu0 %v3620
        %5283 = vmatprep.subr.bf16.mxu0 %v3613
        %5284 = vmatpush1.bf16.msra.mxu0 %v3612
        %5285 = vmatprep.subr.bf16.mxu0 %v3605
        %5286 = vmatpush1.bf16.msra.mxu0 %v3604
        %5287 = vmatprep.subr.bf16.mxu0 %v3597
        %5288 = vmatpush1.bf16.msra.mxu0 %v3596
        %5289 = vmatprep.subr.bf16.mxu0 %v3589
        %5290 = vmatpush1.bf16.msra.mxu0 %v3588
        %5291 = vmatprep.subr.bf16.mxu0 %v3581
        %5292 = vmatpush1.bf16.msra.mxu0 %v3580
        %5293 = vmatprep.subr.bf16.mxu0 %v3573
        %5294 = vmatpush1.bf16.msra.mxu0 %v3572
        %5295 = vmatprep.subr.bf16.mxu0 %v3693
        %5296 = vmatpush2.bf16.msra.mxu0 %v3692
        %5297 = vmatprep.subr.bf16.mxu0 %v3685
        %5298 = vmatpush2.bf16.msra.mxu0 %v3684
        %5299 = vmatprep.subr.bf16.mxu0 %v3677
        %5300 = vmatpush2.bf16.msra.mxu0 %v3676
        %5301 = vmatprep.subr.bf16.mxu0 %v3669
        %5302 = vmatpush2.bf16.msra.mxu0 %v3668
        %5303 = vmatprep.subr.bf16.mxu0 %v3661
        %5304 = vmatpush2.bf16.msra.mxu0 %v3660
        %5305 = vmatprep.subr.bf16.mxu0 %v3653
        %5306 = vmatpush2.bf16.msra.mxu0 %v3652
        %5307 = vmatprep.subr.bf16.mxu0 %v3645
        %5308 = vmatpush2.bf16.msra.mxu0 %v3644
        %5309 = vmatprep.subr.bf16.mxu0 %v3637
        %5310 = vmatpush2.bf16.msra.mxu0 %v3636
        %5311 = vmatprep.mubr.bf16.mxu0 %v1117
        %5312 = vmatmul.mubr.bf16.gmra.mxu0 %v1116
        %v5313 = vpop.f32.mrf.mxu0
        %v5314 = vadd.f32 %v5271, %v5313
        %v5315 = vpop.f32.mrf.mxu0
        %v5316 = vadd.f32 %v5273, %v5315
        %v5317 = vpop.f32.mrf.mxu0
        %v5318 = vadd.f32 %v5275, %v5317
        %v5319 = vpop.f32.mrf.mxu0
        %v5320 = vadd.f32 %v5277, %v5319
        %5321 = vdwg.mxu0
        %5322 = vmatprep.subr.bf16.mxu0 %v3757
        %5323 = vmatpush1.bf16.msra.mxu0 %v3756
        %5324 = vmatprep.subr.bf16.mxu0 %v3749
        %5325 = vmatpush1.bf16.msra.mxu0 %v3748
        %5326 = vmatprep.subr.bf16.mxu0 %v3741
        %5327 = vmatpush1.bf16.msra.mxu0 %v3740
        %5328 = vmatprep.subr.bf16.mxu0 %v3733
        %5329 = vmatpush1.bf16.msra.mxu0 %v3732
        %5330 = vmatprep.subr.bf16.mxu0 %v3725
        %5331 = vmatpush1.bf16.msra.mxu0 %v3724
        %5332 = vmatprep.subr.bf16.mxu0 %v3717
        %5333 = vmatpush1.bf16.msra.mxu0 %v3716
        %5334 = vmatprep.subr.bf16.mxu0 %v3709
        %5335 = vmatpush1.bf16.msra.mxu0 %v3708
        %5336 = vmatprep.subr.bf16.mxu0 %v3701
        %5337 = vmatpush1.bf16.msra.mxu0 %v3700
        %5338 = vmatprep.subr.bf16.mxu0 %v3821
        %5339 = vmatpush2.bf16.msra.mxu0 %v3820
        %5340 = vmatprep.subr.bf16.mxu0 %v3813
        %5341 = vmatpush2.bf16.msra.mxu0 %v3812
        %5342 = vmatprep.subr.bf16.mxu0 %v3805
        %5343 = vmatpush2.bf16.msra.mxu0 %v3804
        %5344 = vmatprep.subr.bf16.mxu0 %v3797
        %5345 = vmatpush2.bf16.msra.mxu0 %v3796
        %5346 = vmatprep.subr.bf16.mxu0 %v3789
        %5347 = vmatpush2.bf16.msra.mxu0 %v3788
        %5348 = vmatprep.subr.bf16.mxu0 %v3781
        %5349 = vmatpush2.bf16.msra.mxu0 %v3780
        %5350 = vmatprep.subr.bf16.mxu0 %v3773
        %5351 = vmatpush2.bf16.msra.mxu0 %v3772
        %5352 = vmatprep.subr.bf16.mxu0 %v3765
        %5353 = vmatpush2.bf16.msra.mxu0 %v3764
        %5354 = vmatprep.mubr.bf16.mxu0 %v1119
        %5355 = vmatmul.mubr.bf16.gmra.mxu0 %v1118
        %v5356 = vpop.f32.mrf.mxu0
        %v5357 = vadd.f32 %v5314, %v5356
        %v5358 = vpop.f32.mrf.mxu0
        %v5359 = vadd.f32 %v5316, %v5358
        %v5360 = vpop.f32.mrf.mxu0
        %v5361 = vadd.f32 %v5318, %v5360
        %v5362 = vpop.f32.mrf.mxu0
        %v5363 = vadd.f32 %v5320, %v5362
        %5364 = vdwg.mxu0
        %5365 = vmatprep.subr.bf16.mxu0 %v3885
        %5366 = vmatpush1.bf16.msra.mxu0 %v3884
        %5367 = vmatprep.subr.bf16.mxu0 %v3877
        %5368 = vmatpush1.bf16.msra.mxu0 %v3876
        %5369 = vmatprep.subr.bf16.mxu0 %v3869
        %5370 = vmatpush1.bf16.msra.mxu0 %v3868
        %5371 = vmatprep.subr.bf16.mxu0 %v3861
        %5372 = vmatpush1.bf16.msra.mxu0 %v3860
        %5373 = vmatprep.subr.bf16.mxu0 %v3853
        %5374 = vmatpush1.bf16.msra.mxu0 %v3852
        %5375 = vmatprep.subr.bf16.mxu0 %v3845
        %5376 = vmatpush1.bf16.msra.mxu0 %v3844
        %5377 = vmatprep.subr.bf16.mxu0 %v3837
        %5378 = vmatpush1.bf16.msra.mxu0 %v3836
        %5379 = vmatprep.subr.bf16.mxu0 %v3829
        %5380 = vmatpush1.bf16.msra.mxu0 %v3828
        %5381 = vmatprep.subr.bf16.mxu0 %v3949
        %5382 = vmatpush2.bf16.msra.mxu0 %v3948
        %5383 = vmatprep.subr.bf16.mxu0 %v3941
        %5384 = vmatpush2.bf16.msra.mxu0 %v3940
        %5385 = vmatprep.subr.bf16.mxu0 %v3933
        %5386 = vmatpush2.bf16.msra.mxu0 %v3932
        %5387 = vmatprep.subr.bf16.mxu0 %v3925
        %5388 = vmatpush2.bf16.msra.mxu0 %v3924
        %5389 = vmatprep.subr.bf16.mxu0 %v3917
        %5390 = vmatpush2.bf16.msra.mxu0 %v3916
        %5391 = vmatprep.subr.bf16.mxu0 %v3909
        %5392 = vmatpush2.bf16.msra.mxu0 %v3908
        %5393 = vmatprep.subr.bf16.mxu0 %v3901
        %5394 = vmatpush2.bf16.msra.mxu0 %v3900
        %5395 = vmatprep.subr.bf16.mxu0 %v3893
        %5396 = vmatpush2.bf16.msra.mxu0 %v3892
        %5397 = vmatprep.mubr.bf16.mxu0 %v1121
        %5398 = vmatmul.mubr.bf16.gmra.mxu0 %v1120
        %v5399 = vpop.f32.mrf.mxu0
        %v5400 = vadd.f32 %v5357, %v5399
        %v5401 = vpop.f32.mrf.mxu0
        %v5402 = vadd.f32 %v5359, %v5401
        %v5403 = vpop.f32.mrf.mxu0
        %v5404 = vadd.f32 %v5361, %v5403
        %v5405 = vpop.f32.mrf.mxu0
        %v5406 = vadd.f32 %v5363, %v5405
        %5407 = vdwg.mxu0
        %5408 = vmatprep.subr.bf16.mxu0 %v4013
        %5409 = vmatpush1.bf16.msra.mxu0 %v4012
        %5410 = vmatprep.subr.bf16.mxu0 %v4005
        %5411 = vmatpush1.bf16.msra.mxu0 %v4004
        %5412 = vmatprep.subr.bf16.mxu0 %v3997
        %5413 = vmatpush1.bf16.msra.mxu0 %v3996
        %5414 = vmatprep.subr.bf16.mxu0 %v3989
        %5415 = vmatpush1.bf16.msra.mxu0 %v3988
        %5416 = vmatprep.subr.bf16.mxu0 %v3981
        %5417 = vmatpush1.bf16.msra.mxu0 %v3980
        %5418 = vmatprep.subr.bf16.mxu0 %v3973
        %5419 = vmatpush1.bf16.msra.mxu0 %v3972
        %5420 = vmatprep.subr.bf16.mxu0 %v3965
        %5421 = vmatpush1.bf16.msra.mxu0 %v3964
        %5422 = vmatprep.subr.bf16.mxu0 %v3957
        %5423 = vmatpush1.bf16.msra.mxu0 %v3956
        %5424 = vmatprep.subr.bf16.mxu0 %v4077
        %5425 = vmatpush2.bf16.msra.mxu0 %v4076
        %5426 = vmatprep.subr.bf16.mxu0 %v4069
        %5427 = vmatpush2.bf16.msra.mxu0 %v4068
        %5428 = vmatprep.subr.bf16.mxu0 %v4061
        %5429 = vmatpush2.bf16.msra.mxu0 %v4060
        %5430 = vmatprep.subr.bf16.mxu0 %v4053
        %5431 = vmatpush2.bf16.msra.mxu0 %v4052
        %5432 = vmatprep.subr.bf16.mxu0 %v4045
        %5433 = vmatpush2.bf16.msra.mxu0 %v4044
        %5434 = vmatprep.subr.bf16.mxu0 %v4037
        %5435 = vmatpush2.bf16.msra.mxu0 %v4036
        %5436 = vmatprep.subr.bf16.mxu0 %v4029
        %5437 = vmatpush2.bf16.msra.mxu0 %v4028
        %5438 = vmatprep.subr.bf16.mxu0 %v4021
        %5439 = vmatpush2.bf16.msra.mxu0 %v4020
        %5440 = vmatprep.mubr.bf16.mxu0 %v1123
        %5441 = vmatmul.mubr.bf16.gmra.mxu0 %v1122
        %v5442 = vpop.f32.mrf.mxu0
        %v5443 = vadd.f32 %v5400, %v5442
        %v5444 = vpop.f32.mrf.mxu0
        %v5445 = vadd.f32 %v5402, %v5444
        %v5446 = vpop.f32.mrf.mxu0
        %v5447 = vadd.f32 %v5404, %v5446
        %v5448 = vpop.f32.mrf.mxu0
        %v5449 = vadd.f32 %v5406, %v5448
        %5450 = vdwg.mxu0
        %5451 = vmatprep.subr.bf16.mxu0 %v4141
        %5452 = vmatpush1.bf16.msra.mxu0 %v4140
        %5453 = vmatprep.subr.bf16.mxu0 %v4133
        %5454 = vmatpush1.bf16.msra.mxu0 %v4132
        %5455 = vmatprep.subr.bf16.mxu0 %v4125
        %5456 = vmatpush1.bf16.msra.mxu0 %v4124
        %5457 = vmatprep.subr.bf16.mxu0 %v4117
        %5458 = vmatpush1.bf16.msra.mxu0 %v4116
        %5459 = vmatprep.subr.bf16.mxu0 %v4109
        %5460 = vmatpush1.bf16.msra.mxu0 %v4108
        %5461 = vmatprep.subr.bf16.mxu0 %v4101
        %5462 = vmatpush1.bf16.msra.mxu0 %v4100
        %5463 = vmatprep.subr.bf16.mxu0 %v4093
        %5464 = vmatpush1.bf16.msra.mxu0 %v4092
        %5465 = vmatprep.subr.bf16.mxu0 %v4085
        %5466 = vmatpush1.bf16.msra.mxu0 %v4084
        %5467 = vmatprep.subr.bf16.mxu0 %v4205
        %5468 = vmatpush2.bf16.msra.mxu0 %v4204
        %5469 = vmatprep.subr.bf16.mxu0 %v4197
        %5470 = vmatpush2.bf16.msra.mxu0 %v4196
        %5471 = vmatprep.subr.bf16.mxu0 %v4189
        %5472 = vmatpush2.bf16.msra.mxu0 %v4188
        %5473 = vmatprep.subr.bf16.mxu0 %v4181
        %5474 = vmatpush2.bf16.msra.mxu0 %v4180
        %5475 = vmatprep.subr.bf16.mxu0 %v4173
        %5476 = vmatpush2.bf16.msra.mxu0 %v4172
        %5477 = vmatprep.subr.bf16.mxu0 %v4165
        %5478 = vmatpush2.bf16.msra.mxu0 %v4164
        %5479 = vmatprep.subr.bf16.mxu0 %v4157
        %5480 = vmatpush2.bf16.msra.mxu0 %v4156
        %5481 = vmatprep.subr.bf16.mxu0 %v4149
        %5482 = vmatpush2.bf16.msra.mxu0 %v4148
        %5483 = vmatprep.mubr.bf16.mxu0 %v1125
        %5484 = vmatmul.mubr.bf16.gmra.mxu0 %v1124
        %v5485 = vpop.f32.mrf.mxu0
        %v5486 = vadd.f32 %v5443, %v5485
        %v5487 = vpop.f32.mrf.mxu0
        %v5488 = vadd.f32 %v5445, %v5487
        %v5489 = vpop.f32.mrf.mxu0
        %v5490 = vadd.f32 %v5447, %v5489
        %v5491 = vpop.f32.mrf.mxu0
        %v5492 = vadd.f32 %v5449, %v5491
        %5493 = vdwg.mxu0
        %5494 = vmatprep.subr.bf16.mxu0 %v3503
        %5495 = vmatpush1.bf16.msra.mxu0 %v3502
        %5496 = vmatprep.subr.bf16.mxu0 %v3495
        %5497 = vmatpush1.bf16.msra.mxu0 %v3494
        %5498 = vmatprep.subr.bf16.mxu0 %v3487
        %5499 = vmatpush1.bf16.msra.mxu0 %v3486
        %5500 = vmatprep.subr.bf16.mxu0 %v3479
        %5501 = vmatpush1.bf16.msra.mxu0 %v3478
        %5502 = vmatprep.subr.bf16.mxu0 %v3471
        %5503 = vmatpush1.bf16.msra.mxu0 %v3470
        %5504 = vmatprep.subr.bf16.mxu0 %v3463
        %5505 = vmatpush1.bf16.msra.mxu0 %v3462
        %5506 = vmatprep.subr.bf16.mxu0 %v3455
        %5507 = vmatpush1.bf16.msra.mxu0 %v3454
        %5508 = vmatprep.subr.bf16.mxu0 %v3447
        %5509 = vmatpush1.bf16.msra.mxu0 %v3446
        %5510 = vmatprep.subr.bf16.mxu0 %v3567
        %5511 = vmatpush2.bf16.msra.mxu0 %v3566
        %5512 = vmatprep.subr.bf16.mxu0 %v3559
        %5513 = vmatpush2.bf16.msra.mxu0 %v3558
        %5514 = vmatprep.subr.bf16.mxu0 %v3551
        %5515 = vmatpush2.bf16.msra.mxu0 %v3550
        %5516 = vmatprep.subr.bf16.mxu0 %v3543
        %5517 = vmatpush2.bf16.msra.mxu0 %v3542
        %5518 = vmatprep.subr.bf16.mxu0 %v3535
        %5519 = vmatpush2.bf16.msra.mxu0 %v3534
        %5520 = vmatprep.subr.bf16.mxu0 %v3527
        %5521 = vmatpush2.bf16.msra.mxu0 %v3526
        %5522 = vmatprep.subr.bf16.mxu0 %v3519
        %5523 = vmatpush2.bf16.msra.mxu0 %v3518
        %5524 = vmatprep.subr.bf16.mxu0 %v3511
        %5525 = vmatpush2.bf16.msra.mxu0 %v3510
        %5526 = vmatprep.mubr.bf16.mxu0 %v1115
        %5527 = vmatmul.mubr.bf16.gmra.mxu0 %v1114
        %v5528 = vpop.f32.mrf.mxu0
        %v5529 = vadd.f32 0.0, %v5528
        %v5530 = vpop.f32.mrf.mxu0
        %v5531 = vadd.f32 0.0, %v5530
        %v5532 = vpop.f32.mrf.mxu0
        %v5533 = vadd.f32 0.0, %v5532
        %v5534 = vpop.f32.mrf.mxu0
        %v5535 = vadd.f32 0.0, %v5534
        %5536 = vdwg.mxu0
        %5537 = vmatprep.subr.bf16.mxu0 %v3631
        %5538 = vmatpush1.bf16.msra.mxu0 %v3630
        %5539 = vmatprep.subr.bf16.mxu0 %v3623
        %5540 = vmatpush1.bf16.msra.mxu0 %v3622
        %5541 = vmatprep.subr.bf16.mxu0 %v3615
        %5542 = vmatpush1.bf16.msra.mxu0 %v3614
        %5543 = vmatprep.subr.bf16.mxu0 %v3607
        %5544 = vmatpush1.bf16.msra.mxu0 %v3606
        %5545 = vmatprep.subr.bf16.mxu0 %v3599
        %5546 = vmatpush1.bf16.msra.mxu0 %v3598
        %5547 = vmatprep.subr.bf16.mxu0 %v3591
        %5548 = vmatpush1.bf16.msra.mxu0 %v3590
        %5549 = vmatprep.subr.bf16.mxu0 %v3583
        %5550 = vmatpush1.bf16.msra.mxu0 %v3582
        %5551 = vmatprep.subr.bf16.mxu0 %v3575
        %5552 = vmatpush1.bf16.msra.mxu0 %v3574
        %5553 = vmatprep.subr.bf16.mxu0 %v3695
        %5554 = vmatpush2.bf16.msra.mxu0 %v3694
        %5555 = vmatprep.subr.bf16.mxu0 %v3687
        %5556 = vmatpush2.bf16.msra.mxu0 %v3686
        %5557 = vmatprep.subr.bf16.mxu0 %v3679
        %5558 = vmatpush2.bf16.msra.mxu0 %v3678
        %5559 = vmatprep.subr.bf16.mxu0 %v3671
        %5560 = vmatpush2.bf16.msra.mxu0 %v3670
        %5561 = vmatprep.subr.bf16.mxu0 %v3663
        %5562 = vmatpush2.bf16.msra.mxu0 %v3662
        %5563 = vmatprep.subr.bf16.mxu0 %v3655
        %5564 = vmatpush2.bf16.msra.mxu0 %v3654
        %5565 = vmatprep.subr.bf16.mxu0 %v3647
        %5566 = vmatpush2.bf16.msra.mxu0 %v3646
        %5567 = vmatprep.subr.bf16.mxu0 %v3639
        %5568 = vmatpush2.bf16.msra.mxu0 %v3638
        %5569 = vmatprep.mubr.bf16.mxu0 %v1117
        %5570 = vmatmul.mubr.bf16.gmra.mxu0 %v1116
        %v5571 = vpop.f32.mrf.mxu0
        %v5572 = vadd.f32 %v5529, %v5571
        %v5573 = vpop.f32.mrf.mxu0
        %v5574 = vadd.f32 %v5531, %v5573
        %v5575 = vpop.f32.mrf.mxu0
        %v5576 = vadd.f32 %v5533, %v5575
        %v5577 = vpop.f32.mrf.mxu0
        %v5578 = vadd.f32 %v5535, %v5577
        %5579 = vdwg.mxu0
        %5580 = vmatprep.subr.bf16.mxu0 %v3759
        %5581 = vmatpush1.bf16.msra.mxu0 %v3758
        %5582 = vmatprep.subr.bf16.mxu0 %v3751
        %5583 = vmatpush1.bf16.msra.mxu0 %v3750
        %5584 = vmatprep.subr.bf16.mxu0 %v3743
        %5585 = vmatpush1.bf16.msra.mxu0 %v3742
        %5586 = vmatprep.subr.bf16.mxu0 %v3735
        %5587 = vmatpush1.bf16.msra.mxu0 %v3734
        %5588 = vmatprep.subr.bf16.mxu0 %v3727
        %5589 = vmatpush1.bf16.msra.mxu0 %v3726
        %5590 = vmatprep.subr.bf16.mxu0 %v3719
        %5591 = vmatpush1.bf16.msra.mxu0 %v3718
        %5592 = vmatprep.subr.bf16.mxu0 %v3711
        %5593 = vmatpush1.bf16.msra.mxu0 %v3710
        %5594 = vmatprep.subr.bf16.mxu0 %v3703
        %5595 = vmatpush1.bf16.msra.mxu0 %v3702
        %5596 = vmatprep.subr.bf16.mxu0 %v3823
        %5597 = vmatpush2.bf16.msra.mxu0 %v3822
        %5598 = vmatprep.subr.bf16.mxu0 %v3815
        %5599 = vmatpush2.bf16.msra.mxu0 %v3814
        %5600 = vmatprep.subr.bf16.mxu0 %v3807
        %5601 = vmatpush2.bf16.msra.mxu0 %v3806
        %5602 = vmatprep.subr.bf16.mxu0 %v3799
        %5603 = vmatpush2.bf16.msra.mxu0 %v3798
        %5604 = vmatprep.subr.bf16.mxu0 %v3791
        %5605 = vmatpush2.bf16.msra.mxu0 %v3790
        %5606 = vmatprep.subr.bf16.mxu0 %v3783
        %5607 = vmatpush2.bf16.msra.mxu0 %v3782
        %5608 = vmatprep.subr.bf16.mxu0 %v3775
        %5609 = vmatpush2.bf16.msra.mxu0 %v3774
        %5610 = vmatprep.subr.bf16.mxu0 %v3767
        %5611 = vmatpush2.bf16.msra.mxu0 %v3766
        %5612 = vmatprep.mubr.bf16.mxu0 %v1119
        %5613 = vmatmul.mubr.bf16.gmra.mxu0 %v1118
        %v5614 = vpop.f32.mrf.mxu0
        %v5615 = vadd.f32 %v5572, %v5614
        %v5616 = vpop.f32.mrf.mxu0
        %v5617 = vadd.f32 %v5574, %v5616
        %v5618 = vpop.f32.mrf.mxu0
        %v5619 = vadd.f32 %v5576, %v5618
        %v5620 = vpop.f32.mrf.mxu0
        %v5621 = vadd.f32 %v5578, %v5620
        %5622 = vdwg.mxu0
        %5623 = vmatprep.subr.bf16.mxu0 %v3887
        %5624 = vmatpush1.bf16.msra.mxu0 %v3886
        %5625 = vmatprep.subr.bf16.mxu0 %v3879
        %5626 = vmatpush1.bf16.msra.mxu0 %v3878
        %5627 = vmatprep.subr.bf16.mxu0 %v3871
        %5628 = vmatpush1.bf16.msra.mxu0 %v3870
        %5629 = vmatprep.subr.bf16.mxu0 %v3863
        %5630 = vmatpush1.bf16.msra.mxu0 %v3862
        %5631 = vmatprep.subr.bf16.mxu0 %v3855
        %5632 = vmatpush1.bf16.msra.mxu0 %v3854
        %5633 = vmatprep.subr.bf16.mxu0 %v3847
        %5634 = vmatpush1.bf16.msra.mxu0 %v3846
        %5635 = vmatprep.subr.bf16.mxu0 %v3839
        %5636 = vmatpush1.bf16.msra.mxu0 %v3838
        %5637 = vmatprep.subr.bf16.mxu0 %v3831
        %5638 = vmatpush1.bf16.msra.mxu0 %v3830
        %5639 = vmatprep.subr.bf16.mxu0 %v3951
        %5640 = vmatpush2.bf16.msra.mxu0 %v3950
        %5641 = vmatprep.subr.bf16.mxu0 %v3943
        %5642 = vmatpush2.bf16.msra.mxu0 %v3942
        %5643 = vmatprep.subr.bf16.mxu0 %v3935
        %5644 = vmatpush2.bf16.msra.mxu0 %v3934
        %5645 = vmatprep.subr.bf16.mxu0 %v3927
        %5646 = vmatpush2.bf16.msra.mxu0 %v3926
        %5647 = vmatprep.subr.bf16.mxu0 %v3919
        %5648 = vmatpush2.bf16.msra.mxu0 %v3918
        %5649 = vmatprep.subr.bf16.mxu0 %v3911
        %5650 = vmatpush2.bf16.msra.mxu0 %v3910
        %5651 = vmatprep.subr.bf16.mxu0 %v3903
        %5652 = vmatpush2.bf16.msra.mxu0 %v3902
        %5653 = vmatprep.subr.bf16.mxu0 %v3895
        %5654 = vmatpush2.bf16.msra.mxu0 %v3894
        %5655 = vmatprep.mubr.bf16.mxu0 %v1121
        %5656 = vmatmul.mubr.bf16.gmra.mxu0 %v1120
        %v5657 = vpop.f32.mrf.mxu0
        %v5658 = vadd.f32 %v5615, %v5657
        %v5659 = vpop.f32.mrf.mxu0
        %v5660 = vadd.f32 %v5617, %v5659
        %v5661 = vpop.f32.mrf.mxu0
        %v5662 = vadd.f32 %v5619, %v5661
        %v5663 = vpop.f32.mrf.mxu0
        %v5664 = vadd.f32 %v5621, %v5663
        %5665 = vdwg.mxu0
        %5666 = vmatprep.subr.bf16.mxu0 %v4015
        %5667 = vmatpush1.bf16.msra.mxu0 %v4014
        %5668 = vmatprep.subr.bf16.mxu0 %v4007
        %5669 = vmatpush1.bf16.msra.mxu0 %v4006
        %5670 = vmatprep.subr.bf16.mxu0 %v3999
        %5671 = vmatpush1.bf16.msra.mxu0 %v3998
        %5672 = vmatprep.subr.bf16.mxu0 %v3991
        %5673 = vmatpush1.bf16.msra.mxu0 %v3990
        %5674 = vmatprep.subr.bf16.mxu0 %v3983
        %5675 = vmatpush1.bf16.msra.mxu0 %v3982
        %5676 = vmatprep.subr.bf16.mxu0 %v3975
        %5677 = vmatpush1.bf16.msra.mxu0 %v3974
        %5678 = vmatprep.subr.bf16.mxu0 %v3967
        %5679 = vmatpush1.bf16.msra.mxu0 %v3966
        %5680 = vmatprep.subr.bf16.mxu0 %v3959
        %5681 = vmatpush1.bf16.msra.mxu0 %v3958
        %5682 = vmatprep.subr.bf16.mxu0 %v4079
        %5683 = vmatpush2.bf16.msra.mxu0 %v4078
        %5684 = vmatprep.subr.bf16.mxu0 %v4071
        %5685 = vmatpush2.bf16.msra.mxu0 %v4070
        %5686 = vmatprep.subr.bf16.mxu0 %v4063
        %5687 = vmatpush2.bf16.msra.mxu0 %v4062
        %5688 = vmatprep.subr.bf16.mxu0 %v4055
        %5689 = vmatpush2.bf16.msra.mxu0 %v4054
        %5690 = vmatprep.subr.bf16.mxu0 %v4047
        %5691 = vmatpush2.bf16.msra.mxu0 %v4046
        %5692 = vmatprep.subr.bf16.mxu0 %v4039
        %5693 = vmatpush2.bf16.msra.mxu0 %v4038
        %5694 = vmatprep.subr.bf16.mxu0 %v4031
        %5695 = vmatpush2.bf16.msra.mxu0 %v4030
        %5696 = vmatprep.subr.bf16.mxu0 %v4023
        %5697 = vmatpush2.bf16.msra.mxu0 %v4022
        %5698 = vmatprep.mubr.bf16.mxu0 %v1123
        %5699 = vmatmul.mubr.bf16.gmra.mxu0 %v1122
        %v5700 = vpop.f32.mrf.mxu0
        %v5701 = vadd.f32 %v5658, %v5700
        %v5702 = vpop.f32.mrf.mxu0
        %v5703 = vadd.f32 %v5660, %v5702
        %v5704 = vpop.f32.mrf.mxu0
        %v5705 = vadd.f32 %v5662, %v5704
        %v5706 = vpop.f32.mrf.mxu0
        %v5707 = vadd.f32 %v5664, %v5706
        %5708 = vdwg.mxu0
        %5709 = vmatprep.subr.bf16.mxu0 %v4143
        %5710 = vmatpush1.bf16.msra.mxu0 %v4142
        %5711 = vmatprep.subr.bf16.mxu0 %v4135
        %5712 = vmatpush1.bf16.msra.mxu0 %v4134
        %5713 = vmatprep.subr.bf16.mxu0 %v4127
        %5714 = vmatpush1.bf16.msra.mxu0 %v4126
        %5715 = vmatprep.subr.bf16.mxu0 %v4119
        %5716 = vmatpush1.bf16.msra.mxu0 %v4118
        %5717 = vmatprep.subr.bf16.mxu0 %v4111
        %5718 = vmatpush1.bf16.msra.mxu0 %v4110
        %5719 = vmatprep.subr.bf16.mxu0 %v4103
        %5720 = vmatpush1.bf16.msra.mxu0 %v4102
        %5721 = vmatprep.subr.bf16.mxu0 %v4095
        %5722 = vmatpush1.bf16.msra.mxu0 %v4094
        %5723 = vmatprep.subr.bf16.mxu0 %v4087
        %5724 = vmatpush1.bf16.msra.mxu0 %v4086
        %5725 = vmatprep.subr.bf16.mxu0 %v4207
        %5726 = vmatpush2.bf16.msra.mxu0 %v4206
        %5727 = vmatprep.subr.bf16.mxu0 %v4199
        %5728 = vmatpush2.bf16.msra.mxu0 %v4198
        %5729 = vmatprep.subr.bf16.mxu0 %v4191
        %5730 = vmatpush2.bf16.msra.mxu0 %v4190
        %5731 = vmatprep.subr.bf16.mxu0 %v4183
        %5732 = vmatpush2.bf16.msra.mxu0 %v4182
        %5733 = vmatprep.subr.bf16.mxu0 %v4175
        %5734 = vmatpush2.bf16.msra.mxu0 %v4174
        %5735 = vmatprep.subr.bf16.mxu0 %v4167
        %5736 = vmatpush2.bf16.msra.mxu0 %v4166
        %5737 = vmatprep.subr.bf16.mxu0 %v4159
        %5738 = vmatpush2.bf16.msra.mxu0 %v4158
        %5739 = vmatprep.subr.bf16.mxu0 %v4151
        %5740 = vmatpush2.bf16.msra.mxu0 %v4150
        %5741 = vmatprep.mubr.bf16.mxu0 %v1125
        %5742 = vmatmul.mubr.bf16.gmra.mxu0 %v1124
        %v5743 = vpop.f32.mrf.mxu0
        %v5744 = vadd.f32 %v5701, %v5743
        %v5745 = vpop.f32.mrf.mxu0
        %v5746 = vadd.f32 %v5703, %v5745
        %v5747 = vpop.f32.mrf.mxu0
        %v5748 = vadd.f32 %v5705, %v5747
        %v5749 = vpop.f32.mrf.mxu0
        %v5750 = vadd.f32 %v5707, %v5749
        %5751 = vdwg.mxu0
        %5752 = vmatprep.subr.bf16.mxu0 %v3505
        %5753 = vmatpush1.bf16.msra.mxu0 %v3504
        %5754 = vmatprep.subr.bf16.mxu0 %v3497
        %5755 = vmatpush1.bf16.msra.mxu0 %v3496
        %5756 = vmatprep.subr.bf16.mxu0 %v3489
        %5757 = vmatpush1.bf16.msra.mxu0 %v3488
        %5758 = vmatprep.subr.bf16.mxu0 %v3481
        %5759 = vmatpush1.bf16.msra.mxu0 %v3480
        %5760 = vmatprep.subr.bf16.mxu0 %v3473
        %5761 = vmatpush1.bf16.msra.mxu0 %v3472
        %5762 = vmatprep.subr.bf16.mxu0 %v3465
        %5763 = vmatpush1.bf16.msra.mxu0 %v3464
        %5764 = vmatprep.subr.bf16.mxu0 %v3457
        %5765 = vmatpush1.bf16.msra.mxu0 %v3456
        %5766 = vmatprep.subr.bf16.mxu0 %v3449
        %5767 = vmatpush1.bf16.msra.mxu0 %v3448
        %5768 = vmatprep.subr.bf16.mxu0 %v3569
        %5769 = vmatpush2.bf16.msra.mxu0 %v3568
        %5770 = vmatprep.subr.bf16.mxu0 %v3561
        %5771 = vmatpush2.bf16.msra.mxu0 %v3560
        %5772 = vmatprep.subr.bf16.mxu0 %v3553
        %5773 = vmatpush2.bf16.msra.mxu0 %v3552
        %5774 = vmatprep.subr.bf16.mxu0 %v3545
        %5775 = vmatpush2.bf16.msra.mxu0 %v3544
        %5776 = vmatprep.subr.bf16.mxu0 %v3537
        %5777 = vmatpush2.bf16.msra.mxu0 %v3536
        %5778 = vmatprep.subr.bf16.mxu0 %v3529
        %5779 = vmatpush2.bf16.msra.mxu0 %v3528
        %5780 = vmatprep.subr.bf16.mxu0 %v3521
        %5781 = vmatpush2.bf16.msra.mxu0 %v3520
        %5782 = vmatprep.subr.bf16.mxu0 %v3513
        %5783 = vmatpush2.bf16.msra.mxu0 %v3512
        %5784 = vmatprep.mubr.bf16.mxu0 %v1115
        %5785 = vmatmul.mubr.bf16.gmra.mxu0 %v1114
        %v5786 = vpop.f32.mrf.mxu0
        %v5787 = vadd.f32 0.0, %v5786
        %v5788 = vpop.f32.mrf.mxu0
        %v5789 = vadd.f32 0.0, %v5788
        %v5790 = vpop.f32.mrf.mxu0
        %v5791 = vadd.f32 0.0, %v5790
        %v5792 = vpop.f32.mrf.mxu0
        %v5793 = vadd.f32 0.0, %v5792
        %5794 = vdwg.mxu0
        %5795 = vmatprep.subr.bf16.mxu0 %v3633
        %5796 = vmatpush1.bf16.msra.mxu0 %v3632
        %5797 = vmatprep.subr.bf16.mxu0 %v3625
        %5798 = vmatpush1.bf16.msra.mxu0 %v3624
        %5799 = vmatprep.subr.bf16.mxu0 %v3617
        %5800 = vmatpush1.bf16.msra.mxu0 %v3616
        %5801 = vmatprep.subr.bf16.mxu0 %v3609
        %5802 = vmatpush1.bf16.msra.mxu0 %v3608
        %5803 = vmatprep.subr.bf16.mxu0 %v3601
        %5804 = vmatpush1.bf16.msra.mxu0 %v3600
        %5805 = vmatprep.subr.bf16.mxu0 %v3593
        %5806 = vmatpush1.bf16.msra.mxu0 %v3592
        %5807 = vmatprep.subr.bf16.mxu0 %v3585
        %5808 = vmatpush1.bf16.msra.mxu0 %v3584
        %5809 = vmatprep.subr.bf16.mxu0 %v3577
        %5810 = vmatpush1.bf16.msra.mxu0 %v3576
        %5811 = vmatprep.subr.bf16.mxu0 %v3697
        %5812 = vmatpush2.bf16.msra.mxu0 %v3696
        %5813 = vmatprep.subr.bf16.mxu0 %v3689
        %5814 = vmatpush2.bf16.msra.mxu0 %v3688
        %5815 = vmatprep.subr.bf16.mxu0 %v3681
        %5816 = vmatpush2.bf16.msra.mxu0 %v3680
        %5817 = vmatprep.subr.bf16.mxu0 %v3673
        %5818 = vmatpush2.bf16.msra.mxu0 %v3672
        %5819 = vmatprep.subr.bf16.mxu0 %v3665
        %5820 = vmatpush2.bf16.msra.mxu0 %v3664
        %5821 = vmatprep.subr.bf16.mxu0 %v3657
        %5822 = vmatpush2.bf16.msra.mxu0 %v3656
        %5823 = vmatprep.subr.bf16.mxu0 %v3649
        %5824 = vmatpush2.bf16.msra.mxu0 %v3648
        %5825 = vmatprep.subr.bf16.mxu0 %v3641
        %5826 = vmatpush2.bf16.msra.mxu0 %v3640
        %5827 = vmatprep.mubr.bf16.mxu0 %v1117
        %5828 = vmatmul.mubr.bf16.gmra.mxu0 %v1116
        %v5829 = vpop.f32.mrf.mxu0
        %v5830 = vadd.f32 %v5787, %v5829
        %v5831 = vpop.f32.mrf.mxu0
        %v5832 = vadd.f32 %v5789, %v5831
        %v5833 = vpop.f32.mrf.mxu0
        %v5834 = vadd.f32 %v5791, %v5833
        %v5835 = vpop.f32.mrf.mxu0
        %v5836 = vadd.f32 %v5793, %v5835
        %5837 = vdwg.mxu0
        %5838 = vmatprep.subr.bf16.mxu0 %v3761
        %5839 = vmatpush1.bf16.msra.mxu0 %v3760
        %5840 = vmatprep.subr.bf16.mxu0 %v3753
        %5841 = vmatpush1.bf16.msra.mxu0 %v3752
        %5842 = vmatprep.subr.bf16.mxu0 %v3745
        %5843 = vmatpush1.bf16.msra.mxu0 %v3744
        %5844 = vmatprep.subr.bf16.mxu0 %v3737
        %5845 = vmatpush1.bf16.msra.mxu0 %v3736
        %5846 = vmatprep.subr.bf16.mxu0 %v3729
        %5847 = vmatpush1.bf16.msra.mxu0 %v3728
        %5848 = vmatprep.subr.bf16.mxu0 %v3721
        %5849 = vmatpush1.bf16.msra.mxu0 %v3720
        %5850 = vmatprep.subr.bf16.mxu0 %v3713
        %5851 = vmatpush1.bf16.msra.mxu0 %v3712
        %5852 = vmatprep.subr.bf16.mxu0 %v3705
        %5853 = vmatpush1.bf16.msra.mxu0 %v3704
        %5854 = vmatprep.subr.bf16.mxu0 %v3825
        %5855 = vmatpush2.bf16.msra.mxu0 %v3824
        %5856 = vmatprep.subr.bf16.mxu0 %v3817
        %5857 = vmatpush2.bf16.msra.mxu0 %v3816
        %5858 = vmatprep.subr.bf16.mxu0 %v3809
        %5859 = vmatpush2.bf16.msra.mxu0 %v3808
        %5860 = vmatprep.subr.bf16.mxu0 %v3801
        %5861 = vmatpush2.bf16.msra.mxu0 %v3800
        %5862 = vmatprep.subr.bf16.mxu0 %v3793
        %5863 = vmatpush2.bf16.msra.mxu0 %v3792
        %5864 = vmatprep.subr.bf16.mxu0 %v3785
        %5865 = vmatpush2.bf16.msra.mxu0 %v3784
        %5866 = vmatprep.subr.bf16.mxu0 %v3777
        %5867 = vmatpush2.bf16.msra.mxu0 %v3776
        %5868 = vmatprep.subr.bf16.mxu0 %v3769
        %5869 = vmatpush2.bf16.msra.mxu0 %v3768
        %5870 = vmatprep.mubr.bf16.mxu0 %v1119
        %5871 = vmatmul.mubr.bf16.gmra.mxu0 %v1118
        %v5872 = vpop.f32.mrf.mxu0
        %v5873 = vadd.f32 %v5830, %v5872
        %v5874 = vpop.f32.mrf.mxu0
        %v5875 = vadd.f32 %v5832, %v5874
        %v5876 = vpop.f32.mrf.mxu0
        %v5877 = vadd.f32 %v5834, %v5876
        %v5878 = vpop.f32.mrf.mxu0
        %v5879 = vadd.f32 %v5836, %v5878
        %5880 = vdwg.mxu0
        %5881 = vmatprep.subr.bf16.mxu0 %v3889
        %5882 = vmatpush1.bf16.msra.mxu0 %v3888
        %5883 = vmatprep.subr.bf16.mxu0 %v3881
        %5884 = vmatpush1.bf16.msra.mxu0 %v3880
        %5885 = vmatprep.subr.bf16.mxu0 %v3873
        %5886 = vmatpush1.bf16.msra.mxu0 %v3872
        %5887 = vmatprep.subr.bf16.mxu0 %v3865
        %5888 = vmatpush1.bf16.msra.mxu0 %v3864
        %5889 = vmatprep.subr.bf16.mxu0 %v3857
        %5890 = vmatpush1.bf16.msra.mxu0 %v3856
        %5891 = vmatprep.subr.bf16.mxu0 %v3849
        %5892 = vmatpush1.bf16.msra.mxu0 %v3848
        %5893 = vmatprep.subr.bf16.mxu0 %v3841
        %5894 = vmatpush1.bf16.msra.mxu0 %v3840
        %5895 = vmatprep.subr.bf16.mxu0 %v3833
        %5896 = vmatpush1.bf16.msra.mxu0 %v3832
        %5897 = vmatprep.subr.bf16.mxu0 %v3953
        %5898 = vmatpush2.bf16.msra.mxu0 %v3952
        %5899 = vmatprep.subr.bf16.mxu0 %v3945
        %5900 = vmatpush2.bf16.msra.mxu0 %v3944
        %5901 = vmatprep.subr.bf16.mxu0 %v3937
        %5902 = vmatpush2.bf16.msra.mxu0 %v3936
        %5903 = vmatprep.subr.bf16.mxu0 %v3929
        %5904 = vmatpush2.bf16.msra.mxu0 %v3928
        %5905 = vmatprep.subr.bf16.mxu0 %v3921
        %5906 = vmatpush2.bf16.msra.mxu0 %v3920
        %5907 = vmatprep.subr.bf16.mxu0 %v3913
        %5908 = vmatpush2.bf16.msra.mxu0 %v3912
        %5909 = vmatprep.subr.bf16.mxu0 %v3905
        %5910 = vmatpush2.bf16.msra.mxu0 %v3904
        %5911 = vmatprep.subr.bf16.mxu0 %v3897
        %5912 = vmatpush2.bf16.msra.mxu0 %v3896
        %5913 = vmatprep.mubr.bf16.mxu0 %v1121
        %5914 = vmatmul.mubr.bf16.gmra.mxu0 %v1120
        %v5915 = vpop.f32.mrf.mxu0
        %v5916 = vadd.f32 %v5873, %v5915
        %v5917 = vpop.f32.mrf.mxu0
        %v5918 = vadd.f32 %v5875, %v5917
        %v5919 = vpop.f32.mrf.mxu0
        %v5920 = vadd.f32 %v5877, %v5919
        %v5921 = vpop.f32.mrf.mxu0
        %v5922 = vadd.f32 %v5879, %v5921
        %5923 = vdwg.mxu0
        %5924 = vmatprep.subr.bf16.mxu0 %v4017
        %5925 = vmatpush1.bf16.msra.mxu0 %v4016
        %5926 = vmatprep.subr.bf16.mxu0 %v4009
        %5927 = vmatpush1.bf16.msra.mxu0 %v4008
        %5928 = vmatprep.subr.bf16.mxu0 %v4001
        %5929 = vmatpush1.bf16.msra.mxu0 %v4000
        %5930 = vmatprep.subr.bf16.mxu0 %v3993
        %5931 = vmatpush1.bf16.msra.mxu0 %v3992
        %5932 = vmatprep.subr.bf16.mxu0 %v3985
        %5933 = vmatpush1.bf16.msra.mxu0 %v3984
        %5934 = vmatprep.subr.bf16.mxu0 %v3977
        %5935 = vmatpush1.bf16.msra.mxu0 %v3976
        %5936 = vmatprep.subr.bf16.mxu0 %v3969
        %5937 = vmatpush1.bf16.msra.mxu0 %v3968
        %5938 = vmatprep.subr.bf16.mxu0 %v3961
        %5939 = vmatpush1.bf16.msra.mxu0 %v3960
        %5940 = vmatprep.subr.bf16.mxu0 %v4081
        %5941 = vmatpush2.bf16.msra.mxu0 %v4080
        %5942 = vmatprep.subr.bf16.mxu0 %v4073
        %5943 = vmatpush2.bf16.msra.mxu0 %v4072
        %5944 = vmatprep.subr.bf16.mxu0 %v4065
        %5945 = vmatpush2.bf16.msra.mxu0 %v4064
        %5946 = vmatprep.subr.bf16.mxu0 %v4057
        %5947 = vmatpush2.bf16.msra.mxu0 %v4056
        %5948 = vmatprep.subr.bf16.mxu0 %v4049
        %5949 = vmatpush2.bf16.msra.mxu0 %v4048
        %5950 = vmatprep.subr.bf16.mxu0 %v4041
        %5951 = vmatpush2.bf16.msra.mxu0 %v4040
        %5952 = vmatprep.subr.bf16.mxu0 %v4033
        %5953 = vmatpush2.bf16.msra.mxu0 %v4032
        %5954 = vmatprep.subr.bf16.mxu0 %v4025
        %5955 = vmatpush2.bf16.msra.mxu0 %v4024
        %5956 = vmatprep.mubr.bf16.mxu0 %v1123
        %5957 = vmatmul.mubr.bf16.gmra.mxu0 %v1122
        %v5958 = vpop.f32.mrf.mxu0
        %v5959 = vadd.f32 %v5916, %v5958
        %v5960 = vpop.f32.mrf.mxu0
        %v5961 = vadd.f32 %v5918, %v5960
        %v5962 = vpop.f32.mrf.mxu0
        %v5963 = vadd.f32 %v5920, %v5962
        %v5964 = vpop.f32.mrf.mxu0
        %v5965 = vadd.f32 %v5922, %v5964
        %5966 = vdwg.mxu0
        %5967 = vmatprep.subr.bf16.mxu0 %v4145
        %5968 = vmatpush1.bf16.msra.mxu0 %v4144
        %5969 = vmatprep.subr.bf16.mxu0 %v4137
        %5970 = vmatpush1.bf16.msra.mxu0 %v4136
        %5971 = vmatprep.subr.bf16.mxu0 %v4129
        %5972 = vmatpush1.bf16.msra.mxu0 %v4128
        %5973 = vmatprep.subr.bf16.mxu0 %v4121
        %5974 = vmatpush1.bf16.msra.mxu0 %v4120
        %5975 = vmatprep.subr.bf16.mxu0 %v4113
        %5976 = vmatpush1.bf16.msra.mxu0 %v4112
        %5977 = vmatprep.subr.bf16.mxu0 %v4105
        %5978 = vmatpush1.bf16.msra.mxu0 %v4104
        %5979 = vmatprep.subr.bf16.mxu0 %v4097
        %5980 = vmatpush1.bf16.msra.mxu0 %v4096
        %5981 = vmatprep.subr.bf16.mxu0 %v4089
        %5982 = vmatpush1.bf16.msra.mxu0 %v4088
        %5983 = vmatprep.subr.bf16.mxu0 %v4209
        %5984 = vmatpush2.bf16.msra.mxu0 %v4208
        %5985 = vmatprep.subr.bf16.mxu0 %v4201
        %5986 = vmatpush2.bf16.msra.mxu0 %v4200
        %5987 = vmatprep.subr.bf16.mxu0 %v4193
        %5988 = vmatpush2.bf16.msra.mxu0 %v4192
        %5989 = vmatprep.subr.bf16.mxu0 %v4185
        %5990 = vmatpush2.bf16.msra.mxu0 %v4184
        %5991 = vmatprep.subr.bf16.mxu0 %v4177
        %5992 = vmatpush2.bf16.msra.mxu0 %v4176
        %5993 = vmatprep.subr.bf16.mxu0 %v4169
        %5994 = vmatpush2.bf16.msra.mxu0 %v4168
        %5995 = vmatprep.subr.bf16.mxu0 %v4161
        %5996 = vmatpush2.bf16.msra.mxu0 %v4160
        %5997 = vmatprep.subr.bf16.mxu0 %v4153
        %5998 = vmatpush2.bf16.msra.mxu0 %v4152
        %5999 = vmatprep.mubr.bf16.mxu0 %v1125
        %6000 = vmatmul.mubr.bf16.gmra.mxu0 %v1124
        %v6001 = vpop.f32.mrf.mxu0
        %v6002 = vadd.f32 %v5959, %v6001
        %v6003 = vpop.f32.mrf.mxu0
        %v6004 = vadd.f32 %v5961, %v6003
        %v6005 = vpop.f32.mrf.mxu0
        %v6006 = vadd.f32 %v5963, %v6005
        %v6007 = vpop.f32.mrf.mxu0
        %v6008 = vadd.f32 %v5965, %v6007
        %6009 = vdwg.mxu0
        %v6010 = vadd.f32 %v294, %v5228
        %v6011 = vadd.f32 %v295, %v5230
        %v6012 = vadd.f32 %v296, %v5486
        %v6013 = vadd.f32 %v297, %v5488
        %v6014 = vadd.f32 %v298, %v5744
        %v6015 = vadd.f32 %v299, %v5746
        %v6016 = vadd.f32 %v300, %v6002
        %v6017 = vadd.f32 %v301, %v6004
        %v6018 = vadd.f32 %v302, %v5232
        %v6019 = vadd.f32 %v303, %v5234
        %v6020 = vadd.f32 %v304, %v5490
        %v6021 = vadd.f32 %v305, %v5492
        %v6022 = vadd.f32 %v306, %v5748
        %v6023 = vadd.f32 %v307, %v5750
        %v6024 = vadd.f32 %v308, %v6006
        %v6025 = vadd.f32 %v309, %v6008
        %6026 = vst [vmem:[#allocation2] sm:$0xff] %v6010
        %6027 = vst [vmem:[#allocation2 + $0x8] sm:$0xff] %v6011
        %6028 = vst [vmem:[#allocation2 + $0x10] sm:$0xff] %v6012
        %6029 = vst [vmem:[#allocation2 + $0x18] sm:$0xff] %v6013
        %6030 = vst [vmem:[#allocation2 + $0x20] sm:$0xff] %v6014
        %6031 = vst [vmem:[#allocation2 + $0x28] sm:$0xff] %v6015
        %6032 = vst [vmem:[#allocation2 + $0x30] sm:$0xff] %v6016
        %6033 = vst [vmem:[#allocation2 + $0x38] sm:$0xff] %v6017
        %6034 = vst [vmem:[#allocation2 + $0x40] sm:$0xff] %v6018
        %6035 = vst [vmem:[#allocation2 + $0x48] sm:$0xff] %v6019
        %6036 = vst [vmem:[#allocation2 + $0x50] sm:$0xff] %v6020
        %6037 = vst [vmem:[#allocation2 + $0x58] sm:$0xff] %v6021
        %6038 = vst [vmem:[#allocation2 + $0x60] sm:$0xff] %v6022
        %6039 = vst [vmem:[#allocation2 + $0x68] sm:$0xff] %v6023
        %6040 = vst [vmem:[#allocation2 + $0x70] sm:$0xff] %v6024
        %6041 = vst [vmem:[#allocation2 + $0x78] sm:$0xff] %v6025
        %p6042 = scmp.eq.s32.totalorder %s26, 1
        // Predicated region
        $region49: #{tpu_custom_call.1} parent=31 // pred_check
          %p6043 = pneg %p6042
        $region50: #{tpu_custom_call.1} parent=31 // pred_check_branch
          %6045 = sbr.rel (%p6043) target = $region52
        $region51: #{tpu_custom_call.1} parent=31 // pred_region
          %v6046 = vld [vmem:[#allocation2] sm:$0xff]
          %v6047 = vld [vmem:[#allocation2 + $0x8] sm:$0xff]
          %v6048 = vld [vmem:[#allocation2 + $0x10] sm:$0xff]
          %v6049 = vld [vmem:[#allocation2 + $0x18] sm:$0xff]
          %v6050 = vld [vmem:[#allocation2 + $0x20] sm:$0xff]
          %v6051 = vld [vmem:[#allocation2 + $0x28] sm:$0xff]
          %v6052 = vld [vmem:[#allocation2 + $0x30] sm:$0xff]
          %v6053 = vld [vmem:[#allocation2 + $0x38] sm:$0xff]
          %v6054 = vld [vmem:[#allocation2 + $0x40] sm:$0xff]
          %v6055 = vld [vmem:[#allocation2 + $0x48] sm:$0xff]
          %v6056 = vld [vmem:[#allocation2 + $0x50] sm:$0xff]
          %v6057 = vld [vmem:[#allocation2 + $0x58] sm:$0xff]
          %v6058 = vld [vmem:[#allocation2 + $0x60] sm:$0xff]
          %v6059 = vld [vmem:[#allocation2 + $0x68] sm:$0xff]
          %v6060 = vld [vmem:[#allocation2 + $0x70] sm:$0xff]
          %v6061 = vld [vmem:[#allocation2 + $0x78] sm:$0xff]
          %v6062 = vld [vmem:[%s227] sm:$0xff]
          %v6064 = vlaneseq
          %v6065 = vshrl.u32 %v6064, 7
          %v6066 = vsub.s32 0, %v6065
          %v6067 = vrot.slane %v6062, %v6066
          %v6068 = vlaneseq
          %v6069 = vshrl.u32 %v6068, 7
          %v6070 = vsub.s32 1, %v6069
          %v6071 = vrot.slane %v6062, %v6070
          %v6072 = vlaneseq
          %v6073 = vshrl.u32 %v6072, 7
          %v6074 = vsub.s32 2, %v6073
          %v6075 = vrot.slane %v6062, %v6074
          %v6076 = vlaneseq
          %v6077 = vshrl.u32 %v6076, 7
          %v6078 = vsub.s32 3, %v6077
          %v6079 = vrot.slane %v6062, %v6078
          %v6080 = vlaneseq
          %v6081 = vshrl.u32 %v6080, 7
          %v6082 = vsub.s32 4, %v6081
          %v6083 = vrot.slane %v6062, %v6082
          %v6084 = vlaneseq
          %v6085 = vshrl.u32 %v6084, 7
          %v6086 = vsub.s32 5, %v6085
          %v6087 = vrot.slane %v6062, %v6086
          %v6088 = vlaneseq
          %v6089 = vshrl.u32 %v6088, 7
          %v6090 = vsub.s32 6, %v6089
          %v6091 = vrot.slane %v6062, %v6090
          %v6092 = vlaneseq
          %v6093 = vshrl.u32 %v6092, 7
          %v6094 = vsub.s32 7, %v6093
          %v6095 = vrot.slane %v6062, %v6094
          %v6104 = vadd.f32 %v6046, %v6067
          %v6105 = vadd.f32 %v6047, %v6071
          %v6106 = vadd.f32 %v6048, %v6075
          %v6107 = vadd.f32 %v6049, %v6079
          %v6108 = vadd.f32 %v6050, %v6083
          %v6109 = vadd.f32 %v6051, %v6087
          %v6110 = vadd.f32 %v6052, %v6091
          %v6111 = vadd.f32 %v6053, %v6095
          %v6112 = vadd.f32 %v6054, %v6067
          %v6113 = vadd.f32 %v6055, %v6071
          %v6114 = vadd.f32 %v6056, %v6075
          %v6115 = vadd.f32 %v6057, %v6079
          %v6116 = vadd.f32 %v6058, %v6083
          %v6117 = vadd.f32 %v6059, %v6087
          %v6118 = vadd.f32 %v6060, %v6091
          %v6119 = vadd.f32 %v6061, %v6095
          %v6120 = vmax.f32 %v6104, 0.0
          %v6121 = vmax.f32 %v6105, 0.0
          %v6122 = vmax.f32 %v6106, 0.0
          %v6123 = vmax.f32 %v6107, 0.0
          %v6124 = vmax.f32 %v6108, 0.0
          %v6125 = vmax.f32 %v6109, 0.0
          %v6126 = vmax.f32 %v6110, 0.0
          %v6127 = vmax.f32 %v6111, 0.0
          %v6128 = vmax.f32 %v6112, 0.0
          %v6129 = vmax.f32 %v6113, 0.0
          %v6130 = vmax.f32 %v6114, 0.0
          %v6131 = vmax.f32 %v6115, 0.0
          %v6132 = vmax.f32 %v6116, 0.0
          %v6133 = vmax.f32 %v6117, 0.0
          %v6134 = vmax.f32 %v6118, 0.0
          %v6135 = vmax.f32 %v6119, 0.0
          %v6136 = vpack.c.bf16 %v6128, %v6120
          %v6137 = vpack.c.bf16 %v6129, %v6121
          %v6138 = vpack.c.bf16 %v6130, %v6122
          %v6139 = vpack.c.bf16 %v6131, %v6123
          %v6140 = vpack.c.bf16 %v6132, %v6124
          %v6141 = vpack.c.bf16 %v6133, %v6125
          %v6142 = vpack.c.bf16 %v6134, %v6126
          %v6143 = vpack.c.bf16 %v6135, %v6127
          %v6152 = vunpack.c.l.b16 %v6136
          %v6153 = vunpack.c.l.b16 %v6137
          %v6154 = vunpack.c.l.b16 %v6138
          %v6155 = vunpack.c.l.b16 %v6139
          %v6156 = vunpack.c.l.b16 %v6140
          %v6157 = vunpack.c.l.b16 %v6141
          %v6158 = vunpack.c.l.b16 %v6142
          %v6159 = vunpack.c.l.b16 %v6143
          %v6160 = vunpack.c.h.b16 %v6136
          %v6161 = vunpack.c.h.b16 %v6137
          %v6162 = vunpack.c.h.b16 %v6138
          %v6163 = vunpack.c.h.b16 %v6139
          %v6164 = vunpack.c.h.b16 %v6140
          %v6165 = vunpack.c.h.b16 %v6141
          %v6166 = vunpack.c.h.b16 %v6142
          %v6167 = vunpack.c.h.b16 %v6143
          %v6168 = vpack.c.b16 %v6153, %v6152
          %v6169 = vpack.c.b16 %v6155, %v6154
          %v6170 = vpack.c.b16 %v6157, %v6156
          %v6171 = vpack.c.b16 %v6159, %v6158
          %v6172 = vpack.c.b16 %v6161, %v6160
          %v6173 = vpack.c.b16 %v6163, %v6162
          %v6174 = vpack.c.b16 %v6165, %v6164
          %v6175 = vpack.c.b16 %v6167, %v6166
          %6184 = vst [vmem:[%s254] sm:$0xff] %v6168
          %6185 = vst [vmem:[%s254 + $0x8] sm:$0xff] %v6169
          %6186 = vst [vmem:[%s254 + $0x10] sm:$0xff] %v6170
          %6187 = vst [vmem:[%s254 + $0x18] sm:$0xff] %v6171
          %6188 = vst [vmem:[%s254 + $0x20] sm:$0xff] %v6172
          %6189 = vst [vmem:[%s254 + $0x28] sm:$0xff] %v6173
          %6190 = vst [vmem:[%s254 + $0x30] sm:$0xff] %v6174
          %6191 = vst [vmem:[%s254 + $0x38] sm:$0xff] %v6175
        $region52: #{tpu_custom_call.1} parent=31 // pred_fallthru
          _
        %s6192 = sand.u32 %s116, 1
        %s6193 = scalar_lea.sflag [#allocation5], %s6192
        %s6194 = sand.u32 %s116, 1
        %s6195 = smul.addr %s6194, 64
        %s6196 = scalar_lea.vmem [#allocation9], %s6195
        // Predicated region
        $region53: #{tpu_custom_call.1} parent=31 // pred_check
          %p6197 = pneg %p126
        $region54: #{tpu_custom_call.1} parent=31 // pred_check_branch
          %6199 = sbr.rel (%p6197) target = $region56
        $region55: #{tpu_custom_call.1} parent=31 // pred_region
          %s6200 = smul.u32 8, %s25
          %s6202 = ssub.s32 1024, 1024
          %6203 = vsyncadd %s6193, %s6202
          %s6204 = smul.addr %s6200, 64
          %s6205 = scalar_lea.hbm %s3, %s6204
          %s6206 = sshll.u32 %s6196, 4
          %s6207 = int_to_ptr.vmem [resolvable:$true] %s6206
          %6212 = dma.vmem_to_hbm [thread:$0]  %s6207, 1024, %s6205, %s6193, 512, 2048, 32
        $region56: #{tpu_custom_call.1} parent=31 // pred_fallthru
          _
      $region32: #{tpu_custom_call.1} parent=5 // pred_fallthru
        _
      %p6213 = scmp.le.s32.totalorder 2, %s16
      // Predicated region
      $region57: #{tpu_custom_call.1} parent=5 // pred_check
        %p6214 = pneg %p6213
      $region58: #{tpu_custom_call.1} parent=5 // pred_check_branch
        %6216 = sbr.rel (%p6214) target = $region60
      $region59: #{tpu_custom_call.1} parent=5 // pred_region
        %s6217 = ssub.s32 %s16, 2
        // Predicated region
        $region61: #{tpu_custom_call.1} parent=59 // pred_check
          %p6218 = pneg %p132
        $region62: #{tpu_custom_call.1} parent=59 // pred_check_branch
          %6220 = sbr.rel (%p6218) target = $region64
        $region63: #{tpu_custom_call.1} parent=59 // pred_region
          %s6221 = sand.u32 %s117, 1
          %s6222 = scalar_lea.sflag [#allocation5], %s6221
          %s6223 = sand.u32 %s117, 1
          %s6224 = smul.addr %s6223, 64
          %s6225 = scalar_lea.vmem [#allocation9], %s6224
          %6226 = dma.done %s6222, 1024
        $region64: #{tpu_custom_call.1} parent=59 // pred_fallthru
          _
      $region60: #{tpu_custom_call.1} parent=5 // pred_fallthru
        _
    $region6: #{tpu_custom_call.1} parent=1 // loop_footer
      %s20 = sadd.s32 1, %s16
    $region7: #{tpu_custom_call.1} parent=1 // loop_footer_branch
      %15 = sbr.rel target = $region3
    $region8: #{tpu_custom_call.1} parent=1 // loop_exit
      _
    %6227 = vsyncpa [#allocation4], 1
    %s6228 = scalar_lea.sflag [#allocation4], 1
    %6229 = vsyncpa %s6228, 1
    %6230 = vsyncpa [#allocation7], 1
    %s6231 = scalar_lea.sflag [#allocation7], 1
    %6232 = vsyncpa %s6231, 1
    %6233 = vsyncpa [#allocation5], 1
    %s6234 = scalar_lea.sflag [#allocation5], 1
    %6235 = vsyncpa %s6234, 1

</llo_original>
